<compile_context>
chip_gen: v7x
topology: tpu7x:2x2x1
jax: 0.10.0
libtpu: 0.0.40
codegen_flags: <defaults>
</compile_context>

<pallas_src>
import functools

import jax
import jax.numpy as jnp
from jax import lax
from jax.experimental import pallas as pl
from jax.experimental.pallas import tpu as pltpu

LANE = 128


def _round_up(x, m):
    return ((x + m - 1) // m) * m


@functools.lru_cache(maxsize=1)
def _vmem_limit_bytes():
    """Generation-aware scoped-VMEM limit (~80% of physical, capped at 100 MiB)."""
    try:
        cap = int(pltpu.get_tpu_info().vmem_capacity_bytes)
    except Exception:                      # older jax / interpret mode: be safe
        cap = 64 * 1024 * 1024
    return max(32 * 1024 * 1024, min(int(cap * 0.8), 100 * 1024 * 1024))


def _grid_geom(n):
    """Pad N and pick (row, k) tiles: 256/512-aligned, no tiny-tile cliff."""
    np_ = _round_up(max(n, 128), 256)
    tile_n = min(512 if np_ % 512 == 0 else 256, np_)
    # single k block (y effectively resident) unless the (tile_n, Np) A slab
    # would pressure VMEM; then bound it with 256/512-wide k tiles.
    tile_k = np_ if np_ <= 2048 else (512 if np_ % 512 == 0 else 256)
    return np_, tile_n, tile_k


# --------------------------------------------------------------------------
# Kernel 1 (gridless): GRU weight evolution.  Fused [r|z|n] gate slabs -> 2
# MXU matmuls; emits f32 W_t (aliased onto W_{t-1}'s buffer) + a bf16 copy.
# --------------------------------------------------------------------------
def _gru_evolve_kernel(xhat_ref, wprev_ref, wi_ref, wh_ref, bi_ref, bhn_ref,
                       wnew_ref, wbf16_ref):
    Fp = wprev_ref.shape[0]
    xh = xhat_ref[...]                                           # (Fp, Fp)
    h = wprev_ref[...]                                           # (Fp, Fp)
    gi = jnp.dot(xh, wi_ref[...], preferred_element_type=jnp.float32) + bi_ref[...]
    gh = jnp.dot(h, wh_ref[...], preferred_element_type=jnp.float32)
    r = jax.nn.sigmoid(gi[:, :Fp] + gh[:, :Fp])                  # 128-aligned slices
    z = jax.nn.sigmoid(gi[:, Fp:2 * Fp] + gh[:, Fp:2 * Fp])
    n = jnp.tanh(gi[:, 2 * Fp:] + r * (gh[:, 2 * Fp:] + bhn_ref[...]))
    w_new = (1.0 - z) * n + z * h
    wnew_ref[...] = w_new
    wbf16_ref[...] = w_new.astype(jnp.bfloat16)


# --------------------------------------------------------------------------
# Kernel 2 (row-tiled, "parallel"): y = D^-1/2 * (x @ W_t)
#   bf16 MXU inputs, f32 accumulate + scale, bf16 output stream.
# --------------------------------------------------------------------------
def _xw_kernel(x_ref, w_ref, dinv_ref, y_ref):
    xw = jnp.dot(x_ref[...], w_ref[...], preferred_element_type=jnp.float32)
    y_ref[...] = (dinv_ref[...] * xw).astype(jnp.bfloat16)


# --------------------------------------------------------------------------
# Kernel 3 (row x k tiled): out = D^-1/2 * (A @ y + y)
#   Algebraic form of D^-1/2 (A+I) D^-1/2 @ x @ W -- no (N,N) temporaries.
#   f32 VMEM accumulator, reduction axis last ("arbitrary").
# --------------------------------------------------------------------------
def _gcn_agg_kernel(a_ref, ystrm_ref, ytile_ref, dinv_ref, out_ref, acc_ref):
    k = pl.program_id(1)

    @pl.when(k == 0)
    def _():
        acc_ref[...] = jnp.zeros_like(acc_ref)

    acc_ref[...] += jnp.dot(a_ref[...], ystrm_ref[...],
                            preferred_element_type=jnp.float32)

    @pl.when(k == pl.num_programs(1) - 1)
    def _():
        out_ref[...] = dinv_ref[...] * (acc_ref[...]
                                        + ytile_ref[...].astype(jnp.float32))


# --------------------------------------------------------------------------
# One EvolveGCN-H time step (three Pallas calls)
# --------------------------------------------------------------------------
def _egch_step(params, W, x_hat, x_bf16, A_bf16, dinv, *,
               tile_n, tile_k, vmem_limit):
    Np, Fp = x_bf16.shape
    n_row, n_k = Np // tile_n, Np // tile_k

    # ---- GRU weight evolution (tiny, gridless; W_prev buffer reused) ----
    W_new, W_bf16 = pl.pallas_call(
        _gru_evolve_kernel,
        out_shape=(jax.ShapeDtypeStruct((Fp, Fp), jnp.float32),
                   jax.ShapeDtypeStruct((Fp, Fp), jnp.bfloat16)),
        input_output_aliases={1: 0},
        compiler_params=pltpu.CompilerParams(vmem_limit_bytes=vmem_limit),
    )(x_hat, W, params["w_i"], params["w_h"], params["b_i"], params["b_hn"])

    row_f = pl.BlockSpec((tile_n, Fp), lambda i: (i, 0))
    row_1 = pl.BlockSpec((tile_n, 1), lambda i: (i, 0))

    # ---- y = D^-1/2 * (x @ W_t), row-tiled, megacore-parallel ----
    y = pl.pallas_call(
        _xw_kernel,
        grid=(n_row,),
        in_specs=[row_f, pl.BlockSpec((Fp, Fp), lambda i: (0, 0)), row_1],
        out_specs=row_f,
        out_shape=jax.ShapeDtypeStruct((Np, Fp), jnp.bfloat16),
        compiler_params=pltpu.CompilerParams(
            dimension_semantics=("parallel",), vmem_limit_bytes=vmem_limit),
    )(x_bf16, W_bf16, dinv)

    # ---- out = D^-1/2 * (A @ y + y), row x k tiled ----
    x_out = pl.pallas_call(
        _gcn_agg_kernel,
        grid=(n_row, n_k),
        in_specs=[pl.BlockSpec((tile_n, tile_k), lambda i, k: (i, k)),   # A (bf16)
                  pl.BlockSpec((tile_k, Fp), lambda i, k: (k, 0)),       # y k-stream
                  pl.BlockSpec((tile_n, Fp), lambda i, k: (i, 0)),       # y residual
                  pl.BlockSpec((tile_n, 1), lambda i, k: (i, 0))],       # dinv
        out_specs=pl.BlockSpec((tile_n, Fp), lambda i, k: (i, 0)),
        out_shape=jax.ShapeDtypeStruct((Np, Fp), jnp.float32),
        scratch_shapes=[pltpu.VMEM((tile_n, Fp), jnp.float32)],
        compiler_params=pltpu.CompilerParams(
            dimension_semantics=("parallel", "arbitrary"),
            vmem_limit_bytes=vmem_limit),
    )(A_bf16, y, y, dinv)

    return W_new, x_out


# --------------------------------------------------------------------------
# Module wrapper with deterministic parameter init
# --------------------------------------------------------------------------
class EGCHUnitPallas:
    def __init__(self, in_features, out_features=None, *, key):
        out_features = in_features if out_features is None else out_features
        # The reference consumes the evolved W (out, out) as the GCN weight on
        # x (N, in), which forces in_features == out_features in practice.
        assert in_features == out_features
        F = in_features
        Fp = _round_up(F, LANE)              # lane-dense / MXU-friendly padded width
        self.F, self.Fp, self.K = F, Fp, F

        k0, k1, k2, k3, k4, k5 = jax.random.split(key, 6)

        # TopKPooling projection (PyG init), pre-normalized once (loop-invariant).
        bp = 1.0 / (F ** 0.5)
        p = jax.random.uniform(k0, (F,), jnp.float32, -bp, bp)
        p_hat = p / jnp.sqrt(jnp.sum(p * p))

        # W0: glorot uniform on the real (F, F) block; zero padding elsewhere.
        a = (6.0 / (F + F)) ** 0.5
        w0 = jax.random.uniform(k1, (F, F), jnp.float32, -a, a)
        self.W0 = jnp.zeros((Fp, Fp), jnp.float32).at[:F, :F].set(w0)

        # nn.GRU params (1 layer): uniform(-1/sqrt(H), 1/sqrt(H)); gate order [r|z|n].
        bg = 1.0 / (F ** 0.5)
        w_ih = jax.random.uniform(k2, (3 * F, F), jnp.float32, -bg, bg)
        w_hh = jax.random.uniform(k3, (3 * F, F), jnp.float32, -bg, bg)
        b_ih = jax.random.uniform(k4, (3 * F,), jnp.float32, -bg, bg)
        b_hh = jax.random.uniform(k5, (3 * F,), jnp.float32, -bg, bg)

        def slab_wt(w3):   # (3F, F) -> (Fp, 3Fp) [r|z|n], each gate block transposed
            s = jnp.zeros((Fp, 3 * Fp), jnp.float32)
            for g in range(3):
                s = s.at[:F, g * Fp:g * Fp + F].set(w3[g * F:(g + 1) * F].T)
            return s

        b_i = jnp.zeros((1, 3 * Fp), jnp.float32)
        b_i = b_i.at[0, 0 * Fp:0 * Fp + F].set(b_ih[:F] + b_hh[:F])             # r
        b_i = b_i.at[0, 1 * Fp:1 * Fp + F].set(b_ih[F:2 * F] + b_hh[F:2 * F])   # z
        b_i = b_i.at[0, 2 * Fp:2 * Fp + F].set(b_ih[2 * F:])                    # n (input)
        b_hn = jnp.zeros((1, Fp), jnp.float32).at[0, :F].set(b_hh[2 * F:])

        self.params = dict(
            p_hat=jnp.zeros((Fp,), jnp.float32).at[:F].set(p_hat),
            w_i=slab_wt(w_ih), w_h=slab_wt(w_hh), b_i=b_i, b_hn=b_hn,
        )
        # raw (unpadded) parameters, kept only for the pure-JAX reference check
        self.raw = dict(p_hat=p_hat, W0=w0, w_ih=w_ih, w_hh=w_hh,
                        b_ih=b_ih, b_hh=b_hh)

        self._forward = jax.jit(self._forward_impl)

    def _forward_impl(self, x_stk, A_stk):
        T, N, F = x_stk.shape
        Fp, K = self.Fp, self.K
        Np, tile_n, tile_k = _grid_geom(N)
        vmem = _vmem_limit_bytes()

        # ---- pad once: features -> Fp, nodes -> Np (zero rows: deg=1, out=0) ----
        x_f32 = jnp.pad(x_stk, ((0, 0), (0, Np - N), (0, Fp - F)))
        x_bf16 = x_f32.astype(jnp.bfloat16)                         # streamed operand
        A_bf16 = jnp.pad(A_stk, ((0, 0), (0, Np - N), (0, Np - N))).astype(jnp.bfloat16)

        # single symmetric-norm degree vector, f32-accumulated from bf16 A,
        # precomputed for the whole sequence outside the scan.
        # TODO(synk): exact GCNConv_Fixed_W normalization/bias unavailable; using
        # standard symmetric GCN norm D^-1/2 (A + I) D^-1/2 with one degree vector.
        dinv = lax.rsqrt(jnp.sum(A_bf16, axis=-1, keepdims=True,
                                 dtype=jnp.float32) + 1.0)           # (T, Np, 1)

        # ---- TopKPooling, hoisted out of the scan (tiny matvec + sort glue) ----
        score = jnp.tanh(jnp.einsum("tnf,f->tn", x_f32, self.params["p_hat"]))
        score = jnp.where(jnp.arange(Np)[None, :] < N, score, -jnp.inf)  # mask padding
        s_top, idx = lax.top_k(score, K)                              # descending
        x_hat = (jnp.take_along_axis(x_f32, idx[:, :, None], axis=1)
                 * s_top[:, :, None])                                 # (T, K, Fp)
        x_hat = jnp.pad(x_hat, ((0, 0), (0, Fp - K), (0, 0)))         # (T, Fp, Fp)

        def body(W, xs):
            xh, x16, a16, dv = xs
            return _egch_step(self.params, W, xh, x16, a16, dv,
                              tile_n=tile_n, tile_k=tile_k, vmem_limit=vmem)

        _, outs = lax.scan(body, self.W0, (x_hat, x_bf16, A_bf16, dinv))
        return outs[:, :N, :F]                                        # strip padding

    def forward(self, x_seq, A_seq, sources_mask_seq=None):
        # TODO(synk): sources_mask_seq (non-square A) path not implemented.
        assert sources_mask_seq is None
        assert len(x_seq) == len(A_seq)
        assert x_seq[0].shape[0] >= self.K
        outs = self._forward(jnp.stack(x_seq), jnp.stack(A_seq))
        return [outs[t] for t in range(outs.shape[0])]


# --------------------------------------------------------------------------
# Pure-JAX (unpadded, f32) reference of the same forward, for a sanity check
# --------------------------------------------------------------------------
def _reference_forward(model, x_seq, A_seq):
    F, K = model.F, model.K
    raw = model.raw
    p_hat, W = raw["p_hat"], raw["W0"]
    w_ih, w_hh, b_ih, b_hh = raw["w_ih"], raw["w_hh"], raw["b_ih"], raw["b_hh"]
    w_ir, w_iz, w_in = w_ih[:F].T, w_ih[F:2 * F].T, w_ih[2 * F:].T
    w_hr, w_hz, w_hn = w_hh[:F].T, w_hh[F:2 * F].T, w_hh[2 * F:].T
    outs = []
    for x, A in zip(x_seq, A_seq):
        score = jnp.tanh(x @ p_hat)
        s_top, idx = lax.top_k(score, K)
        xh = x[idx] * s_top[:, None]
        r = jax.nn.sigmoid(xh @ w_ir + W @ w_hr + b_ih[:F] + b_hh[:F])
        z = jax.nn.sigmoid(xh @ w_iz + W @ w_hz + b_ih[F:2 * F] + b_hh[F:2 * F])
        n = jnp.tanh(xh @ w_in + b_ih[2 * F:] + r * (W @ w_hn + b_hh[2 * F:]))
        W = (1.0 - z) * n + z * W
        dinv = lax.rsqrt(jnp.sum(A, axis=1, keepdims=True) + 1.0)
        y = dinv * (x @ W)
        outs.append(dinv * (A @ y + y))
    return outs


if __name__ == "__main__":
    key = jax.random.PRNGKey(0)
    T, N, F = 3, 16, 8                     # time steps, nodes, features
    kx, ka, kp = jax.random.split(key, 3)

    x_stk = jax.random.normal(kx, (T, N, F), jnp.float32)
    a_raw = jax.random.uniform(ka, (T, N, N), jnp.float32)
    A_stk = jnp.where(a_raw > 0.7, a_raw, 0.0)   # sparse-ish weighted adjacency

    x_seq = [x_stk[t] for t in range(T)]
    A_seq = [A_stk[t] for t in range(T)]

    model = EGCHUnitPallas(F, key=kp)
    outs = model.forward(x_seq, A_seq)
    for o in outs:
        jax.block_until_ready(o)

    refs = _reference_forward(model, x_seq, A_seq)
    assert all(o.shape == (N, F) for o in outs)
    assert all(bool(jnp.all(jnp.isfinite(o))) for o in outs)
    assert all(bool(jnp.allclose(o, r, rtol=5e-2, atol=5e-2))   # bf16-stream tolerance
               for o, r in zip(outs, refs))
    print("KERNEL_OK")
</pallas_src>

<mosaic_0001>
module attributes {stable_mosaic.version = 11 : i64} {
  func.func @_gru_evolve_kernel(%arg0: memref<128x128xf32, #tpu.memory_space<vmem>>, %arg1: memref<128x128xf32, #tpu.memory_space<vmem>>, %arg2: memref<128x384xf32, #tpu.memory_space<vmem>>, %arg3: memref<128x384xf32, #tpu.memory_space<vmem>>, %arg4: memref<1x384xf32, #tpu.memory_space<vmem>>, %arg5: memref<1x128xf32, #tpu.memory_space<vmem>>, %arg6: memref<128x128xf32, #tpu.memory_space<vmem>>, %arg7: memref<128x128xbf16, #tpu.memory_space<vmem>>) attributes {dimension_semantics = [], scalar_prefetch = 0 : i64, scratch_operands = 0 : i64, tpu.core_type = #tpu.core_type<tc>} {
    %c0 = arith.constant 0 : index
    %c0_0 = arith.constant 0 : index
    %0 = vector.load %arg0[%c0, %c0_0] : memref<128x128xf32, #tpu.memory_space<vmem>>, vector<128x128xf32>
    %c0_1 = arith.constant 0 : index
    %c0_2 = arith.constant 0 : index
    %1 = vector.load %arg1[%c0_1, %c0_2] : memref<128x128xf32, #tpu.memory_space<vmem>>, vector<128x128xf32>
    %c0_3 = arith.constant 0 : index
    %c0_4 = arith.constant 0 : index
    %2 = vector.load %arg2[%c0_3, %c0_4] : memref<128x384xf32, #tpu.memory_space<vmem>>, vector<128x384xf32>
    %cst = arith.constant dense<0.000000e+00> : vector<128x384xf32>
    %3 = tpu.matmul %0, %2, %cst {dimension_numbers = #tpu.dot_dimension_numbers<[1], [0], [0], [1], [0, 0, 1, 1], [], []>} : vector<128x128xf32>, vector<128x384xf32>, vector<128x384xf32> -> vector<128x384xf32>
    %c0_5 = arith.constant 0 : index
    %c0_6 = arith.constant 0 : index
    %4 = vector.load %arg4[%c0_5, %c0_6] : memref<1x384xf32, #tpu.memory_space<vmem>>, vector<1x384xf32>
    %5 = vector.broadcast %4 : vector<1x384xf32> to vector<128x384xf32>
    %6 = arith.addf %3, %5 : vector<128x384xf32>
    %c0_7 = arith.constant 0 : index
    %c0_8 = arith.constant 0 : index
    %7 = vector.load %arg3[%c0_7, %c0_8] : memref<128x384xf32, #tpu.memory_space<vmem>>, vector<128x384xf32>
    %cst_9 = arith.constant dense<0.000000e+00> : vector<128x384xf32>
    %8 = tpu.matmul %1, %7, %cst_9 {dimension_numbers = #tpu.dot_dimension_numbers<[1], [0], [0], [1], [0, 0, 1, 1], [], []>} : vector<128x128xf32>, vector<128x384xf32>, vector<128x384xf32> -> vector<128x384xf32>
    %9 = vector.extract_strided_slice %6 {offsets = [0, 0], sizes = [128, 128], strides = [1, 1]} : vector<128x384xf32> to vector<128x128xf32>
    %10 = vector.extract_strided_slice %8 {offsets = [0, 0], sizes = [128, 128], strides = [1, 1]} : vector<128x384xf32> to vector<128x128xf32>
    %11 = arith.addf %9, %10 : vector<128x128xf32>
    %12 = arith.negf %11 : vector<128x128xf32>
    %13 = math.exp %12 : vector<128x128xf32>
    %cst_10 = arith.constant 1.000000e+00 : f32
    %14 = vector.broadcast %cst_10 : f32 to vector<128x128xf32>
    %15 = arith.addf %14, %13 : vector<128x128xf32>
    %16 = arith.divf %14, %15 : vector<128x128xf32>
    %17 = vector.extract_strided_slice %6 {offsets = [0, 128], sizes = [128, 128], strides = [1, 1]} : vector<128x384xf32> to vector<128x128xf32>
    %18 = vector.extract_strided_slice %8 {offsets = [0, 128], sizes = [128, 128], strides = [1, 1]} : vector<128x384xf32> to vector<128x128xf32>
    %19 = arith.addf %17, %18 : vector<128x128xf32>
    %20 = arith.negf %19 : vector<128x128xf32>
    %21 = math.exp %20 : vector<128x128xf32>
    %cst_11 = arith.constant 1.000000e+00 : f32
    %22 = vector.broadcast %cst_11 : f32 to vector<128x128xf32>
    %23 = arith.addf %22, %21 : vector<128x128xf32>
    %24 = arith.divf %22, %23 : vector<128x128xf32>
    %25 = vector.extract_strided_slice %6 {offsets = [0, 256], sizes = [128, 128], strides = [1, 1]} : vector<128x384xf32> to vector<128x128xf32>
    %26 = vector.extract_strided_slice %8 {offsets = [0, 256], sizes = [128, 128], strides = [1, 1]} : vector<128x384xf32> to vector<128x128xf32>
    %c0_12 = arith.constant 0 : index
    %c0_13 = arith.constant 0 : index
    %27 = vector.load %arg5[%c0_12, %c0_13] : memref<1x128xf32, #tpu.memory_space<vmem>>, vector<1x128xf32>
    %28 = vector.broadcast %27 : vector<1x128xf32> to vector<128x128xf32>
    %29 = arith.addf %26, %28 : vector<128x128xf32>
    %30 = arith.mulf %16, %29 : vector<128x128xf32>
    %31 = arith.addf %25, %30 : vector<128x128xf32>
    %32 = math.tanh %31 : vector<128x128xf32>
    %cst_14 = arith.constant 1.000000e+00 : f32
    %33 = vector.broadcast %cst_14 : f32 to vector<128x128xf32>
    %34 = arith.subf %33, %24 : vector<128x128xf32>
    %35 = arith.mulf %34, %32 : vector<128x128xf32>
    %36 = arith.mulf %24, %1 : vector<128x128xf32>
    %37 = arith.addf %35, %36 : vector<128x128xf32>
    %c0_15 = arith.constant 0 : index
    %c0_16 = arith.constant 0 : index
    %38 = vector.load %arg6[%c0_15, %c0_16] : memref<128x128xf32, #tpu.memory_space<vmem>>, vector<128x128xf32>
    tpu.vector_store %arg6[%c0_15, %c0_16], %37 {strides = array<i32>} : memref<128x128xf32, #tpu.memory_space<vmem>>, vector<128x128xf32>,
    %39 = arith.truncf %37 : vector<128x128xf32> to vector<128x128xbf16>
    %c0_17 = arith.constant 0 : index
    %c0_18 = arith.constant 0 : index
    %40 = vector.load %arg7[%c0_17, %c0_18] : memref<128x128xbf16, #tpu.memory_space<vmem>>, vector<128x128xbf16>
    tpu.vector_store %arg7[%c0_17, %c0_18], %39 {strides = array<i32>} : memref<128x128xbf16, #tpu.memory_space<vmem>>, vector<128x128xbf16>,
    return
  }
}

module attributes {stable_mosaic.version = 11 : i64} {
  func.func @_xw_kernel(%arg0: i32, %arg1: memref<256x128xbf16, #tpu.memory_space<vmem>>, %arg2: memref<128x128xbf16, #tpu.memory_space<vmem>>, %arg3: memref<256x1xf32, #tpu.memory_space<vmem>>, %arg4: memref<256x128xbf16, #tpu.memory_space<vmem>>) attributes {dimension_semantics = [#tpu.dimension_semantics<parallel>], iteration_bounds = array<i64: 1>, scalar_prefetch = 0 : i64, scratch_operands = 0 : i64, tpu.core_type = #tpu.core_type<tc>, window_params = [{transform_indices = @transform_0, window_bounds = array<i64: 256, 128>}, {pipeline_mode = #tpu.pipeline_mode<synchronous>, transform_indices = @transform_1, window_bounds = array<i64: 128, 128>}, {transform_indices = @transform_2, window_bounds = array<i64: 256, 1>}, {transform_indices = @transform_3, window_bounds = array<i64: 256, 128>}]} {
    %c0 = arith.constant 0 : index
    %c0_0 = arith.constant 0 : index
    %0 = vector.load %arg1[%c0, %c0_0] : memref<256x128xbf16, #tpu.memory_space<vmem>>, vector<256x128xbf16>
    %c0_1 = arith.constant 0 : index
    %c0_2 = arith.constant 0 : index
    %1 = vector.load %arg2[%c0_1, %c0_2] : memref<128x128xbf16, #tpu.memory_space<vmem>>, vector<128x128xbf16>
    %cst = arith.constant dense<0.000000e+00> : vector<256x128xf32>
    %2 = tpu.matmul %0, %1, %cst {dimension_numbers = #tpu.dot_dimension_numbers<[1], [0], [0], [1], [0, 0, 1, 1], [], []>} : vector<256x128xbf16>, vector<128x128xbf16>, vector<256x128xf32> -> vector<256x128xf32>
    %c0_3 = arith.constant 0 : index
    %c0_4 = arith.constant 0 : index
    %3 = vector.load %arg3[%c0_3, %c0_4] : memref<256x1xf32, #tpu.memory_space<vmem>>, vector<256x1xf32>
    %4 = vector.broadcast %3 : vector<256x1xf32> to vector<256x128xf32>
    %5 = arith.mulf %4, %2 : vector<256x128xf32>
    %6 = arith.truncf %5 : vector<256x128xf32> to vector<256x128xbf16>
    %c0_5 = arith.constant 0 : index
    %c0_6 = arith.constant 0 : index
    %7 = vector.load %arg4[%c0_5, %c0_6] : memref<256x128xbf16, #tpu.memory_space<vmem>>, vector<256x128xbf16>
    tpu.vector_store %arg4[%c0_5, %c0_6], %6 {strides = array<i32>} : memref<256x128xbf16, #tpu.memory_space<vmem>>, vector<256x128xbf16>,
    return
  }
  func.func @transform_0(%arg0: i32) -> (i32, i32) {
    %c0_i32 = arith.constant 0 : i32
    %c0_i32_0 = arith.constant 0 : i32
    return %arg0, %c0_i32 : i32, i32
  }
  func.func @transform_1(%arg0: i32) -> (i32, i32) {
    %c0_i32 = arith.constant 0 : i32
    %c0_i32_0 = arith.constant 0 : i32
    %c0_i32_1 = arith.constant 0 : i32
    return %c0_i32, %c0_i32_0 : i32, i32
  }
  func.func @transform_2(%arg0: i32) -> (i32, i32) {
    %c0_i32 = arith.constant 0 : i32
    %c0_i32_0 = arith.constant 0 : i32
    return %arg0, %c0_i32 : i32, i32
  }
  func.func @transform_3(%arg0: i32) -> (i32, i32) {
    %c0_i32 = arith.constant 0 : i32
    %c0_i32_0 = arith.constant 0 : i32
    return %arg0, %c0_i32 : i32, i32
  }
}

module attributes {stable_mosaic.version = 11 : i64} {
  func.func @_gcn_agg_kernel(%arg0: i32, %arg1: i32, %arg2: memref<256x256xbf16, #tpu.memory_space<vmem>>, %arg3: memref<256x128xbf16, #tpu.memory_space<vmem>>, %arg4: memref<256x128xbf16, #tpu.memory_space<vmem>>, %arg5: memref<256x1xf32, #tpu.memory_space<vmem>>, %arg6: memref<256x128xf32, #tpu.memory_space<vmem>>, %arg7: memref<256x128xf32, #tpu.memory_space<vmem>>) attributes {dimension_semantics = [#tpu.dimension_semantics<parallel>, #tpu.dimension_semantics<arbitrary>], iteration_bounds = array<i64: 1, 1>, scalar_prefetch = 0 : i64, scratch_operands = 1 : i64, tpu.core_type = #tpu.core_type<tc>, window_params = [{transform_indices = @transform_0, window_bounds = array<i64: 256, 256>}, {transform_indices = @transform_1, window_bounds = array<i64: 256, 128>}, {transform_indices = @transform_2, window_bounds = array<i64: 256, 128>}, {transform_indices = @transform_3, window_bounds = array<i64: 256, 1>}, {transform_indices = @transform_4, window_bounds = array<i64: 256, 128>}]} {
    %c0_i32 = arith.constant 0 : i32
    %0 = arith.cmpi eq, %arg1, %c0_i32 : i32
    %1 = arith.extui %0 : i1 to i32
    %c0_i32_0 = arith.constant 0 : i32
    %2 = arith.cmpi ne, %1, %c0_i32_0 : i32
    scf.if %2 {
      %cst_10 = arith.constant 0.000000e+00 : f32
      %12 = vector.broadcast %cst_10 : f32 to vector<256x128xf32>
      %c0_11 = arith.constant 0 : index
      %c0_12 = arith.constant 0 : index
      %13 = vector.load %arg7[%c0_11, %c0_12] : memref<256x128xf32, #tpu.memory_space<vmem>>, vector<256x128xf32>
      tpu.vector_store %arg7[%c0_11, %c0_12], %12 {strides = array<i32>} : memref<256x128xf32, #tpu.memory_space<vmem>>, vector<256x128xf32>,
    } else {
    }
    %c0 = arith.constant 0 : index
    %c0_1 = arith.constant 0 : index
    %3 = vector.load %arg7[%c0, %c0_1] : memref<256x128xf32, #tpu.memory_space<vmem>>, vector<256x128xf32>
    %c0_2 = arith.constant 0 : index
    %c0_3 = arith.constant 0 : index
    %4 = vector.load %arg2[%c0_2, %c0_3] : memref<256x256xbf16, #tpu.memory_space<vmem>>, vector<256x256xbf16>
    %c0_4 = arith.constant 0 : index
    %c0_5 = arith.constant 0 : index
    %5 = vector.load %arg3[%c0_4, %c0_5] : memref<256x128xbf16, #tpu.memory_space<vmem>>, vector<256x128xbf16>
    %cst = arith.constant dense<0.000000e+00> : vector<256x128xf32>
    %6 = tpu.matmul %4, %5, %cst {dimension_numbers = #tpu.dot_dimension_numbers<[1], [0], [0], [1], [0, 0, 1, 1], [], []>} : vector<256x256xbf16>, vector<256x128xbf16>, vector<256x128xf32> -> vector<256x128xf32>
    %7 = arith.addf %3, %6 : vector<256x128xf32>
    %c0_6 = arith.constant 0 : index
    %c0_7 = arith.constant 0 : index
    %8 = vector.load %arg7[%c0_6, %c0_7] : memref<256x128xf32, #tpu.memory_space<vmem>>, vector<256x128xf32>
    tpu.vector_store %arg7[%c0_6, %c0_7], %7 {strides = array<i32>} : memref<256x128xf32, #tpu.memory_space<vmem>>, vector<256x128xf32>,
    %c0_i32_8 = arith.constant 0 : i32
    %9 = arith.cmpi eq, %arg1, %c0_i32_8 : i32
    %10 = arith.extui %9 : i1 to i32
    %c0_i32_9 = arith.constant 0 : i32
    %11 = arith.cmpi ne, %10, %c0_i32_9 : i32
    scf.if %11 {
      %c0_10 = arith.constant 0 : index
      %c0_11 = arith.constant 0 : index
      %12 = vector.load %arg5[%c0_10, %c0_11] : memref<256x1xf32, #tpu.memory_space<vmem>>, vector<256x1xf32>
      %c0_12 = arith.constant 0 : index
      %c0_13 = arith.constant 0 : index
      %13 = vector.load %arg7[%c0_12, %c0_13] : memref<256x128xf32, #tpu.memory_space<vmem>>, vector<256x128xf32>
      %c0_14 = arith.constant 0 : index
      %c0_15 = arith.constant 0 : index
      %14 = vector.load %arg4[%c0_14, %c0_15] : memref<256x128xbf16, #tpu.memory_space<vmem>>, vector<256x128xbf16>
      %15 = arith.extf %14 : vector<256x128xbf16> to vector<256x128xf32>
      %16 = arith.addf %13, %15 : vector<256x128xf32>
      %17 = vector.broadcast %12 : vector<256x1xf32> to vector<256x128xf32>
      %18 = arith.mulf %17, %16 : vector<256x128xf32>
      %c0_16 = arith.constant 0 : index
      %c0_17 = arith.constant 0 : index
      %19 = vector.load %arg6[%c0_16, %c0_17] : memref<256x128xf32, #tpu.memory_space<vmem>>, vector<256x128xf32>
      tpu.vector_store %arg6[%c0_16, %c0_17], %18 {strides = array<i32>} : memref<256x128xf32, #tpu.memory_space<vmem>>, vector<256x128xf32>,
    } else {
    }
    return
  }
  func.func @transform_0(%arg0: i32, %arg1: i32) -> (i32, i32) {
    %c0_i32 = arith.constant 0 : i32
    return %arg0, %arg1 : i32, i32
  }
  func.func @transform_1(%arg0: i32, %arg1: i32) -> (i32, i32) {
    %c0_i32 = arith.constant 0 : i32
    %c0_i32_0 = arith.constant 0 : i32
    return %arg1, %c0_i32 : i32, i32
  }
  func.func @transform_2(%arg0: i32, %arg1: i32) -> (i32, i32) {
    %c0_i32 = arith.constant 0 : i32
    %c0_i32_0 = arith.constant 0 : i32
    return %arg0, %c0_i32 : i32, i32
  }
  func.func @transform_3(%arg0: i32, %arg1: i32) -> (i32, i32) {
    %c0_i32 = arith.constant 0 : i32
    %c0_i32_0 = arith.constant 0 : i32
    return %arg0, %c0_i32 : i32, i32
  }
  func.func @transform_4(%arg0: i32, %arg1: i32) -> (i32, i32) {
    %c0_i32 = arith.constant 0 : i32
    %c0_i32_0 = arith.constant 0 : i32
    return %arg0, %c0_i32 : i32, i32
  }
}

</mosaic_0001>

<llo_original>
// kernel: custom-call.2
$region0: #{custom-call.2}
  %s0 = inlined_call_operand.vmem [shape: f32[3,256,128], index: 0, kind: output, shape index: {}]

// kernel: closed_call.13
$region0: #{closed_call.13}
  #allocation0 [shape = 'u32[]', space=smem, size = 0x4, offset = 0x4, fixed_abs, tag = 'smem constant byte address 0x4 - core index']
  #allocation1 [shape = 'u32[144,128]{1,0:T(1,128)}', space=vmem, size = 0x12000, scoped, tag = 'internal scratch']
  %s0 = inlined_call_operand.vmem [shape: f32[128,128], index: 0, kind: input, shape index: {}]
  %s1 = inlined_call_operand.vmem [shape: f32[128,128], index: 1, kind: input, shape index: {}, may-alias: {1,6}]
  %s2 = inlined_call_operand.vmem [shape: f32[128,384], index: 2, kind: input, shape index: {}]
  %s3 = inlined_call_operand.vmem [shape: f32[128,384], index: 3, kind: input, shape index: {}]
  %s4 = inlined_call_operand.vmem [shape: f32[1,384], index: 4, kind: input, shape index: {}]
  %s5 = inlined_call_operand.vmem [shape: f32[1,128], index: 5, kind: input, shape index: {}]
  %s6 = inlined_call_operand.vmem [shape: f32[128,128], index: 6, kind: output, shape index: {0}, may-alias: {1,6}]
  %s7 = inlined_call_operand.vmem [shape: bf16[128,128], index: 7, kind: output, shape index: {1}]
  %8 = xla_tuple %s6, %s7
  %s9 = sld [smem:[#allocation0]]
  $region42: #{closed_call.13} parent=0
    _
  %s11 = ssub.s32 1, %s9
  %s12 = scalar_select 0, %s11, %s9
  // Predicated region
  $region2: #{closed_call.13} parent=0 // pred_check
    _
  $region3: #{closed_call.13} parent=0 // pred_check_branch
    %14 = sbr.rel (0) target = $region5
  $region4: #{closed_call.13} parent=0 // pred_region
    _
  $region5: #{closed_call.13} parent=0 // pred_fallthru
    _
  // Predicated region
  $region6: #{closed_call.13} parent=0 // pred_check
    _
  $region7: #{closed_call.13} parent=0 // pred_check_branch
    %16 = sbr.rel (0) target = $region9
  $region8: #{closed_call.13} parent=0 // pred_region
    _
  $region9: #{closed_call.13} parent=0 // pred_fallthru
    _
  // Predicated region
  $region10: #{closed_call.13} parent=0 // pred_check
    _
  $region11: #{closed_call.13} parent=0 // pred_check_branch
    %18 = sbr.rel (0) target = $region13
  $region12: #{closed_call.13} parent=0 // pred_region
    _
  $region13: #{closed_call.13} parent=0 // pred_fallthru
    _
  // Predicated region
  $region14: #{closed_call.13} parent=0 // pred_check
    _
  $region15: #{closed_call.13} parent=0 // pred_check_branch
    %20 = sbr.rel (0) target = $region17
  $region16: #{closed_call.13} parent=0 // pred_region
    _
  $region17: #{closed_call.13} parent=0 // pred_fallthru
    _
  // Predicated region
  $region18: #{closed_call.13} parent=0 // pred_check
    _
  $region19: #{closed_call.13} parent=0 // pred_check_branch
    %22 = sbr.rel (0) target = $region21
  $region20: #{closed_call.13} parent=0 // pred_region
    _
  $region21: #{closed_call.13} parent=0 // pred_fallthru
    _
  // Predicated region
  $region22: #{closed_call.13} parent=0 // pred_check
    _
  $region23: #{closed_call.13} parent=0 // pred_check_branch
    %24 = sbr.rel (0) target = $region25
  $region24: #{closed_call.13} parent=0 // pred_region
    _
  $region25: #{closed_call.13} parent=0 // pred_fallthru
    _
  %v25 = vld [vmem:[%s0] sm:$0xff]
  %v26 = vld [vmem:[%s0 + $0x8] sm:$0xff]
  %v27 = vld [vmem:[%s0 + $0x10] sm:$0xff]
  %v28 = vld [vmem:[%s0 + $0x18] sm:$0xff]
  %v29 = vld [vmem:[%s0 + $0x20] sm:$0xff]
  %v30 = vld [vmem:[%s0 + $0x28] sm:$0xff]
  %v31 = vld [vmem:[%s0 + $0x30] sm:$0xff]
  %v32 = vld [vmem:[%s0 + $0x38] sm:$0xff]
  %v33 = vld [vmem:[%s0 + $0x40] sm:$0xff]
  %v34 = vld [vmem:[%s0 + $0x48] sm:$0xff]
  %v35 = vld [vmem:[%s0 + $0x50] sm:$0xff]
  %v36 = vld [vmem:[%s0 + $0x58] sm:$0xff]
  %v37 = vld [vmem:[%s0 + $0x60] sm:$0xff]
  %v38 = vld [vmem:[%s0 + $0x68] sm:$0xff]
  %v39 = vld [vmem:[%s0 + $0x70] sm:$0xff]
  %v40 = vld [vmem:[%s0 + $0x78] sm:$0xff]
  %v41 = vld [vmem:[%s1] sm:$0xff]
  %v42 = vld [vmem:[%s1 + $0x8] sm:$0xff]
  %v43 = vld [vmem:[%s1 + $0x10] sm:$0xff]
  %v44 = vld [vmem:[%s1 + $0x18] sm:$0xff]
  %v45 = vld [vmem:[%s1 + $0x20] sm:$0xff]
  %v46 = vld [vmem:[%s1 + $0x28] sm:$0xff]
  %v47 = vld [vmem:[%s1 + $0x30] sm:$0xff]
  %v48 = vld [vmem:[%s1 + $0x38] sm:$0xff]
  %v49 = vld [vmem:[%s1 + $0x40] sm:$0xff]
  %v50 = vld [vmem:[%s1 + $0x48] sm:$0xff]
  %v51 = vld [vmem:[%s1 + $0x50] sm:$0xff]
  %v52 = vld [vmem:[%s1 + $0x58] sm:$0xff]
  %v53 = vld [vmem:[%s1 + $0x60] sm:$0xff]
  %v54 = vld [vmem:[%s1 + $0x68] sm:$0xff]
  %v55 = vld [vmem:[%s1 + $0x70] sm:$0xff]
  %v56 = vld [vmem:[%s1 + $0x78] sm:$0xff]
  %v57 = vld [vmem:[%s2] sm:$0xff]
  %v58 = vld [vmem:[%s2 + $0x8] sm:$0xff]
  %v59 = vld [vmem:[%s2 + $0x10] sm:$0xff]
  %v60 = vld [vmem:[%s2 + $0x18] sm:$0xff]
  %v61 = vld [vmem:[%s2 + $0x20] sm:$0xff]
  %v62 = vld [vmem:[%s2 + $0x28] sm:$0xff]
  %v63 = vld [vmem:[%s2 + $0x30] sm:$0xff]
  %v64 = vld [vmem:[%s2 + $0x38] sm:$0xff]
  %v65 = vld [vmem:[%s2 + $0x40] sm:$0xff]
  %v66 = vld [vmem:[%s2 + $0x48] sm:$0xff]
  %v67 = vld [vmem:[%s2 + $0x50] sm:$0xff]
  %v68 = vld [vmem:[%s2 + $0x58] sm:$0xff]
  %v69 = vld [vmem:[%s2 + $0x60] sm:$0xff]
  %v70 = vld [vmem:[%s2 + $0x68] sm:$0xff]
  %v71 = vld [vmem:[%s2 + $0x70] sm:$0xff]
  %v72 = vld [vmem:[%s2 + $0x78] sm:$0xff]
  %v73 = vld [vmem:[%s2 + $0x80] sm:$0xff]
  %v74 = vld [vmem:[%s2 + $0x88] sm:$0xff]
  %v75 = vld [vmem:[%s2 + $0x90] sm:$0xff]
  %v76 = vld [vmem:[%s2 + $0x98] sm:$0xff]
  %v77 = vld [vmem:[%s2 + $0xa0] sm:$0xff]
  %v78 = vld [vmem:[%s2 + $0xa8] sm:$0xff]
  %v79 = vld [vmem:[%s2 + $0xb0] sm:$0xff]
  %v80 = vld [vmem:[%s2 + $0xb8] sm:$0xff]
  %v81 = vld [vmem:[%s2 + $0xc0] sm:$0xff]
  %v82 = vld [vmem:[%s2 + $0xc8] sm:$0xff]
  %v83 = vld [vmem:[%s2 + $0xd0] sm:$0xff]
  %v84 = vld [vmem:[%s2 + $0xd8] sm:$0xff]
  %v85 = vld [vmem:[%s2 + $0xe0] sm:$0xff]
  %v86 = vld [vmem:[%s2 + $0xe8] sm:$0xff]
  %v87 = vld [vmem:[%s2 + $0xf0] sm:$0xff]
  %v88 = vld [vmem:[%s2 + $0xf8] sm:$0xff]
  %v89 = vld [vmem:[%s2 + $0x100] sm:$0xff]
  %v90 = vld [vmem:[%s2 + $0x108] sm:$0xff]
  %v91 = vld [vmem:[%s2 + $0x110] sm:$0xff]
  %v92 = vld [vmem:[%s2 + $0x118] sm:$0xff]
  %v93 = vld [vmem:[%s2 + $0x120] sm:$0xff]
  %v94 = vld [vmem:[%s2 + $0x128] sm:$0xff]
  %v95 = vld [vmem:[%s2 + $0x130] sm:$0xff]
  %v96 = vld [vmem:[%s2 + $0x138] sm:$0xff]
  %v97 = vld [vmem:[%s2 + $0x140] sm:$0xff]
  %v98 = vld [vmem:[%s2 + $0x148] sm:$0xff]
  %v99 = vld [vmem:[%s2 + $0x150] sm:$0xff]
  %v100 = vld [vmem:[%s2 + $0x158] sm:$0xff]
  %v101 = vld [vmem:[%s2 + $0x160] sm:$0xff]
  %v102 = vld [vmem:[%s2 + $0x168] sm:$0xff]
  %v103 = vld [vmem:[%s2 + $0x170] sm:$0xff]
  %v104 = vld [vmem:[%s2 + $0x178] sm:$0xff]
  %v105 = vld [vmem:[%s4] sm:$0x7]
  %v107 = vlaneseq
  %v108 = vshrl.u32 %v107, 7
  %v109 = vsub.s32 0, %v108
  %v110 = vrot.slane %v105, %v109
  %v111 = vlaneseq
  %v112 = vshrl.u32 %v111, 7
  %v113 = vsub.s32 1, %v112
  %v114 = vrot.slane %v105, %v113
  %v115 = vlaneseq
  %v116 = vshrl.u32 %v115, 7
  %v117 = vsub.s32 2, %v116
  %v118 = vrot.slane %v105, %v117
  %122 = vmatprep.subr.mxu0 %v58
  %123 = vmatpush1.msra.mxu0 %v57
  %124 = vmatprep.subr.mxu0 %v61
  %125 = vmatpush1.msra.mxu0 %v60
  %126 = vmatprep.subr.mxu0 %v64
  %127 = vmatpush1.msra.mxu0 %v63
  %128 = vmatprep.subr.mxu0 %v67
  %129 = vmatpush1.msra.mxu0 %v66
  %130 = vmatprep.subr.mxu0 %v70
  %131 = vmatpush1.msra.mxu0 %v69
  %132 = vmatprep.subr.mxu0 %v73
  %133 = vmatpush1.msra.mxu0 %v72
  %134 = vmatprep.subr.mxu0 %v76
  %135 = vmatpush1.msra.mxu0 %v75
  %136 = vmatprep.subr.mxu0 %v79
  %137 = vmatpush1.msra.mxu0 %v78
  %138 = vmatprep.subr.mxu0 %v82
  %139 = vmatpush1.msra.mxu0 %v81
  %140 = vmatprep.subr.mxu0 %v85
  %141 = vmatpush1.msra.mxu0 %v84
  %142 = vmatprep.subr.mxu0 %v88
  %143 = vmatpush1.msra.mxu0 %v87
  %144 = vmatprep.subr.mxu0 %v91
  %145 = vmatpush1.msra.mxu0 %v90
  %146 = vmatprep.subr.mxu0 %v94
  %147 = vmatpush1.msra.mxu0 %v93
  %148 = vmatprep.subr.mxu0 %v97
  %149 = vmatpush1.msra.mxu0 %v96
  %150 = vmatprep.subr.mxu0 %v100
  %151 = vmatpush1.msra.mxu0 %v99
  %152 = vmatprep.subr.mxu0 %v103
  %153 = vmatpush1.msra.mxu0 %v102
  %154 = vmatprep.subr.mxu0 0.0
  %155 = vmatpush1.msra.mxu0 0.0
  %156 = vmatprep.subr.mxu0 0.0
  %157 = vmatpush1.msra.mxu0 0.0
  %158 = vmatprep.subr.mxu0 0.0
  %159 = vmatpush1.msra.mxu0 0.0
  %160 = vmatprep.subr.mxu0 0.0
  %161 = vmatpush1.msra.mxu0 0.0
  %162 = vmatprep.subr.mxu0 0.0
  %163 = vmatpush1.msra.mxu0 0.0
  %164 = vmatprep.subr.mxu0 0.0
  %165 = vmatpush1.msra.mxu0 0.0
  %166 = vmatprep.subr.mxu0 0.0
  %167 = vmatpush1.msra.mxu0 0.0
  %168 = vmatprep.subr.mxu0 0.0
  %169 = vmatpush1.msra.mxu0 0.0
  %170 = vmatprep.subr.mxu0 0.0
  %171 = vmatpush1.msra.mxu0 0.0
  %172 = vmatprep.subr.mxu0 0.0
  %173 = vmatpush1.msra.mxu0 0.0
  %174 = vmatprep.subr.mxu0 0.0
  %175 = vmatpush1.msra.mxu0 0.0
  %176 = vmatprep.subr.mxu0 0.0
  %177 = vmatpush1.msra.mxu0 0.0
  %178 = vmatprep.subr.mxu0 0.0
  %179 = vmatpush1.msra.mxu0 0.0
  %180 = vmatprep.subr.mxu0 0.0
  %181 = vmatpush1.msra.mxu0 0.0
  %182 = vmatprep.subr.mxu0 0.0
  %183 = vmatpush1.msra.mxu0 0.0
  %184 = vmatprep.subr.mxu0 0.0
  %185 = vmatpush1.msra.mxu0 0.0
  %186 = vmatprep.mubr.f32.mxu0 0.0
  %187 = vmatmul.mubr.f32.gmra.mrb[0].mxu0 %v25
  %v188 = vpop.f32.mrb[0].mxu0
  %v189 = vadd.f32 %v110, %v188
  %v190 = vpop.f32.mrb[0].mxu0
  %v191 = vadd.f32 %v114, %v190
  %192 = vmatprep.mubr.f32.mxu0 0.0
  %193 = vmatmul.mubr.f32.gmra.mrb[0].mxu0 %v26
  %v194 = vpop.f32.mrb[0].mxu0
  %v195 = vadd.f32 %v110, %v194
  %v196 = vpop.f32.mrb[0].mxu0
  %v197 = vadd.f32 %v114, %v196
  %198 = vmatprep.mubr.f32.mxu0 0.0
  %199 = vmatmul.mubr.f32.gmra.mrb[0].mxu0 %v27
  %v200 = vpop.f32.mrb[0].mxu0
  %v201 = vadd.f32 %v110, %v200
  %v202 = vpop.f32.mrb[0].mxu0
  %v203 = vadd.f32 %v114, %v202
  %204 = vmatprep.mubr.f32.mxu0 0.0
  %205 = vmatmul.mubr.f32.gmra.mrb[0].mxu0 %v28
  %v206 = vpop.f32.mrb[0].mxu0
  %v207 = vadd.f32 %v110, %v206
  %v208 = vpop.f32.mrb[0].mxu0
  %v209 = vadd.f32 %v114, %v208
  %210 = vmatprep.mubr.f32.mxu0 0.0
  %211 = vmatmul.mubr.f32.gmra.mrb[0].mxu0 %v29
  %v212 = vpop.f32.mrb[0].mxu0
  %v213 = vadd.f32 %v110, %v212
  %v214 = vpop.f32.mrb[0].mxu0
  %v215 = vadd.f32 %v114, %v214
  %216 = vmatprep.mubr.f32.mxu0 0.0
  %217 = vmatmul.mubr.f32.gmra.mrb[0].mxu0 %v30
  %v218 = vpop.f32.mrb[0].mxu0
  %v219 = vadd.f32 %v110, %v218
  %v220 = vpop.f32.mrb[0].mxu0
  %v221 = vadd.f32 %v114, %v220
  %222 = vmatprep.mubr.f32.mxu0 0.0
  %223 = vmatmul.mubr.f32.gmra.mrb[0].mxu0 %v31
  %v224 = vpop.f32.mrb[0].mxu0
  %v225 = vadd.f32 %v110, %v224
  %v226 = vpop.f32.mrb[0].mxu0
  %v227 = vadd.f32 %v114, %v226
  %228 = vmatprep.mubr.f32.mxu0 0.0
  %229 = vmatmul.mubr.f32.gmra.mrb[0].mxu0 %v32
  %v230 = vpop.f32.mrb[0].mxu0
  %v231 = vadd.f32 %v110, %v230
  %v232 = vpop.f32.mrb[0].mxu0
  %v233 = vadd.f32 %v114, %v232
  %234 = vmatprep.mubr.f32.mxu0 0.0
  %235 = vmatmul.mubr.f32.gmra.mrb[0].mxu0 %v33
  %v236 = vpop.f32.mrb[0].mxu0
  %v237 = vadd.f32 %v110, %v236
  %v238 = vpop.f32.mrb[0].mxu0
  %v239 = vadd.f32 %v114, %v238
  %240 = vmatprep.mubr.f32.mxu0 0.0
  %241 = vmatmul.mubr.f32.gmra.mrb[0].mxu0 %v34
  %v242 = vpop.f32.mrb[0].mxu0
  %v243 = vadd.f32 %v110, %v242
  %v244 = vpop.f32.mrb[0].mxu0
  %v245 = vadd.f32 %v114, %v244
  %246 = vmatprep.mubr.f32.mxu0 0.0
  %247 = vmatmul.mubr.f32.gmra.mrb[0].mxu0 %v35
  %v248 = vpop.f32.mrb[0].mxu0
  %v249 = vadd.f32 %v110, %v248
  %v250 = vpop.f32.mrb[0].mxu0
  %v251 = vadd.f32 %v114, %v250
  %252 = vmatprep.mubr.f32.mxu0 0.0
  %253 = vmatmul.mubr.f32.gmra.mrb[0].mxu0 %v36
  %v254 = vpop.f32.mrb[0].mxu0
  %v255 = vadd.f32 %v110, %v254
  %v256 = vpop.f32.mrb[0].mxu0
  %v257 = vadd.f32 %v114, %v256
  %258 = vmatprep.mubr.f32.mxu0 0.0
  %259 = vmatmul.mubr.f32.gmra.mrb[0].mxu0 %v37
  %v260 = vpop.f32.mrb[0].mxu0
  %v261 = vadd.f32 %v110, %v260
  %v262 = vpop.f32.mrb[0].mxu0
  %v263 = vadd.f32 %v114, %v262
  %264 = vmatprep.mubr.f32.mxu0 0.0
  %265 = vmatmul.mubr.f32.gmra.mrb[0].mxu0 %v38
  %v266 = vpop.f32.mrb[0].mxu0
  %v267 = vadd.f32 %v110, %v266
  %v268 = vpop.f32.mrb[0].mxu0
  %v269 = vadd.f32 %v114, %v268
  %270 = vmatprep.mubr.f32.mxu0 0.0
  %271 = vmatmul.mubr.f32.gmra.mrb[0].mxu0 %v39
  %v272 = vpop.f32.mrb[0].mxu0
  %v273 = vadd.f32 %v110, %v272
  %v274 = vpop.f32.mrb[0].mxu0
  %v275 = vadd.f32 %v114, %v274
  %276 = vmatprep.mubr.f32.mxu0 0.0
  %277 = vmatmul.mubr.f32.gmra.mrb[0].mxu0 %v40
  %v278 = vpop.f32.mrb[0].mxu0
  %v279 = vadd.f32 %v110, %v278
  %v280 = vpop.f32.mrb[0].mxu0
  %v281 = vadd.f32 %v114, %v280
  %282 = vdwg.mxu0
  %283 = vmatprep.subr.mxu0 0.0
  %284 = vmatpush1.msra.mxu0 %v59
  %285 = vmatprep.subr.mxu0 0.0
  %286 = vmatpush1.msra.mxu0 %v62
  %287 = vmatprep.subr.mxu0 0.0
  %288 = vmatpush1.msra.mxu0 %v65
  %289 = vmatprep.subr.mxu0 0.0
  %290 = vmatpush1.msra.mxu0 %v68
  %291 = vmatprep.subr.mxu0 0.0
  %292 = vmatpush1.msra.mxu0 %v71
  %293 = vmatprep.subr.mxu0 0.0
  %294 = vmatpush1.msra.mxu0 %v74
  %295 = vmatprep.subr.mxu0 0.0
  %296 = vmatpush1.msra.mxu0 %v77
  %297 = vmatprep.subr.mxu0 0.0
  %298 = vmatpush1.msra.mxu0 %v80
  %299 = vmatprep.subr.mxu0 0.0
  %300 = vmatpush1.msra.mxu0 %v83
  %301 = vmatprep.subr.mxu0 0.0
  %302 = vmatpush1.msra.mxu0 %v86
  %303 = vmatprep.subr.mxu0 0.0
  %304 = vmatpush1.msra.mxu0 %v89
  %305 = vmatprep.subr.mxu0 0.0
  %306 = vmatpush1.msra.mxu0 %v92
  %307 = vmatprep.subr.mxu0 0.0
  %308 = vmatpush1.msra.mxu0 %v95
  %309 = vmatprep.subr.mxu0 0.0
  %310 = vmatpush1.msra.mxu0 %v98
  %311 = vmatprep.subr.mxu0 0.0
  %312 = vmatpush1.msra.mxu0 %v101
  %313 = vmatprep.subr.mxu0 0.0
  %314 = vmatpush1.msra.mxu0 %v104
  %315 = vmatprep.subr.mxu0 0.0
  %316 = vmatpush1.msra.mxu0 0.0
  %317 = vmatprep.subr.mxu0 0.0
  %318 = vmatpush1.msra.mxu0 0.0
  %319 = vmatprep.subr.mxu0 0.0
  %320 = vmatpush1.msra.mxu0 0.0
  %321 = vmatprep.subr.mxu0 0.0
  %322 = vmatpush1.msra.mxu0 0.0
  %323 = vmatprep.subr.mxu0 0.0
  %324 = vmatpush1.msra.mxu0 0.0
  %325 = vmatprep.subr.mxu0 0.0
  %326 = vmatpush1.msra.mxu0 0.0
  %327 = vmatprep.subr.mxu0 0.0
  %328 = vmatpush1.msra.mxu0 0.0
  %329 = vmatprep.subr.mxu0 0.0
  %330 = vmatpush1.msra.mxu0 0.0
  %331 = vmatprep.subr.mxu0 0.0
  %332 = vmatpush1.msra.mxu0 0.0
  %333 = vmatprep.subr.mxu0 0.0
  %334 = vmatpush1.msra.mxu0 0.0
  %335 = vmatprep.subr.mxu0 0.0
  %336 = vmatpush1.msra.mxu0 0.0
  %337 = vmatprep.subr.mxu0 0.0
  %338 = vmatpush1.msra.mxu0 0.0
  %339 = vmatprep.subr.mxu0 0.0
  %340 = vmatpush1.msra.mxu0 0.0
  %341 = vmatprep.subr.mxu0 0.0
  %342 = vmatpush1.msra.mxu0 0.0
  %343 = vmatprep.subr.mxu0 0.0
  %344 = vmatpush1.msra.mxu0 0.0
  %345 = vmatprep.subr.mxu0 0.0
  %346 = vmatpush1.msra.mxu0 0.0
  %347 = vmatprep.mubr.f32.mxu0 0.0
  %348 = vmatmul.mubr.f32.gmra.mrb[0].mxu0 %v25
  %v349 = vpop.f32.mrb[0].mxu0
  %v350 = vadd.f32 %v118, %v349
  %v351 = vpop.f32.mrb[0].mxu0
  %352 = vmatprep.mubr.f32.mxu0 0.0
  %353 = vmatmul.mubr.f32.gmra.mrb[0].mxu0 %v26
  %v354 = vpop.f32.mrb[0].mxu0
  %v355 = vadd.f32 %v118, %v354
  %v356 = vpop.f32.mrb[0].mxu0
  %357 = vmatprep.mubr.f32.mxu0 0.0
  %358 = vmatmul.mubr.f32.gmra.mrb[0].mxu0 %v27
  %v359 = vpop.f32.mrb[0].mxu0
  %v360 = vadd.f32 %v118, %v359
  %v361 = vpop.f32.mrb[0].mxu0
  %362 = vmatprep.mubr.f32.mxu0 0.0
  %363 = vmatmul.mubr.f32.gmra.mrb[0].mxu0 %v28
  %v364 = vpop.f32.mrb[0].mxu0
  %v365 = vadd.f32 %v118, %v364
  %v366 = vpop.f32.mrb[0].mxu0
  %367 = vmatprep.mubr.f32.mxu0 0.0
  %368 = vmatmul.mubr.f32.gmra.mrb[0].mxu0 %v29
  %v369 = vpop.f32.mrb[0].mxu0
  %v370 = vadd.f32 %v118, %v369
  %v371 = vpop.f32.mrb[0].mxu0
  %372 = vmatprep.mubr.f32.mxu0 0.0
  %373 = vmatmul.mubr.f32.gmra.mrb[0].mxu0 %v30
  %v374 = vpop.f32.mrb[0].mxu0
  %v375 = vadd.f32 %v118, %v374
  %v376 = vpop.f32.mrb[0].mxu0
  %377 = vmatprep.mubr.f32.mxu0 0.0
  %378 = vmatmul.mubr.f32.gmra.mrb[0].mxu0 %v31
  %v379 = vpop.f32.mrb[0].mxu0
  %v380 = vadd.f32 %v118, %v379
  %v381 = vpop.f32.mrb[0].mxu0
  %382 = vmatprep.mubr.f32.mxu0 0.0
  %383 = vmatmul.mubr.f32.gmra.mrb[0].mxu0 %v32
  %v384 = vpop.f32.mrb[0].mxu0
  %v385 = vadd.f32 %v118, %v384
  %v386 = vpop.f32.mrb[0].mxu0
  %387 = vmatprep.mubr.f32.mxu0 0.0
  %388 = vmatmul.mubr.f32.gmra.mrb[0].mxu0 %v33
  %v389 = vpop.f32.mrb[0].mxu0
  %v390 = vadd.f32 %v118, %v389
  %v391 = vpop.f32.mrb[0].mxu0
  %392 = vmatprep.mubr.f32.mxu0 0.0
  %393 = vmatmul.mubr.f32.gmra.mrb[0].mxu0 %v34
  %v394 = vpop.f32.mrb[0].mxu0
  %v395 = vadd.f32 %v118, %v394
  %v396 = vpop.f32.mrb[0].mxu0
  %397 = vmatprep.mubr.f32.mxu0 0.0
  %398 = vmatmul.mubr.f32.gmra.mrb[0].mxu0 %v35
  %v399 = vpop.f32.mrb[0].mxu0
  %v400 = vadd.f32 %v118, %v399
  %v401 = vpop.f32.mrb[0].mxu0
  %402 = vmatprep.mubr.f32.mxu0 0.0
  %403 = vmatmul.mubr.f32.gmra.mrb[0].mxu0 %v36
  %v404 = vpop.f32.mrb[0].mxu0
  %v405 = vadd.f32 %v118, %v404
  %v406 = vpop.f32.mrb[0].mxu0
  %407 = vmatprep.mubr.f32.mxu0 0.0
  %408 = vmatmul.mubr.f32.gmra.mrb[0].mxu0 %v37
  %v409 = vpop.f32.mrb[0].mxu0
  %v410 = vadd.f32 %v118, %v409
  %v411 = vpop.f32.mrb[0].mxu0
  %412 = vmatprep.mubr.f32.mxu0 0.0
  %413 = vmatmul.mubr.f32.gmra.mrb[0].mxu0 %v38
  %v414 = vpop.f32.mrb[0].mxu0
  %v415 = vadd.f32 %v118, %v414
  %v416 = vpop.f32.mrb[0].mxu0
  %417 = vmatprep.mubr.f32.mxu0 0.0
  %418 = vmatmul.mubr.f32.gmra.mrb[0].mxu0 %v39
  %v419 = vpop.f32.mrb[0].mxu0
  %v420 = vadd.f32 %v118, %v419
  %v421 = vpop.f32.mrb[0].mxu0
  %422 = vmatprep.mubr.f32.mxu0 0.0
  %423 = vmatmul.mubr.f32.gmra.mrb[0].mxu0 %v40
  %v424 = vpop.f32.mrb[0].mxu0
  %v425 = vadd.f32 %v118, %v424
  %v426 = vpop.f32.mrb[0].mxu0
  %427 = vdwg.mxu0
  %v428 = vld [vmem:[%s3] sm:$0xff]
  %v429 = vld [vmem:[%s3 + $0x8] sm:$0xff]
  %v430 = vld [vmem:[%s3 + $0x10] sm:$0xff]
  %v431 = vld [vmem:[%s3 + $0x18] sm:$0xff]
  %v432 = vld [vmem:[%s3 + $0x20] sm:$0xff]
  %v433 = vld [vmem:[%s3 + $0x28] sm:$0xff]
  %v434 = vld [vmem:[%s3 + $0x30] sm:$0xff]
  %v435 = vld [vmem:[%s3 + $0x38] sm:$0xff]
  %v436 = vld [vmem:[%s3 + $0x40] sm:$0xff]
  %v437 = vld [vmem:[%s3 + $0x48] sm:$0xff]
  %v438 = vld [vmem:[%s3 + $0x50] sm:$0xff]
  %v439 = vld [vmem:[%s3 + $0x58] sm:$0xff]
  %v440 = vld [vmem:[%s3 + $0x60] sm:$0xff]
  %v441 = vld [vmem:[%s3 + $0x68] sm:$0xff]
  %v442 = vld [vmem:[%s3 + $0x70] sm:$0xff]
  %v443 = vld [vmem:[%s3 + $0x78] sm:$0xff]
  %v444 = vld [vmem:[%s3 + $0x80] sm:$0xff]
  %v445 = vld [vmem:[%s3 + $0x88] sm:$0xff]
  %v446 = vld [vmem:[%s3 + $0x90] sm:$0xff]
  %v447 = vld [vmem:[%s3 + $0x98] sm:$0xff]
  %v448 = vld [vmem:[%s3 + $0xa0] sm:$0xff]
  %v449 = vld [vmem:[%s3 + $0xa8] sm:$0xff]
  %v450 = vld [vmem:[%s3 + $0xb0] sm:$0xff]
  %v451 = vld [vmem:[%s3 + $0xb8] sm:$0xff]
  %v452 = vld [vmem:[%s3 + $0xc0] sm:$0xff]
  %v453 = vld [vmem:[%s3 + $0xc8] sm:$0xff]
  %v454 = vld [vmem:[%s3 + $0xd0] sm:$0xff]
  %v455 = vld [vmem:[%s3 + $0xd8] sm:$0xff]
  %v456 = vld [vmem:[%s3 + $0xe0] sm:$0xff]
  %v457 = vld [vmem:[%s3 + $0xe8] sm:$0xff]
  %v458 = vld [vmem:[%s3 + $0xf0] sm:$0xff]
  %v459 = vld [vmem:[%s3 + $0xf8] sm:$0xff]
  %v460 = vld [vmem:[%s3 + $0x100] sm:$0xff]
  %v461 = vld [vmem:[%s3 + $0x108] sm:$0xff]
  %v462 = vld [vmem:[%s3 + $0x110] sm:$0xff]
  %v463 = vld [vmem:[%s3 + $0x118] sm:$0xff]
  %v464 = vld [vmem:[%s3 + $0x120] sm:$0xff]
  %v465 = vld [vmem:[%s3 + $0x128] sm:$0xff]
  %v466 = vld [vmem:[%s3 + $0x130] sm:$0xff]
  %v467 = vld [vmem:[%s3 + $0x138] sm:$0xff]
  %v468 = vld [vmem:[%s3 + $0x140] sm:$0xff]
  %v469 = vld [vmem:[%s3 + $0x148] sm:$0xff]
  %v470 = vld [vmem:[%s3 + $0x150] sm:$0xff]
  %v471 = vld [vmem:[%s3 + $0x158] sm:$0xff]
  %v472 = vld [vmem:[%s3 + $0x160] sm:$0xff]
  %v473 = vld [vmem:[%s3 + $0x168] sm:$0xff]
  %v474 = vld [vmem:[%s3 + $0x170] sm:$0xff]
  %v475 = vld [vmem:[%s3 + $0x178] sm:$0xff]
  %476 = vmatprep.subr.mxu0 %v429
  %477 = vmatpush1.msra.mxu0 %v428
  %478 = vmatprep.subr.mxu0 %v432
  %479 = vmatpush1.msra.mxu0 %v431
  %480 = vmatprep.subr.mxu0 %v435
  %481 = vmatpush1.msra.mxu0 %v434
  %482 = vmatprep.subr.mxu0 %v438
  %483 = vmatpush1.msra.mxu0 %v437
  %484 = vmatprep.subr.mxu0 %v441
  %485 = vmatpush1.msra.mxu0 %v440
  %486 = vmatprep.subr.mxu0 %v444
  %487 = vmatpush1.msra.mxu0 %v443
  %488 = vmatprep.subr.mxu0 %v447
  %489 = vmatpush1.msra.mxu0 %v446
  %490 = vmatprep.subr.mxu0 %v450
  %491 = vmatpush1.msra.mxu0 %v449
  %492 = vmatprep.subr.mxu0 %v453
  %493 = vmatpush1.msra.mxu0 %v452
  %494 = vmatprep.subr.mxu0 %v456
  %495 = vmatpush1.msra.mxu0 %v455
  %496 = vmatprep.subr.mxu0 %v459
  %497 = vmatpush1.msra.mxu0 %v458
  %498 = vmatprep.subr.mxu0 %v462
  %499 = vmatpush1.msra.mxu0 %v461
  %500 = vmatprep.subr.mxu0 %v465
  %501 = vmatpush1.msra.mxu0 %v464
  %502 = vmatprep.subr.mxu0 %v468
  %503 = vmatpush1.msra.mxu0 %v467
  %504 = vmatprep.subr.mxu0 %v471
  %505 = vmatpush1.msra.mxu0 %v470
  %506 = vmatprep.subr.mxu0 %v474
  %507 = vmatpush1.msra.mxu0 %v473
  %508 = vmatprep.subr.mxu0 0.0
  %509 = vmatpush1.msra.mxu0 0.0
  %510 = vmatprep.subr.mxu0 0.0
  %511 = vmatpush1.msra.mxu0 0.0
  %512 = vmatprep.subr.mxu0 0.0
  %513 = vmatpush1.msra.mxu0 0.0
  %514 = vmatprep.subr.mxu0 0.0
  %515 = vmatpush1.msra.mxu0 0.0
  %516 = vmatprep.subr.mxu0 0.0
  %517 = vmatpush1.msra.mxu0 0.0
  %518 = vmatprep.subr.mxu0 0.0
  %519 = vmatpush1.msra.mxu0 0.0
  %520 = vmatprep.subr.mxu0 0.0
  %521 = vmatpush1.msra.mxu0 0.0
  %522 = vmatprep.subr.mxu0 0.0
  %523 = vmatpush1.msra.mxu0 0.0
  %524 = vmatprep.subr.mxu0 0.0
  %525 = vmatpush1.msra.mxu0 0.0
  %526 = vmatprep.subr.mxu0 0.0
  %527 = vmatpush1.msra.mxu0 0.0
  %528 = vmatprep.subr.mxu0 0.0
  %529 = vmatpush1.msra.mxu0 0.0
  %530 = vmatprep.subr.mxu0 0.0
  %531 = vmatpush1.msra.mxu0 0.0
  %532 = vmatprep.subr.mxu0 0.0
  %533 = vmatpush1.msra.mxu0 0.0
  %534 = vmatprep.subr.mxu0 0.0
  %535 = vmatpush1.msra.mxu0 0.0
  %536 = vmatprep.subr.mxu0 0.0
  %537 = vmatpush1.msra.mxu0 0.0
  %538 = vmatprep.subr.mxu0 0.0
  %539 = vmatpush1.msra.mxu0 0.0
  %540 = vmatprep.mubr.f32.mxu0 0.0
  %541 = vmatmul.mubr.f32.gmra.mrb[0].mxu0 %v41
  %v542 = vpop.f32.mrb[0].mxu0
  %v543 = vadd.f32 0.0, %v542
  %v544 = vpop.f32.mrb[0].mxu0
  %v545 = vadd.f32 0.0, %v544
  %546 = vmatprep.mubr.f32.mxu0 0.0
  %547 = vmatmul.mubr.f32.gmra.mrb[0].mxu0 %v42
  %v548 = vpop.f32.mrb[0].mxu0
  %v549 = vadd.f32 0.0, %v548
  %v550 = vpop.f32.mrb[0].mxu0
  %v551 = vadd.f32 0.0, %v550
  %552 = vmatprep.mubr.f32.mxu0 0.0
  %553 = vmatmul.mubr.f32.gmra.mrb[0].mxu0 %v43
  %v554 = vpop.f32.mrb[0].mxu0
  %v555 = vadd.f32 0.0, %v554
  %v556 = vpop.f32.mrb[0].mxu0
  %v557 = vadd.f32 0.0, %v556
  %558 = vmatprep.mubr.f32.mxu0 0.0
  %559 = vmatmul.mubr.f32.gmra.mrb[0].mxu0 %v44
  %v560 = vpop.f32.mrb[0].mxu0
  %v561 = vadd.f32 0.0, %v560
  %v562 = vpop.f32.mrb[0].mxu0
  %v563 = vadd.f32 0.0, %v562
  %564 = vmatprep.mubr.f32.mxu0 0.0
  %565 = vmatmul.mubr.f32.gmra.mrb[0].mxu0 %v45
  %v566 = vpop.f32.mrb[0].mxu0
  %v567 = vadd.f32 0.0, %v566
  %v568 = vpop.f32.mrb[0].mxu0
  %v569 = vadd.f32 0.0, %v568
  %570 = vmatprep.mubr.f32.mxu0 0.0
  %571 = vmatmul.mubr.f32.gmra.mrb[0].mxu0 %v46
  %v572 = vpop.f32.mrb[0].mxu0
  %v573 = vadd.f32 0.0, %v572
  %v574 = vpop.f32.mrb[0].mxu0
  %v575 = vadd.f32 0.0, %v574
  %576 = vmatprep.mubr.f32.mxu0 0.0
  %577 = vmatmul.mubr.f32.gmra.mrb[0].mxu0 %v47
  %v578 = vpop.f32.mrb[0].mxu0
  %v579 = vadd.f32 0.0, %v578
  %v580 = vpop.f32.mrb[0].mxu0
  %v581 = vadd.f32 0.0, %v580
  %582 = vmatprep.mubr.f32.mxu0 0.0
  %583 = vmatmul.mubr.f32.gmra.mrb[0].mxu0 %v48
  %v584 = vpop.f32.mrb[0].mxu0
  %v585 = vadd.f32 0.0, %v584
  %v586 = vpop.f32.mrb[0].mxu0
  %v587 = vadd.f32 0.0, %v586
  %588 = vmatprep.mubr.f32.mxu0 0.0
  %589 = vmatmul.mubr.f32.gmra.mrb[0].mxu0 %v49
  %v590 = vpop.f32.mrb[0].mxu0
  %v591 = vadd.f32 0.0, %v590
  %v592 = vpop.f32.mrb[0].mxu0
  %v593 = vadd.f32 0.0, %v592
  %594 = vmatprep.mubr.f32.mxu0 0.0
  %595 = vmatmul.mubr.f32.gmra.mrb[0].mxu0 %v50
  %v596 = vpop.f32.mrb[0].mxu0
  %v597 = vadd.f32 0.0, %v596
  %v598 = vpop.f32.mrb[0].mxu0
  %v599 = vadd.f32 0.0, %v598
  %600 = vmatprep.mubr.f32.mxu0 0.0
  %601 = vmatmul.mubr.f32.gmra.mrb[0].mxu0 %v51
  %v602 = vpop.f32.mrb[0].mxu0
  %v603 = vadd.f32 0.0, %v602
  %v604 = vpop.f32.mrb[0].mxu0
  %v605 = vadd.f32 0.0, %v604
  %606 = vmatprep.mubr.f32.mxu0 0.0
  %607 = vmatmul.mubr.f32.gmra.mrb[0].mxu0 %v52
  %v608 = vpop.f32.mrb[0].mxu0
  %v609 = vadd.f32 0.0, %v608
  %v610 = vpop.f32.mrb[0].mxu0
  %v611 = vadd.f32 0.0, %v610
  %612 = vmatprep.mubr.f32.mxu0 0.0
  %613 = vmatmul.mubr.f32.gmra.mrb[0].mxu0 %v53
  %v614 = vpop.f32.mrb[0].mxu0
  %v615 = vadd.f32 0.0, %v614
  %v616 = vpop.f32.mrb[0].mxu0
  %v617 = vadd.f32 0.0, %v616
  %618 = vmatprep.mubr.f32.mxu0 0.0
  %619 = vmatmul.mubr.f32.gmra.mrb[0].mxu0 %v54
  %v620 = vpop.f32.mrb[0].mxu0
  %v621 = vadd.f32 0.0, %v620
  %v622 = vpop.f32.mrb[0].mxu0
  %v623 = vadd.f32 0.0, %v622
  %624 = vmatprep.mubr.f32.mxu0 0.0
  %625 = vmatmul.mubr.f32.gmra.mrb[0].mxu0 %v55
  %v626 = vpop.f32.mrb[0].mxu0
  %v627 = vadd.f32 0.0, %v626
  %v628 = vpop.f32.mrb[0].mxu0
  %v629 = vadd.f32 0.0, %v628
  %630 = vmatprep.mubr.f32.mxu0 0.0
  %631 = vmatmul.mubr.f32.gmra.mrb[0].mxu0 %v56
  %v632 = vpop.f32.mrb[0].mxu0
  %v633 = vadd.f32 0.0, %v632
  %v634 = vpop.f32.mrb[0].mxu0
  %v635 = vadd.f32 0.0, %v634
  %636 = vdwg.mxu0
  %637 = vmatprep.subr.mxu0 0.0
  %638 = vmatpush1.msra.mxu0 %v430
  %639 = vmatprep.subr.mxu0 0.0
  %640 = vmatpush1.msra.mxu0 %v433
  %641 = vmatprep.subr.mxu0 0.0
  %642 = vmatpush1.msra.mxu0 %v436
  %643 = vmatprep.subr.mxu0 0.0
  %644 = vmatpush1.msra.mxu0 %v439
  %645 = vmatprep.subr.mxu0 0.0
  %646 = vmatpush1.msra.mxu0 %v442
  %647 = vmatprep.subr.mxu0 0.0
  %648 = vmatpush1.msra.mxu0 %v445
  %649 = vmatprep.subr.mxu0 0.0
  %650 = vmatpush1.msra.mxu0 %v448
  %651 = vmatprep.subr.mxu0 0.0
  %652 = vmatpush1.msra.mxu0 %v451
  %653 = vmatprep.subr.mxu0 0.0
  %654 = vmatpush1.msra.mxu0 %v454
  %655 = vmatprep.subr.mxu0 0.0
  %656 = vmatpush1.msra.mxu0 %v457
  %657 = vmatprep.subr.mxu0 0.0
  %658 = vmatpush1.msra.mxu0 %v460
  %659 = vmatprep.subr.mxu0 0.0
  %660 = vmatpush1.msra.mxu0 %v463
  %661 = vmatprep.subr.mxu0 0.0
  %662 = vmatpush1.msra.mxu0 %v466
  %663 = vmatprep.subr.mxu0 0.0
  %664 = vmatpush1.msra.mxu0 %v469
  %665 = vmatprep.subr.mxu0 0.0
  %666 = vmatpush1.msra.mxu0 %v472
  %667 = vmatprep.subr.mxu0 0.0
  %668 = vmatpush1.msra.mxu0 %v475
  %669 = vmatprep.subr.mxu0 0.0
  %670 = vmatpush1.msra.mxu0 0.0
  %671 = vmatprep.subr.mxu0 0.0
  %672 = vmatpush1.msra.mxu0 0.0
  %673 = vmatprep.subr.mxu0 0.0
  %674 = vmatpush1.msra.mxu0 0.0
  %675 = vmatprep.subr.mxu0 0.0
  %676 = vmatpush1.msra.mxu0 0.0
  %677 = vmatprep.subr.mxu0 0.0
  %678 = vmatpush1.msra.mxu0 0.0
  %679 = vmatprep.subr.mxu0 0.0
  %680 = vmatpush1.msra.mxu0 0.0
  %681 = vmatprep.subr.mxu0 0.0
  %682 = vmatpush1.msra.mxu0 0.0
  %683 = vmatprep.subr.mxu0 0.0
  %684 = vmatpush1.msra.mxu0 0.0
  %685 = vmatprep.subr.mxu0 0.0
  %686 = vmatpush1.msra.mxu0 0.0
  %687 = vmatprep.subr.mxu0 0.0
  %688 = vmatpush1.msra.mxu0 0.0
  %689 = vmatprep.subr.mxu0 0.0
  %690 = vmatpush1.msra.mxu0 0.0
  %691 = vmatprep.subr.mxu0 0.0
  %692 = vmatpush1.msra.mxu0 0.0
  %693 = vmatprep.subr.mxu0 0.0
  %694 = vmatpush1.msra.mxu0 0.0
  %695 = vmatprep.subr.mxu0 0.0
  %696 = vmatpush1.msra.mxu0 0.0
  %697 = vmatprep.subr.mxu0 0.0
  %698 = vmatpush1.msra.mxu0 0.0
  %699 = vmatprep.subr.mxu0 0.0
  %700 = vmatpush1.msra.mxu0 0.0
  %701 = vmatprep.mubr.f32.mxu0 0.0
  %702 = vmatmul.mubr.f32.gmra.mrb[0].mxu0 %v41
  %v703 = vpop.f32.mrb[0].mxu0
  %v704 = vadd.f32 0.0, %v703
  %v705 = vpop.f32.mrb[0].mxu0
  %706 = vmatprep.mubr.f32.mxu0 0.0
  %707 = vmatmul.mubr.f32.gmra.mrb[0].mxu0 %v42
  %v708 = vpop.f32.mrb[0].mxu0
  %v709 = vadd.f32 0.0, %v708
  %v710 = vpop.f32.mrb[0].mxu0
  %711 = vmatprep.mubr.f32.mxu0 0.0
  %712 = vmatmul.mubr.f32.gmra.mrb[0].mxu0 %v43
  %v713 = vpop.f32.mrb[0].mxu0
  %v714 = vadd.f32 0.0, %v713
  %v715 = vpop.f32.mrb[0].mxu0
  %716 = vmatprep.mubr.f32.mxu0 0.0
  %717 = vmatmul.mubr.f32.gmra.mrb[0].mxu0 %v44
  %v718 = vpop.f32.mrb[0].mxu0
  %v719 = vadd.f32 0.0, %v718
  %v720 = vpop.f32.mrb[0].mxu0
  %721 = vmatprep.mubr.f32.mxu0 0.0
  %722 = vmatmul.mubr.f32.gmra.mrb[0].mxu0 %v45
  %v723 = vpop.f32.mrb[0].mxu0
  %v724 = vadd.f32 0.0, %v723
  %v725 = vpop.f32.mrb[0].mxu0
  %726 = vmatprep.mubr.f32.mxu0 0.0
  %727 = vmatmul.mubr.f32.gmra.mrb[0].mxu0 %v46
  %v728 = vpop.f32.mrb[0].mxu0
  %v729 = vadd.f32 0.0, %v728
  %v730 = vpop.f32.mrb[0].mxu0
  %731 = vmatprep.mubr.f32.mxu0 0.0
  %732 = vmatmul.mubr.f32.gmra.mrb[0].mxu0 %v47
  %v733 = vpop.f32.mrb[0].mxu0
  %v734 = vadd.f32 0.0, %v733
  %v735 = vpop.f32.mrb[0].mxu0
  %736 = vmatprep.mubr.f32.mxu0 0.0
  %737 = vmatmul.mubr.f32.gmra.mrb[0].mxu0 %v48
  %v738 = vpop.f32.mrb[0].mxu0
  %v739 = vadd.f32 0.0, %v738
  %v740 = vpop.f32.mrb[0].mxu0
  %741 = vmatprep.mubr.f32.mxu0 0.0
  %742 = vmatmul.mubr.f32.gmra.mrb[0].mxu0 %v49
  %v743 = vpop.f32.mrb[0].mxu0
  %v744 = vadd.f32 0.0, %v743
  %v745 = vpop.f32.mrb[0].mxu0
  %746 = vmatprep.mubr.f32.mxu0 0.0
  %747 = vmatmul.mubr.f32.gmra.mrb[0].mxu0 %v50
  %v748 = vpop.f32.mrb[0].mxu0
  %v749 = vadd.f32 0.0, %v748
  %v750 = vpop.f32.mrb[0].mxu0
  %751 = vmatprep.mubr.f32.mxu0 0.0
  %752 = vmatmul.mubr.f32.gmra.mrb[0].mxu0 %v51
  %v753 = vpop.f32.mrb[0].mxu0
  %v754 = vadd.f32 0.0, %v753
  %v755 = vpop.f32.mrb[0].mxu0
  %756 = vmatprep.mubr.f32.mxu0 0.0
  %757 = vmatmul.mubr.f32.gmra.mrb[0].mxu0 %v52
  %v758 = vpop.f32.mrb[0].mxu0
  %v759 = vadd.f32 0.0, %v758
  %v760 = vpop.f32.mrb[0].mxu0
  %761 = vmatprep.mubr.f32.mxu0 0.0
  %762 = vmatmul.mubr.f32.gmra.mrb[0].mxu0 %v53
  %v763 = vpop.f32.mrb[0].mxu0
  %v764 = vadd.f32 0.0, %v763
  %v765 = vpop.f32.mrb[0].mxu0
  %766 = vmatprep.mubr.f32.mxu0 0.0
  %767 = vmatmul.mubr.f32.gmra.mrb[0].mxu0 %v54
  %v768 = vpop.f32.mrb[0].mxu0
  %v769 = vadd.f32 0.0, %v768
  %v770 = vpop.f32.mrb[0].mxu0
  %771 = vmatprep.mubr.f32.mxu0 0.0
  %772 = vmatmul.mubr.f32.gmra.mrb[0].mxu0 %v55
  %v773 = vpop.f32.mrb[0].mxu0
  %v774 = vadd.f32 0.0, %v773
  %v775 = vpop.f32.mrb[0].mxu0
  %776 = vmatprep.mubr.f32.mxu0 0.0
  %777 = vmatmul.mubr.f32.gmra.mrb[0].mxu0 %v56
  %v778 = vpop.f32.mrb[0].mxu0
  %v779 = vadd.f32 0.0, %v778
  %v780 = vpop.f32.mrb[0].mxu0
  %781 = vdwg.mxu0
  %v782 = vadd.f32 %v189, %v543
  %v783 = vadd.f32 %v195, %v549
  %v784 = vadd.f32 %v201, %v555
  %v785 = vadd.f32 %v207, %v561
  %v786 = vadd.f32 %v213, %v567
  %v787 = vadd.f32 %v219, %v573
  %v788 = vadd.f32 %v225, %v579
  %v789 = vadd.f32 %v231, %v585
  %v790 = vadd.f32 %v237, %v591
  %v791 = vadd.f32 %v243, %v597
  %v792 = vadd.f32 %v249, %v603
  %v793 = vadd.f32 %v255, %v609
  %v794 = vadd.f32 %v261, %v615
  %v795 = vadd.f32 %v267, %v621
  %v796 = vadd.f32 %v273, %v627
  %v797 = vadd.f32 %v279, %v633
  %v798 = vxor.u32 %v782, 2147483648
  %v799 = vxor.u32 %v783, 2147483648
  %v800 = vxor.u32 %v784, 2147483648
  %v801 = vxor.u32 %v785, 2147483648
  %v802 = vxor.u32 %v786, 2147483648
  %v803 = vxor.u32 %v787, 2147483648
  %v804 = vxor.u32 %v788, 2147483648
  %v805 = vxor.u32 %v789, 2147483648
  %v806 = vxor.u32 %v790, 2147483648
  %v807 = vxor.u32 %v791, 2147483648
  %v808 = vxor.u32 %v792, 2147483648
  %v809 = vxor.u32 %v793, 2147483648
  %v810 = vxor.u32 %v794, 2147483648
  %v811 = vxor.u32 %v795, 2147483648
  %v812 = vxor.u32 %v796, 2147483648
  %v813 = vxor.u32 %v797, 2147483648
  %v814 = vmul.f32 %v798, 1.442695
  %v815 = vpow.pop %v814
  %v816 = vmul.f32 %v799, 1.442695
  %v817 = vpow.pop %v816
  %v818 = vmul.f32 %v800, 1.442695
  %v819 = vpow.pop %v818
  %v820 = vmul.f32 %v801, 1.442695
  %v821 = vpow.pop %v820
  %v822 = vmul.f32 %v802, 1.442695
  %v823 = vpow.pop %v822
  %v824 = vmul.f32 %v803, 1.442695
  %v825 = vpow.pop %v824
  %v826 = vmul.f32 %v804, 1.442695
  %v827 = vpow.pop %v826
  %v828 = vmul.f32 %v805, 1.442695
  %v829 = vpow.pop %v828
  %v830 = vmul.f32 %v806, 1.442695
  %v831 = vpow.pop %v830
  %v832 = vmul.f32 %v807, 1.442695
  %v833 = vpow.pop %v832
  %v834 = vmul.f32 %v808, 1.442695
  %v835 = vpow.pop %v834
  %v836 = vmul.f32 %v809, 1.442695
  %v837 = vpow.pop %v836
  %v838 = vmul.f32 %v810, 1.442695
  %v839 = vpow.pop %v838
  %v840 = vmul.f32 %v811, 1.442695
  %v841 = vpow.pop %v840
  %v842 = vmul.f32 %v812, 1.442695
  %v843 = vpow.pop %v842
  %v844 = vmul.f32 %v813, 1.442695
  %v845 = vpow.pop %v844
  %v846 = vadd.f32 %v815, 1.0
  %v847 = vadd.f32 %v817, 1.0
  %v848 = vadd.f32 %v819, 1.0
  %v849 = vadd.f32 %v821, 1.0
  %v850 = vadd.f32 %v823, 1.0
  %v851 = vadd.f32 %v825, 1.0
  %v852 = vadd.f32 %v827, 1.0
  %v853 = vadd.f32 %v829, 1.0
  %v854 = vadd.f32 %v831, 1.0
  %v855 = vadd.f32 %v833, 1.0
  %v856 = vadd.f32 %v835, 1.0
  %v857 = vadd.f32 %v837, 1.0
  %v858 = vadd.f32 %v839, 1.0
  %v859 = vadd.f32 %v841, 1.0
  %v860 = vadd.f32 %v843, 1.0
  %v861 = vadd.f32 %v845, 1.0
  %v862 = vrcp.pop %v846
  %v863 = vmul.f32 1.0, %v862
  %v864 = vrcp.pop %v847
  %v865 = vmul.f32 1.0, %v864
  %v866 = vrcp.pop %v848
  %v867 = vmul.f32 1.0, %v866
  %v868 = vrcp.pop %v849
  %v869 = vmul.f32 1.0, %v868
  %v870 = vrcp.pop %v850
  %v871 = vmul.f32 1.0, %v870
  %v872 = vrcp.pop %v851
  %v873 = vmul.f32 1.0, %v872
  %v874 = vrcp.pop %v852
  %v875 = vmul.f32 1.0, %v874
  %v876 = vrcp.pop %v853
  %v877 = vmul.f32 1.0, %v876
  %v878 = vrcp.pop %v854
  %v879 = vmul.f32 1.0, %v878
  %v880 = vrcp.pop %v855
  %v881 = vmul.f32 1.0, %v880
  %v882 = vrcp.pop %v856
  %v883 = vmul.f32 1.0, %v882
  %v884 = vrcp.pop %v857
  %v885 = vmul.f32 1.0, %v884
  %v886 = vrcp.pop %v858
  %v887 = vmul.f32 1.0, %v886
  %v888 = vrcp.pop %v859
  %v889 = vmul.f32 1.0, %v888
  %v890 = vrcp.pop %v860
  %v891 = vmul.f32 1.0, %v890
  %v892 = vrcp.pop %v861
  %v893 = vmul.f32 1.0, %v892
  %v894 = vadd.f32 %v191, %v545
  %v895 = vadd.f32 %v197, %v551
  %v896 = vadd.f32 %v203, %v557
  %v897 = vadd.f32 %v209, %v563
  %v898 = vadd.f32 %v215, %v569
  %v899 = vadd.f32 %v221, %v575
  %v900 = vadd.f32 %v227, %v581
  %v901 = vadd.f32 %v233, %v587
  %v902 = vadd.f32 %v239, %v593
  %v903 = vadd.f32 %v245, %v599
  %v904 = vadd.f32 %v251, %v605
  %v905 = vadd.f32 %v257, %v611
  %v906 = vadd.f32 %v263, %v617
  %v907 = vadd.f32 %v269, %v623
  %v908 = vadd.f32 %v275, %v629
  %v909 = vadd.f32 %v281, %v635
  %v910 = vxor.u32 %v894, 2147483648
  %v911 = vxor.u32 %v895, 2147483648
  %v912 = vxor.u32 %v896, 2147483648
  %v913 = vxor.u32 %v897, 2147483648
  %v914 = vxor.u32 %v898, 2147483648
  %v915 = vxor.u32 %v899, 2147483648
  %v916 = vxor.u32 %v900, 2147483648
  %v917 = vxor.u32 %v901, 2147483648
  %v918 = vxor.u32 %v902, 2147483648
  %v919 = vxor.u32 %v903, 2147483648
  %v920 = vxor.u32 %v904, 2147483648
  %v921 = vxor.u32 %v905, 2147483648
  %v922 = vxor.u32 %v906, 2147483648
  %v923 = vxor.u32 %v907, 2147483648
  %v924 = vxor.u32 %v908, 2147483648
  %v925 = vxor.u32 %v909, 2147483648
  %v926 = vmul.f32 %v910, 1.442695
  %v927 = vpow.pop %v926
  %v928 = vmul.f32 %v911, 1.442695
  %v929 = vpow.pop %v928
  %v930 = vmul.f32 %v912, 1.442695
  %v931 = vpow.pop %v930
  %v932 = vmul.f32 %v913, 1.442695
  %v933 = vpow.pop %v932
  %v934 = vmul.f32 %v914, 1.442695
  %v935 = vpow.pop %v934
  %v936 = vmul.f32 %v915, 1.442695
  %v937 = vpow.pop %v936
  %v938 = vmul.f32 %v916, 1.442695
  %v939 = vpow.pop %v938
  %v940 = vmul.f32 %v917, 1.442695
  %v941 = vpow.pop %v940
  %v942 = vmul.f32 %v918, 1.442695
  %v943 = vpow.pop %v942
  %v944 = vmul.f32 %v919, 1.442695
  %v945 = vpow.pop %v944
  %v946 = vmul.f32 %v920, 1.442695
  %v947 = vpow.pop %v946
  %v948 = vmul.f32 %v921, 1.442695
  %v949 = vpow.pop %v948
  %v950 = vmul.f32 %v922, 1.442695
  %v951 = vpow.pop %v950
  %v952 = vmul.f32 %v923, 1.442695
  %v953 = vpow.pop %v952
  %v954 = vmul.f32 %v924, 1.442695
  %v955 = vpow.pop %v954
  %v956 = vmul.f32 %v925, 1.442695
  %v957 = vpow.pop %v956
  %v958 = vadd.f32 %v927, 1.0
  %v959 = vadd.f32 %v929, 1.0
  %v960 = vadd.f32 %v931, 1.0
  %v961 = vadd.f32 %v933, 1.0
  %v962 = vadd.f32 %v935, 1.0
  %v963 = vadd.f32 %v937, 1.0
  %v964 = vadd.f32 %v939, 1.0
  %v965 = vadd.f32 %v941, 1.0
  %v966 = vadd.f32 %v943, 1.0
  %v967 = vadd.f32 %v945, 1.0
  %v968 = vadd.f32 %v947, 1.0
  %v969 = vadd.f32 %v949, 1.0
  %v970 = vadd.f32 %v951, 1.0
  %v971 = vadd.f32 %v953, 1.0
  %v972 = vadd.f32 %v955, 1.0
  %v973 = vadd.f32 %v957, 1.0
  %v974 = vrcp.pop %v958
  %v975 = vmul.f32 1.0, %v974
  %v976 = vrcp.pop %v959
  %v977 = vmul.f32 1.0, %v976
  %v978 = vrcp.pop %v960
  %v979 = vmul.f32 1.0, %v978
  %v980 = vrcp.pop %v961
  %v981 = vmul.f32 1.0, %v980
  %v982 = vrcp.pop %v962
  %v983 = vmul.f32 1.0, %v982
  %v984 = vrcp.pop %v963
  %v985 = vmul.f32 1.0, %v984
  %v986 = vrcp.pop %v964
  %v987 = vmul.f32 1.0, %v986
  %v988 = vrcp.pop %v965
  %v989 = vmul.f32 1.0, %v988
  %v990 = vrcp.pop %v966
  %v991 = vmul.f32 1.0, %v990
  %v992 = vrcp.pop %v967
  %v993 = vmul.f32 1.0, %v992
  %v994 = vrcp.pop %v968
  %v995 = vmul.f32 1.0, %v994
  %v996 = vrcp.pop %v969
  %v997 = vmul.f32 1.0, %v996
  %v998 = vrcp.pop %v970
  %v999 = vmul.f32 1.0, %v998
  %v1000 = vrcp.pop %v971
  %v1001 = vmul.f32 1.0, %v1000
  %v1002 = vrcp.pop %v972
  %v1003 = vmul.f32 1.0, %v1002
  %v1004 = vrcp.pop %v973
  %v1005 = vmul.f32 1.0, %v1004
  %v1006 = vld [vmem:[%s5] sm:$0x1]
  %v1008 = vlaneseq
  %v1009 = vshrl.u32 %v1008, 7
  %v1010 = vsub.s32 0, %v1009
  %v1011 = vrot.slane %v1006, %v1010
  %v1013 = vadd.f32 %v704, %v1011
  %v1014 = vadd.f32 %v709, %v1011
  %v1015 = vadd.f32 %v714, %v1011
  %v1016 = vadd.f32 %v719, %v1011
  %v1017 = vadd.f32 %v724, %v1011
  %v1018 = vadd.f32 %v729, %v1011
  %v1019 = vadd.f32 %v734, %v1011
  %v1020 = vadd.f32 %v739, %v1011
  %v1021 = vadd.f32 %v744, %v1011
  %v1022 = vadd.f32 %v749, %v1011
  %v1023 = vadd.f32 %v754, %v1011
  %v1024 = vadd.f32 %v759, %v1011
  %v1025 = vadd.f32 %v764, %v1011
  %v1026 = vadd.f32 %v769, %v1011
  %v1027 = vadd.f32 %v774, %v1011
  %v1028 = vadd.f32 %v779, %v1011
  %v1029 = vmul.f32 %v863, %v1013
  %v1030 = vmul.f32 %v865, %v1014
  %v1031 = vmul.f32 %v867, %v1015
  %v1032 = vmul.f32 %v869, %v1016
  %v1033 = vmul.f32 %v871, %v1017
  %v1034 = vmul.f32 %v873, %v1018
  %v1035 = vmul.f32 %v875, %v1019
  %v1036 = vmul.f32 %v877, %v1020
  %v1037 = vmul.f32 %v879, %v1021
  %v1038 = vmul.f32 %v881, %v1022
  %v1039 = vmul.f32 %v883, %v1023
  %v1040 = vmul.f32 %v885, %v1024
  %v1041 = vmul.f32 %v887, %v1025
  %v1042 = vmul.f32 %v889, %v1026
  %v1043 = vmul.f32 %v891, %v1027
  %v1044 = vmul.f32 %v893, %v1028
  %v1045 = vadd.f32 %v350, %v1029
  %v1046 = vadd.f32 %v355, %v1030
  %v1047 = vadd.f32 %v360, %v1031
  %v1048 = vadd.f32 %v365, %v1032
  %v1049 = vadd.f32 %v370, %v1033
  %v1050 = vadd.f32 %v375, %v1034
  %v1051 = vadd.f32 %v380, %v1035
  %v1052 = vadd.f32 %v385, %v1036
  %v1053 = vadd.f32 %v390, %v1037
  %v1054 = vadd.f32 %v395, %v1038
  %v1055 = vadd.f32 %v400, %v1039
  %v1056 = vadd.f32 %v405, %v1040
  %v1057 = vadd.f32 %v410, %v1041
  %v1058 = vadd.f32 %v415, %v1042
  %v1059 = vadd.f32 %v420, %v1043
  %v1060 = vadd.f32 %v425, %v1044
  %v1061 = vtanh.pop %v1045
  %v1062 = vtanh.pop %v1046
  %v1063 = vtanh.pop %v1047
  %v1064 = vtanh.pop %v1048
  %v1065 = vtanh.pop %v1049
  %v1066 = vtanh.pop %v1050
  %v1067 = vtanh.pop %v1051
  %v1068 = vtanh.pop %v1052
  %v1069 = vtanh.pop %v1053
  %v1070 = vtanh.pop %v1054
  %v1071 = vtanh.pop %v1055
  %v1072 = vtanh.pop %v1056
  %v1073 = vtanh.pop %v1057
  %v1074 = vtanh.pop %v1058
  %v1075 = vtanh.pop %v1059
  %v1076 = vtanh.pop %v1060
  %v1077 = vsub.f32 1.0, %v975
  %v1078 = vsub.f32 1.0, %v977
  %v1079 = vsub.f32 1.0, %v979
  %v1080 = vsub.f32 1.0, %v981
  %v1081 = vsub.f32 1.0, %v983
  %v1082 = vsub.f32 1.0, %v985
  %v1083 = vsub.f32 1.0, %v987
  %v1084 = vsub.f32 1.0, %v989
  %v1085 = vsub.f32 1.0, %v991
  %v1086 = vsub.f32 1.0, %v993
  %v1087 = vsub.f32 1.0, %v995
  %v1088 = vsub.f32 1.0, %v997
  %v1089 = vsub.f32 1.0, %v999
  %v1090 = vsub.f32 1.0, %v1001
  %v1091 = vsub.f32 1.0, %v1003
  %v1092 = vsub.f32 1.0, %v1005
  %v1093 = vmul.f32 %v1077, %v1061
  %v1094 = vmul.f32 %v1078, %v1062
  %v1095 = vmul.f32 %v1079, %v1063
  %v1096 = vmul.f32 %v1080, %v1064
  %v1097 = vmul.f32 %v1081, %v1065
  %v1098 = vmul.f32 %v1082, %v1066
  %v1099 = vmul.f32 %v1083, %v1067
  %v1100 = vmul.f32 %v1084, %v1068
  %v1101 = vmul.f32 %v1085, %v1069
  %v1102 = vmul.f32 %v1086, %v1070
  %v1103 = vmul.f32 %v1087, %v1071
  %v1104 = vmul.f32 %v1088, %v1072
  %v1105 = vmul.f32 %v1089, %v1073
  %v1106 = vmul.f32 %v1090, %v1074
  %v1107 = vmul.f32 %v1091, %v1075
  %v1108 = vmul.f32 %v1092, %v1076
  %v1109 = vmul.f32 %v975, %v41
  %v1110 = vmul.f32 %v977, %v42
  %v1111 = vmul.f32 %v979, %v43
  %v1112 = vmul.f32 %v981, %v44
  %v1113 = vmul.f32 %v983, %v45
  %v1114 = vmul.f32 %v985, %v46
  %v1115 = vmul.f32 %v987, %v47
  %v1116 = vmul.f32 %v989, %v48
  %v1117 = vmul.f32 %v991, %v49
  %v1118 = vmul.f32 %v993, %v50
  %v1119 = vmul.f32 %v995, %v51
  %v1120 = vmul.f32 %v997, %v52
  %v1121 = vmul.f32 %v999, %v53
  %v1122 = vmul.f32 %v1001, %v54
  %v1123 = vmul.f32 %v1003, %v55
  %v1124 = vmul.f32 %v1005, %v56
  %v1125 = vadd.f32 %v1093, %v1109
  %v1126 = vadd.f32 %v1094, %v1110
  %v1127 = vadd.f32 %v1095, %v1111
  %v1128 = vadd.f32 %v1096, %v1112
  %v1129 = vadd.f32 %v1097, %v1113
  %v1130 = vadd.f32 %v1098, %v1114
  %v1131 = vadd.f32 %v1099, %v1115
  %v1132 = vadd.f32 %v1100, %v1116
  %v1133 = vadd.f32 %v1101, %v1117
  %v1134 = vadd.f32 %v1102, %v1118
  %v1135 = vadd.f32 %v1103, %v1119
  %v1136 = vadd.f32 %v1104, %v1120
  %v1137 = vadd.f32 %v1105, %v1121
  %v1138 = vadd.f32 %v1106, %v1122
  %v1139 = vadd.f32 %v1107, %v1123
  %v1140 = vadd.f32 %v1108, %v1124
  %1141 = vst [vmem:[%s6] sm:$0xff] %v1125
  %1142 = vst [vmem:[%s6 + $0x8] sm:$0xff] %v1126
  %1143 = vst [vmem:[%s6 + $0x10] sm:$0xff] %v1127
  %1144 = vst [vmem:[%s6 + $0x18] sm:$0xff] %v1128
  %1145 = vst [vmem:[%s6 + $0x20] sm:$0xff] %v1129
  %1146 = vst [vmem:[%s6 + $0x28] sm:$0xff] %v1130
  %1147 = vst [vmem:[%s6 + $0x30] sm:$0xff] %v1131
  %1148 = vst [vmem:[%s6 + $0x38] sm:$0xff] %v1132
  %1149 = vst [vmem:[%s6 + $0x40] sm:$0xff] %v1133
  %1150 = vst [vmem:[%s6 + $0x48] sm:$0xff] %v1134
  %1151 = vst [vmem:[%s6 + $0x50] sm:$0xff] %v1135
  %1152 = vst [vmem:[%s6 + $0x58] sm:$0xff] %v1136
  %1153 = vst [vmem:[%s6 + $0x60] sm:$0xff] %v1137
  %1154 = vst [vmem:[%s6 + $0x68] sm:$0xff] %v1138
  %1155 = vst [vmem:[%s6 + $0x70] sm:$0xff] %v1139
  %1156 = vst [vmem:[%s6 + $0x78] sm:$0xff] %v1140
  %v1157 = vpack.c.bf16 %v1126, %v1125
  %v1158 = vpack.c.bf16 %v1128, %v1127
  %v1159 = vpack.c.bf16 %v1130, %v1129
  %v1160 = vpack.c.bf16 %v1132, %v1131
  %v1161 = vpack.c.bf16 %v1134, %v1133
  %v1162 = vpack.c.bf16 %v1136, %v1135
  %v1163 = vpack.c.bf16 %v1138, %v1137
  %v1164 = vpack.c.bf16 %v1140, %v1139
  %v1173 = vunpack.c.l.b16 %v1157
  %v1174 = vunpack.c.h.b16 %v1157
  %v1175 = vunpack.c.l.b16 %v1158
  %v1176 = vunpack.c.h.b16 %v1158
  %v1177 = vunpack.c.l.b16 %v1159
  %v1178 = vunpack.c.h.b16 %v1159
  %v1179 = vunpack.c.l.b16 %v1160
  %v1180 = vunpack.c.h.b16 %v1160
  %v1181 = vunpack.c.l.b16 %v1161
  %v1182 = vunpack.c.h.b16 %v1161
  %v1183 = vunpack.c.l.b16 %v1162
  %v1184 = vunpack.c.h.b16 %v1162
  %v1185 = vunpack.c.l.b16 %v1163
  %v1186 = vunpack.c.h.b16 %v1163
  %v1187 = vunpack.c.l.b16 %v1164
  %v1188 = vunpack.c.h.b16 %v1164
  %v1189 = vpack.c.b16 %v1173, %v1173
  %v1190 = vpack.c.b16 %v1174, %v1174
  %v1191 = vpack.c.b16 %v1175, %v1175
  %v1192 = vpack.c.b16 %v1176, %v1176
  %v1193 = vpack.c.b16 %v1177, %v1177
  %v1194 = vpack.c.b16 %v1178, %v1178
  %v1195 = vpack.c.b16 %v1179, %v1179
  %v1196 = vpack.c.b16 %v1180, %v1180
  %v1197 = vpack.c.b16 %v1181, %v1181
  %v1198 = vpack.c.b16 %v1182, %v1182
  %v1199 = vpack.c.b16 %v1183, %v1183
  %v1200 = vpack.c.b16 %v1184, %v1184
  %v1201 = vpack.c.b16 %v1185, %v1185
  %v1202 = vpack.c.b16 %v1186, %v1186
  %v1203 = vpack.c.b16 %v1187, %v1187
  %v1204 = vpack.c.b16 %v1188, %v1188
  %1221 = vst [vmem:[%s7] sm:$0xf] %v1189
  %1222 = vst [vmem:[%s7 + $0x4] sm:$0xf] %v1190
  %1223 = vst [vmem:[%s7 + $0x8] sm:$0xf] %v1191
  %1224 = vst [vmem:[%s7 + $0xc] sm:$0xf] %v1192
  %1225 = vst [vmem:[%s7 + $0x10] sm:$0xf] %v1193
  %1226 = vst [vmem:[%s7 + $0x14] sm:$0xf] %v1194
  %1227 = vst [vmem:[%s7 + $0x18] sm:$0xf] %v1195
  %1228 = vst [vmem:[%s7 + $0x1c] sm:$0xf] %v1196
  %1229 = vst [vmem:[%s7 + $0x20] sm:$0xf] %v1197
  %1230 = vst [vmem:[%s7 + $0x24] sm:$0xf] %v1198
  %1231 = vst [vmem:[%s7 + $0x28] sm:$0xf] %v1199
  %1232 = vst [vmem:[%s7 + $0x2c] sm:$0xf] %v1200
  %1233 = vst [vmem:[%s7 + $0x30] sm:$0xf] %v1201
  %1234 = vst [vmem:[%s7 + $0x34] sm:$0xf] %v1202
  %1235 = vst [vmem:[%s7 + $0x38] sm:$0xf] %v1203
  %1236 = vst [vmem:[%s7 + $0x3c] sm:$0xf] %v1204
  // Predicated region
  $region26: #{closed_call.13} parent=0 // pred_check
    _
  $region27: #{closed_call.13} parent=0 // pred_check_branch
    %1238 = sbr.rel (0) target = $region29
  $region28: #{closed_call.13} parent=0 // pred_region
    _
  $region29: #{closed_call.13} parent=0 // pred_fallthru
    _
  // Predicated region
  $region30: #{closed_call.13} parent=0 // pred_check
    _
  $region31: #{closed_call.13} parent=0 // pred_check_branch
    %1240 = sbr.rel (0) target = $region33
  $region32: #{closed_call.13} parent=0 // pred_region
    _
  $region33: #{closed_call.13} parent=0 // pred_fallthru
    _
  // Predicated region
  $region34: #{closed_call.13} parent=0 // pred_check
    _
  $region35: #{closed_call.13} parent=0 // pred_check_branch
    %1242 = sbr.rel (0) target = $region37
  $region36: #{closed_call.13} parent=0 // pred_region
    _
  $region37: #{closed_call.13} parent=0 // pred_fallthru
    _
  // Predicated region
  $region38: #{closed_call.13} parent=0 // pred_check
    _
  $region39: #{closed_call.13} parent=0 // pred_check_branch
    %1244 = sbr.rel (0) target = $region41
  $region40: #{closed_call.13} parent=0 // pred_region
    _
  $region41: #{closed_call.13} parent=0 // pred_fallthru
    _

// kernel: closed_call.14
$region0: #{closed_call.14}
  #allocation0 [shape = 'u32[]', space=smem, size = 0x4, offset = 0x4, fixed_abs, tag = 'smem constant byte address 0x4 - core index']
  #allocation1 [shape = 'u32[144,128]{1,0:T(1,128)}', space=vmem, size = 0x12000, scoped, tag = 'internal scratch']
  %s0 = inlined_call_operand.vmem [shape: bf16[256,128], index: 0, kind: input, shape index: {}]
  %s1 = inlined_call_operand.vmem [shape: bf16[128,128], index: 1, kind: input, shape index: {}]
  %s2 = inlined_call_operand.vmem [shape: f32[256,1], index: 2, kind: input, shape index: {}]
  %s3 = inlined_call_operand.vmem [shape: bf16[256,128], index: 3, kind: output, shape index: {}]
  %s4 = sld [smem:[#allocation0]]
  $region22: #{closed_call.14} parent=0
    _
  %s6 = ssub.s32 1, %s4
  %s7 = scalar_select 0, %s6, %s4
  // Predicated region
  $region2: #{closed_call.14} parent=0 // pred_check
    _
  $region3: #{closed_call.14} parent=0 // pred_check_branch
    %9 = sbr.rel (0) target = $region5
  $region4: #{closed_call.14} parent=0 // pred_region
    _
  $region5: #{closed_call.14} parent=0 // pred_fallthru
    _
  // Predicated region
  $region6: #{closed_call.14} parent=0 // pred_check
    _
  $region7: #{closed_call.14} parent=0 // pred_check_branch
    %11 = sbr.rel (0) target = $region9
  $region8: #{closed_call.14} parent=0 // pred_region
    _
  $region9: #{closed_call.14} parent=0 // pred_fallthru
    _
  // Predicated region
  $region10: #{closed_call.14} parent=0 // pred_check
    _
  $region11: #{closed_call.14} parent=0 // pred_check_branch
    %13 = sbr.rel (0) target = $region13
  $region12: #{closed_call.14} parent=0 // pred_region
    _
  $region13: #{closed_call.14} parent=0 // pred_fallthru
    _
  %v15 = vld [vmem:[%s0] sm:$0xf]
  %v16 = vld [vmem:[%s0 + $0x4] sm:$0xf]
  %v17 = vld [vmem:[%s0 + $0x8] sm:$0xf]
  %v18 = vld [vmem:[%s0 + $0xc] sm:$0xf]
  %v19 = vld [vmem:[%s0 + $0x10] sm:$0xf]
  %v20 = vld [vmem:[%s0 + $0x14] sm:$0xf]
  %v21 = vld [vmem:[%s0 + $0x18] sm:$0xf]
  %v22 = vld [vmem:[%s0 + $0x1c] sm:$0xf]
  %v23 = vld [vmem:[%s0 + $0x20] sm:$0xf]
  %v24 = vld [vmem:[%s0 + $0x24] sm:$0xf]
  %v25 = vld [vmem:[%s0 + $0x28] sm:$0xf]
  %v26 = vld [vmem:[%s0 + $0x2c] sm:$0xf]
  %v27 = vld [vmem:[%s0 + $0x30] sm:$0xf]
  %v28 = vld [vmem:[%s0 + $0x34] sm:$0xf]
  %v29 = vld [vmem:[%s0 + $0x38] sm:$0xf]
  %v30 = vld [vmem:[%s0 + $0x3c] sm:$0xf]
  %v31 = vld [vmem:[%s0 + $0x40] sm:$0xf]
  %v32 = vld [vmem:[%s0 + $0x44] sm:$0xf]
  %v33 = vld [vmem:[%s0 + $0x48] sm:$0xf]
  %v34 = vld [vmem:[%s0 + $0x4c] sm:$0xf]
  %v35 = vld [vmem:[%s0 + $0x50] sm:$0xf]
  %v36 = vld [vmem:[%s0 + $0x54] sm:$0xf]
  %v37 = vld [vmem:[%s0 + $0x58] sm:$0xf]
  %v38 = vld [vmem:[%s0 + $0x5c] sm:$0xf]
  %v39 = vld [vmem:[%s0 + $0x60] sm:$0xf]
  %v40 = vld [vmem:[%s0 + $0x64] sm:$0xf]
  %v41 = vld [vmem:[%s0 + $0x68] sm:$0xf]
  %v42 = vld [vmem:[%s0 + $0x6c] sm:$0xf]
  %v43 = vld [vmem:[%s0 + $0x70] sm:$0xf]
  %v44 = vld [vmem:[%s0 + $0x74] sm:$0xf]
  %v45 = vld [vmem:[%s0 + $0x78] sm:$0xf]
  %v46 = vld [vmem:[%s0 + $0x7c] sm:$0xf]
  %v47 = vld [vmem:[%s1] sm:$0xf]
  %v48 = vld [vmem:[%s1 + $0x4] sm:$0xf]
  %v49 = vld [vmem:[%s1 + $0x8] sm:$0xf]
  %v50 = vld [vmem:[%s1 + $0xc] sm:$0xf]
  %v51 = vld [vmem:[%s1 + $0x10] sm:$0xf]
  %v52 = vld [vmem:[%s1 + $0x14] sm:$0xf]
  %v53 = vld [vmem:[%s1 + $0x18] sm:$0xf]
  %v54 = vld [vmem:[%s1 + $0x1c] sm:$0xf]
  %v55 = vld [vmem:[%s1 + $0x20] sm:$0xf]
  %v56 = vld [vmem:[%s1 + $0x24] sm:$0xf]
  %v57 = vld [vmem:[%s1 + $0x28] sm:$0xf]
  %v58 = vld [vmem:[%s1 + $0x2c] sm:$0xf]
  %v59 = vld [vmem:[%s1 + $0x30] sm:$0xf]
  %v60 = vld [vmem:[%s1 + $0x34] sm:$0xf]
  %v61 = vld [vmem:[%s1 + $0x38] sm:$0xf]
  %v62 = vld [vmem:[%s1 + $0x3c] sm:$0xf]
  %v95 = vunpack.c.l.b16 %v15
  %v96 = vunpack.c.l.b16 %v16
  %v97 = vunpack.c.l.b16 %v17
  %v98 = vunpack.c.l.b16 %v18
  %v99 = vunpack.c.l.b16 %v19
  %v100 = vunpack.c.l.b16 %v20
  %v101 = vunpack.c.l.b16 %v21
  %v102 = vunpack.c.l.b16 %v22
  %v103 = vunpack.c.l.b16 %v23
  %v104 = vunpack.c.l.b16 %v24
  %v105 = vunpack.c.l.b16 %v25
  %v106 = vunpack.c.l.b16 %v26
  %v107 = vunpack.c.l.b16 %v27
  %v108 = vunpack.c.l.b16 %v28
  %v109 = vunpack.c.l.b16 %v29
  %v110 = vunpack.c.l.b16 %v30
  %v111 = vunpack.c.l.b16 %v31
  %v112 = vunpack.c.l.b16 %v32
  %v113 = vunpack.c.l.b16 %v33
  %v114 = vunpack.c.l.b16 %v34
  %v115 = vunpack.c.l.b16 %v35
  %v116 = vunpack.c.l.b16 %v36
  %v117 = vunpack.c.l.b16 %v37
  %v118 = vunpack.c.l.b16 %v38
  %v119 = vunpack.c.l.b16 %v39
  %v120 = vunpack.c.l.b16 %v40
  %v121 = vunpack.c.l.b16 %v41
  %v122 = vunpack.c.l.b16 %v42
  %v123 = vunpack.c.l.b16 %v43
  %v124 = vunpack.c.l.b16 %v44
  %v125 = vunpack.c.l.b16 %v45
  %v126 = vunpack.c.l.b16 %v46
  %v127 = vpack.c.b16 %v96, %v95
  %v128 = vpack.c.b16 %v98, %v97
  %v129 = vpack.c.b16 %v100, %v99
  %v130 = vpack.c.b16 %v102, %v101
  %v131 = vpack.c.b16 %v104, %v103
  %v132 = vpack.c.b16 %v106, %v105
  %v133 = vpack.c.b16 %v108, %v107
  %v134 = vpack.c.b16 %v110, %v109
  %v135 = vpack.c.b16 %v112, %v111
  %v136 = vpack.c.b16 %v114, %v113
  %v137 = vpack.c.b16 %v116, %v115
  %v138 = vpack.c.b16 %v118, %v117
  %v139 = vpack.c.b16 %v120, %v119
  %v140 = vpack.c.b16 %v122, %v121
  %v141 = vpack.c.b16 %v124, %v123
  %v142 = vpack.c.b16 %v126, %v125
  %v175 = vunpack.c.l.b16 %v47
  %v176 = vunpack.c.l.b16 %v48
  %v177 = vunpack.c.l.b16 %v49
  %v178 = vunpack.c.l.b16 %v50
  %v179 = vunpack.c.l.b16 %v51
  %v180 = vunpack.c.l.b16 %v52
  %v181 = vunpack.c.l.b16 %v53
  %v182 = vunpack.c.l.b16 %v54
  %v183 = vunpack.c.l.b16 %v55
  %v184 = vunpack.c.l.b16 %v56
  %v185 = vunpack.c.l.b16 %v57
  %v186 = vunpack.c.l.b16 %v58
  %v187 = vunpack.c.l.b16 %v59
  %v188 = vunpack.c.l.b16 %v60
  %v189 = vunpack.c.l.b16 %v61
  %v190 = vunpack.c.l.b16 %v62
  %v191 = vpack.c.b16 %v176, %v175
  %v192 = vpack.c.b16 %v178, %v177
  %v193 = vpack.c.b16 %v180, %v179
  %v194 = vpack.c.b16 %v182, %v181
  %v195 = vpack.c.b16 %v184, %v183
  %v196 = vpack.c.b16 %v186, %v185
  %v197 = vpack.c.b16 %v188, %v187
  %v198 = vpack.c.b16 %v190, %v189
  %207 = vmatprep.subr.bf16.mxu0 0
  %208 = vmatpush1.bf16.msra.mxu0 %v191
  %209 = vmatprep.subr.bf16.mxu0 0
  %210 = vmatpush1.bf16.msra.mxu0 %v192
  %211 = vmatprep.subr.bf16.mxu0 0
  %212 = vmatpush1.bf16.msra.mxu0 %v193
  %213 = vmatprep.subr.bf16.mxu0 0
  %214 = vmatpush1.bf16.msra.mxu0 %v194
  %215 = vmatprep.subr.bf16.mxu0 0
  %216 = vmatpush1.bf16.msra.mxu0 %v195
  %217 = vmatprep.subr.bf16.mxu0 0
  %218 = vmatpush1.bf16.msra.mxu0 %v196
  %219 = vmatprep.subr.bf16.mxu0 0
  %220 = vmatpush1.bf16.msra.mxu0 %v197
  %221 = vmatprep.subr.bf16.mxu0 0
  %222 = vmatpush1.bf16.msra.mxu0 %v198
  %223 = vmatprep.subr.bf16.mxu0 0
  %224 = vmatpush1.bf16.msra.mxu0 0
  %225 = vmatprep.subr.bf16.mxu0 0
  %226 = vmatpush1.bf16.msra.mxu0 0
  %227 = vmatprep.subr.bf16.mxu0 0
  %228 = vmatpush1.bf16.msra.mxu0 0
  %229 = vmatprep.subr.bf16.mxu0 0
  %230 = vmatpush1.bf16.msra.mxu0 0
  %231 = vmatprep.subr.bf16.mxu0 0
  %232 = vmatpush1.bf16.msra.mxu0 0
  %233 = vmatprep.subr.bf16.mxu0 0
  %234 = vmatpush1.bf16.msra.mxu0 0
  %235 = vmatprep.subr.bf16.mxu0 0
  %236 = vmatpush1.bf16.msra.mxu0 0
  %237 = vmatprep.subr.bf16.mxu0 0
  %238 = vmatpush1.bf16.msra.mxu0 0
  %239 = vmatprep.mubr.bf16.mxu0 0
  %240 = vmatmul.mubr.bf16.gmra.mrb[0].mxu0 %v127
  %v241 = vpop.f32.mrb[0].mxu0
  %v242 = vadd.f32 0.0, %v241
  %v243 = vpop.f32.mrb[0].mxu0
  %v244 = vpop.f32.mrb[0].mxu0
  %v245 = vadd.f32 0.0, %v244
  %v246 = vpop.f32.mrb[0].mxu0
  %247 = vmatprep.mubr.bf16.mxu0 0
  %248 = vmatmul.mubr.bf16.gmra.mrb[0].mxu0 %v128
  %v249 = vpop.f32.mrb[0].mxu0
  %v250 = vadd.f32 0.0, %v249
  %v251 = vpop.f32.mrb[0].mxu0
  %v252 = vpop.f32.mrb[0].mxu0
  %v253 = vadd.f32 0.0, %v252
  %v254 = vpop.f32.mrb[0].mxu0
  %255 = vmatprep.mubr.bf16.mxu0 0
  %256 = vmatmul.mubr.bf16.gmra.mrb[0].mxu0 %v129
  %v257 = vpop.f32.mrb[0].mxu0
  %v258 = vadd.f32 0.0, %v257
  %v259 = vpop.f32.mrb[0].mxu0
  %v260 = vpop.f32.mrb[0].mxu0
  %v261 = vadd.f32 0.0, %v260
  %v262 = vpop.f32.mrb[0].mxu0
  %263 = vmatprep.mubr.bf16.mxu0 0
  %264 = vmatmul.mubr.bf16.gmra.mrb[0].mxu0 %v130
  %v265 = vpop.f32.mrb[0].mxu0
  %v266 = vadd.f32 0.0, %v265
  %v267 = vpop.f32.mrb[0].mxu0
  %v268 = vpop.f32.mrb[0].mxu0
  %v269 = vadd.f32 0.0, %v268
  %v270 = vpop.f32.mrb[0].mxu0
  %271 = vmatprep.mubr.bf16.mxu0 0
  %272 = vmatmul.mubr.bf16.gmra.mrb[0].mxu0 %v131
  %v273 = vpop.f32.mrb[0].mxu0
  %v274 = vadd.f32 0.0, %v273
  %v275 = vpop.f32.mrb[0].mxu0
  %v276 = vpop.f32.mrb[0].mxu0
  %v277 = vadd.f32 0.0, %v276
  %v278 = vpop.f32.mrb[0].mxu0
  %279 = vmatprep.mubr.bf16.mxu0 0
  %280 = vmatmul.mubr.bf16.gmra.mrb[0].mxu0 %v132
  %v281 = vpop.f32.mrb[0].mxu0
  %v282 = vadd.f32 0.0, %v281
  %v283 = vpop.f32.mrb[0].mxu0
  %v284 = vpop.f32.mrb[0].mxu0
  %v285 = vadd.f32 0.0, %v284
  %v286 = vpop.f32.mrb[0].mxu0
  %287 = vmatprep.mubr.bf16.mxu0 0
  %288 = vmatmul.mubr.bf16.gmra.mrb[0].mxu0 %v133
  %v289 = vpop.f32.mrb[0].mxu0
  %v290 = vadd.f32 0.0, %v289
  %v291 = vpop.f32.mrb[0].mxu0
  %v292 = vpop.f32.mrb[0].mxu0
  %v293 = vadd.f32 0.0, %v292
  %v294 = vpop.f32.mrb[0].mxu0
  %295 = vmatprep.mubr.bf16.mxu0 0
  %296 = vmatmul.mubr.bf16.gmra.mrb[0].mxu0 %v134
  %v297 = vpop.f32.mrb[0].mxu0
  %v298 = vadd.f32 0.0, %v297
  %v299 = vpop.f32.mrb[0].mxu0
  %v300 = vpop.f32.mrb[0].mxu0
  %v301 = vadd.f32 0.0, %v300
  %v302 = vpop.f32.mrb[0].mxu0
  %303 = vmatprep.mubr.bf16.mxu0 0
  %304 = vmatmul.mubr.bf16.gmra.mrb[0].mxu0 %v135
  %v305 = vpop.f32.mrb[0].mxu0
  %v306 = vadd.f32 0.0, %v305
  %v307 = vpop.f32.mrb[0].mxu0
  %v308 = vpop.f32.mrb[0].mxu0
  %v309 = vadd.f32 0.0, %v308
  %v310 = vpop.f32.mrb[0].mxu0
  %311 = vmatprep.mubr.bf16.mxu0 0
  %312 = vmatmul.mubr.bf16.gmra.mrb[0].mxu0 %v136
  %v313 = vpop.f32.mrb[0].mxu0
  %v314 = vadd.f32 0.0, %v313
  %v315 = vpop.f32.mrb[0].mxu0
  %v316 = vpop.f32.mrb[0].mxu0
  %v317 = vadd.f32 0.0, %v316
  %v318 = vpop.f32.mrb[0].mxu0
  %319 = vmatprep.mubr.bf16.mxu0 0
  %320 = vmatmul.mubr.bf16.gmra.mrb[0].mxu0 %v137
  %v321 = vpop.f32.mrb[0].mxu0
  %v322 = vadd.f32 0.0, %v321
  %v323 = vpop.f32.mrb[0].mxu0
  %v324 = vpop.f32.mrb[0].mxu0
  %v325 = vadd.f32 0.0, %v324
  %v326 = vpop.f32.mrb[0].mxu0
  %327 = vmatprep.mubr.bf16.mxu0 0
  %328 = vmatmul.mubr.bf16.gmra.mrb[0].mxu0 %v138
  %v329 = vpop.f32.mrb[0].mxu0
  %v330 = vadd.f32 0.0, %v329
  %v331 = vpop.f32.mrb[0].mxu0
  %v332 = vpop.f32.mrb[0].mxu0
  %v333 = vadd.f32 0.0, %v332
  %v334 = vpop.f32.mrb[0].mxu0
  %335 = vmatprep.mubr.bf16.mxu0 0
  %336 = vmatmul.mubr.bf16.gmra.mrb[0].mxu0 %v139
  %v337 = vpop.f32.mrb[0].mxu0
  %v338 = vadd.f32 0.0, %v337
  %v339 = vpop.f32.mrb[0].mxu0
  %v340 = vpop.f32.mrb[0].mxu0
  %v341 = vadd.f32 0.0, %v340
  %v342 = vpop.f32.mrb[0].mxu0
  %343 = vmatprep.mubr.bf16.mxu0 0
  %344 = vmatmul.mubr.bf16.gmra.mrb[0].mxu0 %v140
  %v345 = vpop.f32.mrb[0].mxu0
  %v346 = vadd.f32 0.0, %v345
  %v347 = vpop.f32.mrb[0].mxu0
  %v348 = vpop.f32.mrb[0].mxu0
  %v349 = vadd.f32 0.0, %v348
  %v350 = vpop.f32.mrb[0].mxu0
  %351 = vmatprep.mubr.bf16.mxu0 0
  %352 = vmatmul.mubr.bf16.gmra.mrb[0].mxu0 %v141
  %v353 = vpop.f32.mrb[0].mxu0
  %v354 = vadd.f32 0.0, %v353
  %v355 = vpop.f32.mrb[0].mxu0
  %v356 = vpop.f32.mrb[0].mxu0
  %v357 = vadd.f32 0.0, %v356
  %v358 = vpop.f32.mrb[0].mxu0
  %359 = vmatprep.mubr.bf16.mxu0 0
  %360 = vmatmul.mubr.bf16.gmra.mrb[0].mxu0 %v142
  %v361 = vpop.f32.mrb[0].mxu0
  %v362 = vadd.f32 0.0, %v361
  %v363 = vpop.f32.mrb[0].mxu0
  %v364 = vpop.f32.mrb[0].mxu0
  %v365 = vadd.f32 0.0, %v364
  %v366 = vpop.f32.mrb[0].mxu0
  %367 = vdwg.mxu0
  %v368 = vld [vmem:[%s2] sm:$0xff]
  %v369 = vld [vmem:[%s2 + $0x8] sm:$0xff]
  %v370 = vld [vmem:[%s2 + $0x10] sm:$0xff]
  %v371 = vld [vmem:[%s2 + $0x18] sm:$0xff]
  %v372 = vld [vmem:[%s2 + $0x20] sm:$0xff]
  %v373 = vld [vmem:[%s2 + $0x28] sm:$0xff]
  %v374 = vld [vmem:[%s2 + $0x30] sm:$0xff]
  %v375 = vld [vmem:[%s2 + $0x38] sm:$0xff]
  %v376 = vld [vmem:[%s2 + $0x40] sm:$0xff]
  %v377 = vld [vmem:[%s2 + $0x48] sm:$0xff]
  %v378 = vld [vmem:[%s2 + $0x50] sm:$0xff]
  %v379 = vld [vmem:[%s2 + $0x58] sm:$0xff]
  %v380 = vld [vmem:[%s2 + $0x60] sm:$0xff]
  %v381 = vld [vmem:[%s2 + $0x68] sm:$0xff]
  %v382 = vld [vmem:[%s2 + $0x70] sm:$0xff]
  %v383 = vld [vmem:[%s2 + $0x78] sm:$0xff]
  %v384 = vld [vmem:[%s2 + $0x80] sm:$0xff]
  %v385 = vld [vmem:[%s2 + $0x88] sm:$0xff]
  %v386 = vld [vmem:[%s2 + $0x90] sm:$0xff]
  %v387 = vld [vmem:[%s2 + $0x98] sm:$0xff]
  %v388 = vld [vmem:[%s2 + $0xa0] sm:$0xff]
  %v389 = vld [vmem:[%s2 + $0xa8] sm:$0xff]
  %v390 = vld [vmem:[%s2 + $0xb0] sm:$0xff]
  %v391 = vld [vmem:[%s2 + $0xb8] sm:$0xff]
  %v392 = vld [vmem:[%s2 + $0xc0] sm:$0xff]
  %v393 = vld [vmem:[%s2 + $0xc8] sm:$0xff]
  %v394 = vld [vmem:[%s2 + $0xd0] sm:$0xff]
  %v395 = vld [vmem:[%s2 + $0xd8] sm:$0xff]
  %v396 = vld [vmem:[%s2 + $0xe0] sm:$0xff]
  %v397 = vld [vmem:[%s2 + $0xe8] sm:$0xff]
  %v398 = vld [vmem:[%s2 + $0xf0] sm:$0xff]
  %v399 = vld [vmem:[%s2 + $0xf8] sm:$0xff]
  %401 = vset.pattern.permute.xlu0 0
  %402 = vperm.xlu0 %401, %v368
  %v403 = vpop.permute.xlu0 %402
  %406 = vset.pattern.permute.xlu0 0
  %407 = vperm.xlu0 %406, %v369
  %v408 = vpop.permute.xlu0 %407
  %411 = vset.pattern.permute.xlu0 0
  %412 = vperm.xlu0 %411, %v370
  %v413 = vpop.permute.xlu0 %412
  %416 = vset.pattern.permute.xlu0 0
  %417 = vperm.xlu0 %416, %v371
  %v418 = vpop.permute.xlu0 %417
  %421 = vset.pattern.permute.xlu0 0
  %422 = vperm.xlu0 %421, %v372
  %v423 = vpop.permute.xlu0 %422
  %426 = vset.pattern.permute.xlu0 0
  %427 = vperm.xlu0 %426, %v373
  %v428 = vpop.permute.xlu0 %427
  %431 = vset.pattern.permute.xlu0 0
  %432 = vperm.xlu0 %431, %v374
  %v433 = vpop.permute.xlu0 %432
  %436 = vset.pattern.permute.xlu0 0
  %437 = vperm.xlu0 %436, %v375
  %v438 = vpop.permute.xlu0 %437
  %441 = vset.pattern.permute.xlu0 0
  %442 = vperm.xlu0 %441, %v376
  %v443 = vpop.permute.xlu0 %442
  %446 = vset.pattern.permute.xlu0 0
  %447 = vperm.xlu0 %446, %v377
  %v448 = vpop.permute.xlu0 %447
  %451 = vset.pattern.permute.xlu0 0
  %452 = vperm.xlu0 %451, %v378
  %v453 = vpop.permute.xlu0 %452
  %456 = vset.pattern.permute.xlu0 0
  %457 = vperm.xlu0 %456, %v379
  %v458 = vpop.permute.xlu0 %457
  %461 = vset.pattern.permute.xlu0 0
  %462 = vperm.xlu0 %461, %v380
  %v463 = vpop.permute.xlu0 %462
  %466 = vset.pattern.permute.xlu0 0
  %467 = vperm.xlu0 %466, %v381
  %v468 = vpop.permute.xlu0 %467
  %471 = vset.pattern.permute.xlu0 0
  %472 = vperm.xlu0 %471, %v382
  %v473 = vpop.permute.xlu0 %472
  %476 = vset.pattern.permute.xlu0 0
  %477 = vperm.xlu0 %476, %v383
  %v478 = vpop.permute.xlu0 %477
  %481 = vset.pattern.permute.xlu0 0
  %482 = vperm.xlu0 %481, %v384
  %v483 = vpop.permute.xlu0 %482
  %486 = vset.pattern.permute.xlu0 0
  %487 = vperm.xlu0 %486, %v385
  %v488 = vpop.permute.xlu0 %487
  %491 = vset.pattern.permute.xlu0 0
  %492 = vperm.xlu0 %491, %v386
  %v493 = vpop.permute.xlu0 %492
  %496 = vset.pattern.permute.xlu0 0
  %497 = vperm.xlu0 %496, %v387
  %v498 = vpop.permute.xlu0 %497
  %501 = vset.pattern.permute.xlu0 0
  %502 = vperm.xlu0 %501, %v388
  %v503 = vpop.permute.xlu0 %502
  %506 = vset.pattern.permute.xlu0 0
  %507 = vperm.xlu0 %506, %v389
  %v508 = vpop.permute.xlu0 %507
  %511 = vset.pattern.permute.xlu0 0
  %512 = vperm.xlu0 %511, %v390
  %v513 = vpop.permute.xlu0 %512
  %516 = vset.pattern.permute.xlu0 0
  %517 = vperm.xlu0 %516, %v391
  %v518 = vpop.permute.xlu0 %517
  %521 = vset.pattern.permute.xlu0 0
  %522 = vperm.xlu0 %521, %v392
  %v523 = vpop.permute.xlu0 %522
  %526 = vset.pattern.permute.xlu0 0
  %527 = vperm.xlu0 %526, %v393
  %v528 = vpop.permute.xlu0 %527
  %531 = vset.pattern.permute.xlu0 0
  %532 = vperm.xlu0 %531, %v394
  %v533 = vpop.permute.xlu0 %532
  %536 = vset.pattern.permute.xlu0 0
  %537 = vperm.xlu0 %536, %v395
  %v538 = vpop.permute.xlu0 %537
  %541 = vset.pattern.permute.xlu0 0
  %542 = vperm.xlu0 %541, %v396
  %v543 = vpop.permute.xlu0 %542
  %546 = vset.pattern.permute.xlu0 0
  %547 = vperm.xlu0 %546, %v397
  %v548 = vpop.permute.xlu0 %547
  %551 = vset.pattern.permute.xlu0 0
  %552 = vperm.xlu0 %551, %v398
  %v553 = vpop.permute.xlu0 %552
  %556 = vset.pattern.permute.xlu0 0
  %557 = vperm.xlu0 %556, %v399
  %v558 = vpop.permute.xlu0 %557
  %v560 = vmul.f32 %v403, %v242
  %v561 = vmul.f32 %v408, %v245
  %v562 = vmul.f32 %v413, %v250
  %v563 = vmul.f32 %v418, %v253
  %v564 = vmul.f32 %v423, %v258
  %v565 = vmul.f32 %v428, %v261
  %v566 = vmul.f32 %v433, %v266
  %v567 = vmul.f32 %v438, %v269
  %v568 = vmul.f32 %v443, %v274
  %v569 = vmul.f32 %v448, %v277
  %v570 = vmul.f32 %v453, %v282
  %v571 = vmul.f32 %v458, %v285
  %v572 = vmul.f32 %v463, %v290
  %v573 = vmul.f32 %v468, %v293
  %v574 = vmul.f32 %v473, %v298
  %v575 = vmul.f32 %v478, %v301
  %v576 = vmul.f32 %v483, %v306
  %v577 = vmul.f32 %v488, %v309
  %v578 = vmul.f32 %v493, %v314
  %v579 = vmul.f32 %v498, %v317
  %v580 = vmul.f32 %v503, %v322
  %v581 = vmul.f32 %v508, %v325
  %v582 = vmul.f32 %v513, %v330
  %v583 = vmul.f32 %v518, %v333
  %v584 = vmul.f32 %v523, %v338
  %v585 = vmul.f32 %v528, %v341
  %v586 = vmul.f32 %v533, %v346
  %v587 = vmul.f32 %v538, %v349
  %v588 = vmul.f32 %v543, %v354
  %v589 = vmul.f32 %v548, %v357
  %v590 = vmul.f32 %v553, %v362
  %v591 = vmul.f32 %v558, %v365
  %v592 = vpack.c.bf16 %v561, %v560
  %v593 = vpack.c.bf16 %v563, %v562
  %v594 = vpack.c.bf16 %v565, %v564
  %v595 = vpack.c.bf16 %v567, %v566
  %v596 = vpack.c.bf16 %v569, %v568
  %v597 = vpack.c.bf16 %v571, %v570
  %v598 = vpack.c.bf16 %v573, %v572
  %v599 = vpack.c.bf16 %v575, %v574
  %v600 = vpack.c.bf16 %v577, %v576
  %v601 = vpack.c.bf16 %v579, %v578
  %v602 = vpack.c.bf16 %v581, %v580
  %v603 = vpack.c.bf16 %v583, %v582
  %v604 = vpack.c.bf16 %v585, %v584
  %v605 = vpack.c.bf16 %v587, %v586
  %v606 = vpack.c.bf16 %v589, %v588
  %v607 = vpack.c.bf16 %v591, %v590
  %v624 = vunpack.c.l.b16 %v592
  %v625 = vunpack.c.h.b16 %v592
  %v626 = vunpack.c.l.b16 %v593
  %v627 = vunpack.c.h.b16 %v593
  %v628 = vunpack.c.l.b16 %v594
  %v629 = vunpack.c.h.b16 %v594
  %v630 = vunpack.c.l.b16 %v595
  %v631 = vunpack.c.h.b16 %v595
  %v632 = vunpack.c.l.b16 %v596
  %v633 = vunpack.c.h.b16 %v596
  %v634 = vunpack.c.l.b16 %v597
  %v635 = vunpack.c.h.b16 %v597
  %v636 = vunpack.c.l.b16 %v598
  %v637 = vunpack.c.h.b16 %v598
  %v638 = vunpack.c.l.b16 %v599
  %v639 = vunpack.c.h.b16 %v599
  %v640 = vunpack.c.l.b16 %v600
  %v641 = vunpack.c.h.b16 %v600
  %v642 = vunpack.c.l.b16 %v601
  %v643 = vunpack.c.h.b16 %v601
  %v644 = vunpack.c.l.b16 %v602
  %v645 = vunpack.c.h.b16 %v602
  %v646 = vunpack.c.l.b16 %v603
  %v647 = vunpack.c.h.b16 %v603
  %v648 = vunpack.c.l.b16 %v604
  %v649 = vunpack.c.h.b16 %v604
  %v650 = vunpack.c.l.b16 %v605
  %v651 = vunpack.c.h.b16 %v605
  %v652 = vunpack.c.l.b16 %v606
  %v653 = vunpack.c.h.b16 %v606
  %v654 = vunpack.c.l.b16 %v607
  %v655 = vunpack.c.h.b16 %v607
  %v656 = vpack.c.b16 %v624, %v624
  %v657 = vpack.c.b16 %v625, %v625
  %v658 = vpack.c.b16 %v626, %v626
  %v659 = vpack.c.b16 %v627, %v627
  %v660 = vpack.c.b16 %v628, %v628
  %v661 = vpack.c.b16 %v629, %v629
  %v662 = vpack.c.b16 %v630, %v630
  %v663 = vpack.c.b16 %v631, %v631
  %v664 = vpack.c.b16 %v632, %v632
  %v665 = vpack.c.b16 %v633, %v633
  %v666 = vpack.c.b16 %v634, %v634
  %v667 = vpack.c.b16 %v635, %v635
  %v668 = vpack.c.b16 %v636, %v636
  %v669 = vpack.c.b16 %v637, %v637
  %v670 = vpack.c.b16 %v638, %v638
  %v671 = vpack.c.b16 %v639, %v639
  %v672 = vpack.c.b16 %v640, %v640
  %v673 = vpack.c.b16 %v641, %v641
  %v674 = vpack.c.b16 %v642, %v642
  %v675 = vpack.c.b16 %v643, %v643
  %v676 = vpack.c.b16 %v644, %v644
  %v677 = vpack.c.b16 %v645, %v645
  %v678 = vpack.c.b16 %v646, %v646
  %v679 = vpack.c.b16 %v647, %v647
  %v680 = vpack.c.b16 %v648, %v648
  %v681 = vpack.c.b16 %v649, %v649
  %v682 = vpack.c.b16 %v650, %v650
  %v683 = vpack.c.b16 %v651, %v651
  %v684 = vpack.c.b16 %v652, %v652
  %v685 = vpack.c.b16 %v653, %v653
  %v686 = vpack.c.b16 %v654, %v654
  %v687 = vpack.c.b16 %v655, %v655
  %720 = vst [vmem:[%s3] sm:$0xf] %v656
  %721 = vst [vmem:[%s3 + $0x4] sm:$0xf] %v657
  %722 = vst [vmem:[%s3 + $0x8] sm:$0xf] %v658
  %723 = vst [vmem:[%s3 + $0xc] sm:$0xf] %v659
  %724 = vst [vmem:[%s3 + $0x10] sm:$0xf] %v660
  %725 = vst [vmem:[%s3 + $0x14] sm:$0xf] %v661
  %726 = vst [vmem:[%s3 + $0x18] sm:$0xf] %v662
  %727 = vst [vmem:[%s3 + $0x1c] sm:$0xf] %v663
  %728 = vst [vmem:[%s3 + $0x20] sm:$0xf] %v664
  %729 = vst [vmem:[%s3 + $0x24] sm:$0xf] %v665
  %730 = vst [vmem:[%s3 + $0x28] sm:$0xf] %v666
  %731 = vst [vmem:[%s3 + $0x2c] sm:$0xf] %v667
  %732 = vst [vmem:[%s3 + $0x30] sm:$0xf] %v668
  %733 = vst [vmem:[%s3 + $0x34] sm:$0xf] %v669
  %734 = vst [vmem:[%s3 + $0x38] sm:$0xf] %v670
  %735 = vst [vmem:[%s3 + $0x3c] sm:$0xf] %v671
  %736 = vst [vmem:[%s3 + $0x40] sm:$0xf] %v672
  %737 = vst [vmem:[%s3 + $0x44] sm:$0xf] %v673
  %738 = vst [vmem:[%s3 + $0x48] sm:$0xf] %v674
  %739 = vst [vmem:[%s3 + $0x4c] sm:$0xf] %v675
  %740 = vst [vmem:[%s3 + $0x50] sm:$0xf] %v676
  %741 = vst [vmem:[%s3 + $0x54] sm:$0xf] %v677
  %742 = vst [vmem:[%s3 + $0x58] sm:$0xf] %v678
  %743 = vst [vmem:[%s3 + $0x5c] sm:$0xf] %v679
  %744 = vst [vmem:[%s3 + $0x60] sm:$0xf] %v680
  %745 = vst [vmem:[%s3 + $0x64] sm:$0xf] %v681
  %746 = vst [vmem:[%s3 + $0x68] sm:$0xf] %v682
  %747 = vst [vmem:[%s3 + $0x6c] sm:$0xf] %v683
  %748 = vst [vmem:[%s3 + $0x70] sm:$0xf] %v684
  %749 = vst [vmem:[%s3 + $0x74] sm:$0xf] %v685
  %750 = vst [vmem:[%s3 + $0x78] sm:$0xf] %v686
  %751 = vst [vmem:[%s3 + $0x7c] sm:$0xf] %v687
  // Predicated region
  $region14: #{closed_call.14} parent=0 // pred_check
    _
  $region15: #{closed_call.14} parent=0 // pred_check_branch
    %753 = sbr.rel (0) target = $region17
  $region16: #{closed_call.14} parent=0 // pred_region
    _
  $region17: #{closed_call.14} parent=0 // pred_fallthru
    _
  // Predicated region
  $region18: #{closed_call.14} parent=0 // pred_check
    _
  $region19: #{closed_call.14} parent=0 // pred_check_branch
    %755 = sbr.rel (0) target = $region21
  $region20: #{closed_call.14} parent=0 // pred_region
    _
  $region21: #{closed_call.14} parent=0 // pred_fallthru
    _

// kernel: closed_call.15
$region0: #{closed_call.15}
  #allocation0 [shape = 'u32[]', space=smem, size = 0x4, offset = 0x4, fixed_abs, tag = 'smem constant byte address 0x4 - core index']
  #allocation1 [shape = 'u32[144,128]{1,0:T(1,128)}', space=vmem, size = 0x12000, scoped, tag = 'internal scratch']
  #allocation2 [shape = 'f32[256,128]{1,0:T(8,128)}', space=vmem, size = 0x20000, scoped, tag = 'scratch operand']
  %s0 = inlined_call_operand.vmem [shape: bf16[256,256], index: 0, kind: input, shape index: {}]
  %s1 = inlined_call_operand.vmem [shape: bf16[256,128], index: 1, kind: input, shape index: {}, may-alias: {1,2}]
  %s2 = inlined_call_operand.vmem [shape: bf16[256,128], index: 2, kind: input, shape index: {}, may-alias: {1,2}]
  %s3 = inlined_call_operand.vmem [shape: f32[256,1], index: 3, kind: input, shape index: {}]
  %s4 = inlined_call_operand.vmem [shape: f32[256,128], index: 4, kind: output, shape index: {}]
  %s5 = sld [smem:[#allocation0]]
  $region34: #{closed_call.15} parent=0
    _
  %s7 = ssub.s32 1, %s5
  %s8 = scalar_select 0, %s7, %s5
  // Predicated region
  $region2: #{closed_call.15} parent=0 // pred_check
    _
  $region3: #{closed_call.15} parent=0 // pred_check_branch
    %10 = sbr.rel (0) target = $region5
  $region4: #{closed_call.15} parent=0 // pred_region
    _
  $region5: #{closed_call.15} parent=0 // pred_fallthru
    _
  // Predicated region
  $region6: #{closed_call.15} parent=0 // pred_check
    _
  $region7: #{closed_call.15} parent=0 // pred_check_branch
    %12 = sbr.rel (0) target = $region9
  $region8: #{closed_call.15} parent=0 // pred_region
    _
  $region9: #{closed_call.15} parent=0 // pred_fallthru
    _
  // Predicated region
  $region10: #{closed_call.15} parent=0 // pred_check
    _
  $region11: #{closed_call.15} parent=0 // pred_check_branch
    %14 = sbr.rel (0) target = $region13
  $region12: #{closed_call.15} parent=0 // pred_region
    _
  $region13: #{closed_call.15} parent=0 // pred_fallthru
    _
  // Predicated region
  $region14: #{closed_call.15} parent=0 // pred_check
    _
  $region15: #{closed_call.15} parent=0 // pred_check_branch
    %16 = sbr.rel (0) target = $region17
  $region16: #{closed_call.15} parent=0 // pred_region
    _
  $region17: #{closed_call.15} parent=0 // pred_fallthru
    _
  %p18 = scmp.eq.s32.totalorder 0, 0
  // Predicated region
  $region18: #{closed_call.15} parent=0 // pred_check
    %p19 = pneg %p18
  $region19: #{closed_call.15} parent=0 // pred_check_branch
    %21 = sbr.rel (%p19) target = $region21
  $region20: #{closed_call.15} parent=0 // pred_region
    %22 = vst [vmem:[#allocation2] sm:$0xff] 0.0
    %23 = vst [vmem:[#allocation2 + $0x8] sm:$0xff] 0.0
    %24 = vst [vmem:[#allocation2 + $0x10] sm:$0xff] 0.0
    %25 = vst [vmem:[#allocation2 + $0x18] sm:$0xff] 0.0
    %26 = vst [vmem:[#allocation2 + $0x20] sm:$0xff] 0.0
    %27 = vst [vmem:[#allocation2 + $0x28] sm:$0xff] 0.0
    %28 = vst [vmem:[#allocation2 + $0x30] sm:$0xff] 0.0
    %29 = vst [vmem:[#allocation2 + $0x38] sm:$0xff] 0.0
    %30 = vst [vmem:[#allocation2 + $0x40] sm:$0xff] 0.0
    %31 = vst [vmem:[#allocation2 + $0x48] sm:$0xff] 0.0
    %32 = vst [vmem:[#allocation2 + $0x50] sm:$0xff] 0.0
    %33 = vst [vmem:[#allocation2 + $0x58] sm:$0xff] 0.0
    %34 = vst [vmem:[#allocation2 + $0x60] sm:$0xff] 0.0
    %35 = vst [vmem:[#allocation2 + $0x68] sm:$0xff] 0.0
    %36 = vst [vmem:[#allocation2 + $0x70] sm:$0xff] 0.0
    %37 = vst [vmem:[#allocation2 + $0x78] sm:$0xff] 0.0
    %38 = vst [vmem:[#allocation2 + $0x80] sm:$0xff] 0.0
    %39 = vst [vmem:[#allocation2 + $0x88] sm:$0xff] 0.0
    %40 = vst [vmem:[#allocation2 + $0x90] sm:$0xff] 0.0
    %41 = vst [vmem:[#allocation2 + $0x98] sm:$0xff] 0.0
    %42 = vst [vmem:[#allocation2 + $0xa0] sm:$0xff] 0.0
    %43 = vst [vmem:[#allocation2 + $0xa8] sm:$0xff] 0.0
    %44 = vst [vmem:[#allocation2 + $0xb0] sm:$0xff] 0.0
    %45 = vst [vmem:[#allocation2 + $0xb8] sm:$0xff] 0.0
    %46 = vst [vmem:[#allocation2 + $0xc0] sm:$0xff] 0.0
    %47 = vst [vmem:[#allocation2 + $0xc8] sm:$0xff] 0.0
    %48 = vst [vmem:[#allocation2 + $0xd0] sm:$0xff] 0.0
    %49 = vst [vmem:[#allocation2 + $0xd8] sm:$0xff] 0.0
    %50 = vst [vmem:[#allocation2 + $0xe0] sm:$0xff] 0.0
    %51 = vst [vmem:[#allocation2 + $0xe8] sm:$0xff] 0.0
    %52 = vst [vmem:[#allocation2 + $0xf0] sm:$0xff] 0.0
    %53 = vst [vmem:[#allocation2 + $0xf8] sm:$0xff] 0.0
  $region21: #{closed_call.15} parent=0 // pred_fallthru
    _
  %v54 = vld [vmem:[#allocation2] sm:$0xff]
  %v55 = vld [vmem:[#allocation2 + $0x8] sm:$0xff]
  %v56 = vld [vmem:[#allocation2 + $0x10] sm:$0xff]
  %v57 = vld [vmem:[#allocation2 + $0x18] sm:$0xff]
  %v58 = vld [vmem:[#allocation2 + $0x20] sm:$0xff]
  %v59 = vld [vmem:[#allocation2 + $0x28] sm:$0xff]
  %v60 = vld [vmem:[#allocation2 + $0x30] sm:$0xff]
  %v61 = vld [vmem:[#allocation2 + $0x38] sm:$0xff]
  %v62 = vld [vmem:[#allocation2 + $0x40] sm:$0xff]
  %v63 = vld [vmem:[#allocation2 + $0x48] sm:$0xff]
  %v64 = vld [vmem:[#allocation2 + $0x50] sm:$0xff]
  %v65 = vld [vmem:[#allocation2 + $0x58] sm:$0xff]
  %v66 = vld [vmem:[#allocation2 + $0x60] sm:$0xff]
  %v67 = vld [vmem:[#allocation2 + $0x68] sm:$0xff]
  %v68 = vld [vmem:[#allocation2 + $0x70] sm:$0xff]
  %v69 = vld [vmem:[#allocation2 + $0x78] sm:$0xff]
  %v70 = vld [vmem:[#allocation2 + $0x80] sm:$0xff]
  %v71 = vld [vmem:[#allocation2 + $0x88] sm:$0xff]
  %v72 = vld [vmem:[#allocation2 + $0x90] sm:$0xff]
  %v73 = vld [vmem:[#allocation2 + $0x98] sm:$0xff]
  %v74 = vld [vmem:[#allocation2 + $0xa0] sm:$0xff]
  %v75 = vld [vmem:[#allocation2 + $0xa8] sm:$0xff]
  %v76 = vld [vmem:[#allocation2 + $0xb0] sm:$0xff]
  %v77 = vld [vmem:[#allocation2 + $0xb8] sm:$0xff]
  %v78 = vld [vmem:[#allocation2 + $0xc0] sm:$0xff]
  %v79 = vld [vmem:[#allocation2 + $0xc8] sm:$0xff]
  %v80 = vld [vmem:[#allocation2 + $0xd0] sm:$0xff]
  %v81 = vld [vmem:[#allocation2 + $0xd8] sm:$0xff]
  %v82 = vld [vmem:[#allocation2 + $0xe0] sm:$0xff]
  %v83 = vld [vmem:[#allocation2 + $0xe8] sm:$0xff]
  %v84 = vld [vmem:[#allocation2 + $0xf0] sm:$0xff]
  %v85 = vld [vmem:[#allocation2 + $0xf8] sm:$0xff]
  %v86 = vld [vmem:[%s0] sm:$0xff]
  %v87 = vld [vmem:[%s0 + $0x8] sm:$0xff]
  %v88 = vld [vmem:[%s0 + $0x10] sm:$0xff]
  %v89 = vld [vmem:[%s0 + $0x18] sm:$0xff]
  %v90 = vld [vmem:[%s0 + $0x20] sm:$0xff]
  %v91 = vld [vmem:[%s0 + $0x28] sm:$0xff]
  %v92 = vld [vmem:[%s0 + $0x30] sm:$0xff]
  %v93 = vld [vmem:[%s0 + $0x38] sm:$0xff]
  %v94 = vld [vmem:[%s0 + $0x40] sm:$0xff]
  %v95 = vld [vmem:[%s0 + $0x48] sm:$0xff]
  %v96 = vld [vmem:[%s0 + $0x50] sm:$0xff]
  %v97 = vld [vmem:[%s0 + $0x58] sm:$0xff]
  %v98 = vld [vmem:[%s0 + $0x60] sm:$0xff]
  %v99 = vld [vmem:[%s0 + $0x68] sm:$0xff]
  %v100 = vld [vmem:[%s0 + $0x70] sm:$0xff]
  %v101 = vld [vmem:[%s0 + $0x78] sm:$0xff]
  %v102 = vld [vmem:[%s0 + $0x80] sm:$0xff]
  %v103 = vld [vmem:[%s0 + $0x88] sm:$0xff]
  %v104 = vld [vmem:[%s0 + $0x90] sm:$0xff]
  %v105 = vld [vmem:[%s0 + $0x98] sm:$0xff]
  %v106 = vld [vmem:[%s0 + $0xa0] sm:$0xff]
  %v107 = vld [vmem:[%s0 + $0xa8] sm:$0xff]
  %v108 = vld [vmem:[%s0 + $0xb0] sm:$0xff]
  %v109 = vld [vmem:[%s0 + $0xb8] sm:$0xff]
  %v110 = vld [vmem:[%s0 + $0xc0] sm:$0xff]
  %v111 = vld [vmem:[%s0 + $0xc8] sm:$0xff]
  %v112 = vld [vmem:[%s0 + $0xd0] sm:$0xff]
  %v113 = vld [vmem:[%s0 + $0xd8] sm:$0xff]
  %v114 = vld [vmem:[%s0 + $0xe0] sm:$0xff]
  %v115 = vld [vmem:[%s0 + $0xe8] sm:$0xff]
  %v116 = vld [vmem:[%s0 + $0xf0] sm:$0xff]
  %v117 = vld [vmem:[%s0 + $0xf8] sm:$0xff]
  %v118 = vld [vmem:[%s1] sm:$0xf]
  %v119 = vld [vmem:[%s1 + $0x4] sm:$0xf]
  %v120 = vld [vmem:[%s1 + $0x8] sm:$0xf]
  %v121 = vld [vmem:[%s1 + $0xc] sm:$0xf]
  %v122 = vld [vmem:[%s1 + $0x10] sm:$0xf]
  %v123 = vld [vmem:[%s1 + $0x14] sm:$0xf]
  %v124 = vld [vmem:[%s1 + $0x18] sm:$0xf]
  %v125 = vld [vmem:[%s1 + $0x1c] sm:$0xf]
  %v126 = vld [vmem:[%s1 + $0x20] sm:$0xf]
  %v127 = vld [vmem:[%s1 + $0x24] sm:$0xf]
  %v128 = vld [vmem:[%s1 + $0x28] sm:$0xf]
  %v129 = vld [vmem:[%s1 + $0x2c] sm:$0xf]
  %v130 = vld [vmem:[%s1 + $0x30] sm:$0xf]
  %v131 = vld [vmem:[%s1 + $0x34] sm:$0xf]
  %v132 = vld [vmem:[%s1 + $0x38] sm:$0xf]
  %v133 = vld [vmem:[%s1 + $0x3c] sm:$0xf]
  %v134 = vld [vmem:[%s1 + $0x40] sm:$0xf]
  %v135 = vld [vmem:[%s1 + $0x44] sm:$0xf]
  %v136 = vld [vmem:[%s1 + $0x48] sm:$0xf]
  %v137 = vld [vmem:[%s1 + $0x4c] sm:$0xf]
  %v138 = vld [vmem:[%s1 + $0x50] sm:$0xf]
  %v139 = vld [vmem:[%s1 + $0x54] sm:$0xf]
  %v140 = vld [vmem:[%s1 + $0x58] sm:$0xf]
  %v141 = vld [vmem:[%s1 + $0x5c] sm:$0xf]
  %v142 = vld [vmem:[%s1 + $0x60] sm:$0xf]
  %v143 = vld [vmem:[%s1 + $0x64] sm:$0xf]
  %v144 = vld [vmem:[%s1 + $0x68] sm:$0xf]
  %v145 = vld [vmem:[%s1 + $0x6c] sm:$0xf]
  %v146 = vld [vmem:[%s1 + $0x70] sm:$0xf]
  %v147 = vld [vmem:[%s1 + $0x74] sm:$0xf]
  %v148 = vld [vmem:[%s1 + $0x78] sm:$0xf]
  %v149 = vld [vmem:[%s1 + $0x7c] sm:$0xf]
  %v182 = vunpack.c.l.b16 %v86
  %v183 = vunpack.c.h.b16 %v86
  %v184 = vunpack.c.l.b16 %v87
  %v185 = vunpack.c.h.b16 %v87
  %v186 = vunpack.c.l.b16 %v88
  %v187 = vunpack.c.h.b16 %v88
  %v188 = vunpack.c.l.b16 %v89
  %v189 = vunpack.c.h.b16 %v89
  %v190 = vunpack.c.l.b16 %v90
  %v191 = vunpack.c.h.b16 %v90
  %v192 = vunpack.c.l.b16 %v91
  %v193 = vunpack.c.h.b16 %v91
  %v194 = vunpack.c.l.b16 %v92
  %v195 = vunpack.c.h.b16 %v92
  %v196 = vunpack.c.l.b16 %v93
  %v197 = vunpack.c.h.b16 %v93
  %v198 = vunpack.c.l.b16 %v94
  %v199 = vunpack.c.h.b16 %v94
  %v200 = vunpack.c.l.b16 %v95
  %v201 = vunpack.c.h.b16 %v95
  %v202 = vunpack.c.l.b16 %v96
  %v203 = vunpack.c.h.b16 %v96
  %v204 = vunpack.c.l.b16 %v97
  %v205 = vunpack.c.h.b16 %v97
  %v206 = vunpack.c.l.b16 %v98
  %v207 = vunpack.c.h.b16 %v98
  %v208 = vunpack.c.l.b16 %v99
  %v209 = vunpack.c.h.b16 %v99
  %v210 = vunpack.c.l.b16 %v100
  %v211 = vunpack.c.h.b16 %v100
  %v212 = vunpack.c.l.b16 %v101
  %v213 = vunpack.c.h.b16 %v101
  %v214 = vunpack.c.l.b16 %v102
  %v215 = vunpack.c.h.b16 %v102
  %v216 = vunpack.c.l.b16 %v103
  %v217 = vunpack.c.h.b16 %v103
  %v218 = vunpack.c.l.b16 %v104
  %v219 = vunpack.c.h.b16 %v104
  %v220 = vunpack.c.l.b16 %v105
  %v221 = vunpack.c.h.b16 %v105
  %v222 = vunpack.c.l.b16 %v106
  %v223 = vunpack.c.h.b16 %v106
  %v224 = vunpack.c.l.b16 %v107
  %v225 = vunpack.c.h.b16 %v107
  %v226 = vunpack.c.l.b16 %v108
  %v227 = vunpack.c.h.b16 %v108
  %v228 = vunpack.c.l.b16 %v109
  %v229 = vunpack.c.h.b16 %v109
  %v230 = vunpack.c.l.b16 %v110
  %v231 = vunpack.c.h.b16 %v110
  %v232 = vunpack.c.l.b16 %v111
  %v233 = vunpack.c.h.b16 %v111
  %v234 = vunpack.c.l.b16 %v112
  %v235 = vunpack.c.h.b16 %v112
  %v236 = vunpack.c.l.b16 %v113
  %v237 = vunpack.c.h.b16 %v113
  %v238 = vunpack.c.l.b16 %v114
  %v239 = vunpack.c.h.b16 %v114
  %v240 = vunpack.c.l.b16 %v115
  %v241 = vunpack.c.h.b16 %v115
  %v242 = vunpack.c.l.b16 %v116
  %v243 = vunpack.c.h.b16 %v116
  %v244 = vunpack.c.l.b16 %v117
  %v245 = vunpack.c.h.b16 %v117
  %v246 = vpack.c.b16 %v184, %v182
  %v247 = vpack.c.b16 %v185, %v183
  %v248 = vpack.c.b16 %v188, %v186
  %v249 = vpack.c.b16 %v189, %v187
  %v250 = vpack.c.b16 %v192, %v190
  %v251 = vpack.c.b16 %v193, %v191
  %v252 = vpack.c.b16 %v196, %v194
  %v253 = vpack.c.b16 %v197, %v195
  %v254 = vpack.c.b16 %v200, %v198
  %v255 = vpack.c.b16 %v201, %v199
  %v256 = vpack.c.b16 %v204, %v202
  %v257 = vpack.c.b16 %v205, %v203
  %v258 = vpack.c.b16 %v208, %v206
  %v259 = vpack.c.b16 %v209, %v207
  %v260 = vpack.c.b16 %v212, %v210
  %v261 = vpack.c.b16 %v213, %v211
  %v262 = vpack.c.b16 %v216, %v214
  %v263 = vpack.c.b16 %v217, %v215
  %v264 = vpack.c.b16 %v220, %v218
  %v265 = vpack.c.b16 %v221, %v219
  %v266 = vpack.c.b16 %v224, %v222
  %v267 = vpack.c.b16 %v225, %v223
  %v268 = vpack.c.b16 %v228, %v226
  %v269 = vpack.c.b16 %v229, %v227
  %v270 = vpack.c.b16 %v232, %v230
  %v271 = vpack.c.b16 %v233, %v231
  %v272 = vpack.c.b16 %v236, %v234
  %v273 = vpack.c.b16 %v237, %v235
  %v274 = vpack.c.b16 %v240, %v238
  %v275 = vpack.c.b16 %v241, %v239
  %v276 = vpack.c.b16 %v244, %v242
  %v277 = vpack.c.b16 %v245, %v243
  %v342 = vunpack.c.l.b16 %v118
  %v343 = vunpack.c.l.b16 %v119
  %v344 = vunpack.c.l.b16 %v120
  %v345 = vunpack.c.l.b16 %v121
  %v346 = vunpack.c.l.b16 %v122
  %v347 = vunpack.c.l.b16 %v123
  %v348 = vunpack.c.l.b16 %v124
  %v349 = vunpack.c.l.b16 %v125
  %v350 = vunpack.c.l.b16 %v126
  %v351 = vunpack.c.l.b16 %v127
  %v352 = vunpack.c.l.b16 %v128
  %v353 = vunpack.c.l.b16 %v129
  %v354 = vunpack.c.l.b16 %v130
  %v355 = vunpack.c.l.b16 %v131
  %v356 = vunpack.c.l.b16 %v132
  %v357 = vunpack.c.l.b16 %v133
  %v358 = vunpack.c.l.b16 %v134
  %v359 = vunpack.c.l.b16 %v135
  %v360 = vunpack.c.l.b16 %v136
  %v361 = vunpack.c.l.b16 %v137
  %v362 = vunpack.c.l.b16 %v138
  %v363 = vunpack.c.l.b16 %v139
  %v364 = vunpack.c.l.b16 %v140
  %v365 = vunpack.c.l.b16 %v141
  %v366 = vunpack.c.l.b16 %v142
  %v367 = vunpack.c.l.b16 %v143
  %v368 = vunpack.c.l.b16 %v144
  %v369 = vunpack.c.l.b16 %v145
  %v370 = vunpack.c.l.b16 %v146
  %v371 = vunpack.c.l.b16 %v147
  %v372 = vunpack.c.l.b16 %v148
  %v373 = vunpack.c.l.b16 %v149
  %v374 = vpack.c.b16 %v343, %v342
  %v375 = vpack.c.b16 %v345, %v344
  %v376 = vpack.c.b16 %v347, %v346
  %v377 = vpack.c.b16 %v349, %v348
  %v378 = vpack.c.b16 %v351, %v350
  %v379 = vpack.c.b16 %v353, %v352
  %v380 = vpack.c.b16 %v355, %v354
  %v381 = vpack.c.b16 %v357, %v356
  %v382 = vpack.c.b16 %v359, %v358
  %v383 = vpack.c.b16 %v361, %v360
  %v384 = vpack.c.b16 %v363, %v362
  %v385 = vpack.c.b16 %v365, %v364
  %v386 = vpack.c.b16 %v367, %v366
  %v387 = vpack.c.b16 %v369, %v368
  %v388 = vpack.c.b16 %v371, %v370
  %v389 = vpack.c.b16 %v373, %v372
  %406 = vmatprep.subr.bf16.mxu0 0
  %407 = vmatpush1.bf16.msra.mxu0 %v374
  %408 = vmatprep.subr.bf16.mxu0 0
  %409 = vmatpush1.bf16.msra.mxu0 %v375
  %410 = vmatprep.subr.bf16.mxu0 0
  %411 = vmatpush1.bf16.msra.mxu0 %v376
  %412 = vmatprep.subr.bf16.mxu0 0
  %413 = vmatpush1.bf16.msra.mxu0 %v377
  %414 = vmatprep.subr.bf16.mxu0 0
  %415 = vmatpush1.bf16.msra.mxu0 %v378
  %416 = vmatprep.subr.bf16.mxu0 0
  %417 = vmatpush1.bf16.msra.mxu0 %v379
  %418 = vmatprep.subr.bf16.mxu0 0
  %419 = vmatpush1.bf16.msra.mxu0 %v380
  %420 = vmatprep.subr.bf16.mxu0 0
  %421 = vmatpush1.bf16.msra.mxu0 %v381
  %422 = vmatprep.subr.bf16.mxu0 0
  %423 = vmatpush1.bf16.msra.mxu0 %v382
  %424 = vmatprep.subr.bf16.mxu0 0
  %425 = vmatpush1.bf16.msra.mxu0 %v383
  %426 = vmatprep.subr.bf16.mxu0 0
  %427 = vmatpush1.bf16.msra.mxu0 %v384
  %428 = vmatprep.subr.bf16.mxu0 0
  %429 = vmatpush1.bf16.msra.mxu0 %v385
  %430 = vmatprep.subr.bf16.mxu0 0
  %431 = vmatpush1.bf16.msra.mxu0 %v386
  %432 = vmatprep.subr.bf16.mxu0 0
  %433 = vmatpush1.bf16.msra.mxu0 %v387
  %434 = vmatprep.subr.bf16.mxu0 0
  %435 = vmatpush1.bf16.msra.mxu0 %v388
  %436 = vmatprep.subr.bf16.mxu0 0
  %437 = vmatpush1.bf16.msra.mxu0 %v389
  %438 = vmatprep.mubr.bf16.mxu0 %v247
  %439 = vmatmul.mubr.bf16.gmra.mrb[0].mxu0 %v246
  %v440 = vpop.f32.mrb[0].mxu0
  %v441 = vadd.f32 0.0, %v440
  %v442 = vpop.f32.mrb[0].mxu0
  %v443 = vpop.f32.mrb[0].mxu0
  %v444 = vadd.f32 0.0, %v443
  %v445 = vpop.f32.mrb[0].mxu0
  %446 = vmatprep.mubr.bf16.mxu0 %v249
  %447 = vmatmul.mubr.bf16.gmra.mrb[0].mxu0 %v248
  %v448 = vpop.f32.mrb[0].mxu0
  %v449 = vadd.f32 0.0, %v448
  %v450 = vpop.f32.mrb[0].mxu0
  %v451 = vpop.f32.mrb[0].mxu0
  %v452 = vadd.f32 0.0, %v451
  %v453 = vpop.f32.mrb[0].mxu0
  %454 = vmatprep.mubr.bf16.mxu0 %v251
  %455 = vmatmul.mubr.bf16.gmra.mrb[0].mxu0 %v250
  %v456 = vpop.f32.mrb[0].mxu0
  %v457 = vadd.f32 0.0, %v456
  %v458 = vpop.f32.mrb[0].mxu0
  %v459 = vpop.f32.mrb[0].mxu0
  %v460 = vadd.f32 0.0, %v459
  %v461 = vpop.f32.mrb[0].mxu0
  %462 = vmatprep.mubr.bf16.mxu0 %v253
  %463 = vmatmul.mubr.bf16.gmra.mrb[0].mxu0 %v252
  %v464 = vpop.f32.mrb[0].mxu0
  %v465 = vadd.f32 0.0, %v464
  %v466 = vpop.f32.mrb[0].mxu0
  %v467 = vpop.f32.mrb[0].mxu0
  %v468 = vadd.f32 0.0, %v467
  %v469 = vpop.f32.mrb[0].mxu0
  %470 = vmatprep.mubr.bf16.mxu0 %v255
  %471 = vmatmul.mubr.bf16.gmra.mrb[0].mxu0 %v254
  %v472 = vpop.f32.mrb[0].mxu0
  %v473 = vadd.f32 0.0, %v472
  %v474 = vpop.f32.mrb[0].mxu0
  %v475 = vpop.f32.mrb[0].mxu0
  %v476 = vadd.f32 0.0, %v475
  %v477 = vpop.f32.mrb[0].mxu0
  %478 = vmatprep.mubr.bf16.mxu0 %v257
  %479 = vmatmul.mubr.bf16.gmra.mrb[0].mxu0 %v256
  %v480 = vpop.f32.mrb[0].mxu0
  %v481 = vadd.f32 0.0, %v480
  %v482 = vpop.f32.mrb[0].mxu0
  %v483 = vpop.f32.mrb[0].mxu0
  %v484 = vadd.f32 0.0, %v483
  %v485 = vpop.f32.mrb[0].mxu0
  %486 = vmatprep.mubr.bf16.mxu0 %v259
  %487 = vmatmul.mubr.bf16.gmra.mrb[0].mxu0 %v258
  %v488 = vpop.f32.mrb[0].mxu0
  %v489 = vadd.f32 0.0, %v488
  %v490 = vpop.f32.mrb[0].mxu0
  %v491 = vpop.f32.mrb[0].mxu0
  %v492 = vadd.f32 0.0, %v491
  %v493 = vpop.f32.mrb[0].mxu0
  %494 = vmatprep.mubr.bf16.mxu0 %v261
  %495 = vmatmul.mubr.bf16.gmra.mrb[0].mxu0 %v260
  %v496 = vpop.f32.mrb[0].mxu0
  %v497 = vadd.f32 0.0, %v496
  %v498 = vpop.f32.mrb[0].mxu0
  %v499 = vpop.f32.mrb[0].mxu0
  %v500 = vadd.f32 0.0, %v499
  %v501 = vpop.f32.mrb[0].mxu0
  %502 = vmatprep.mubr.bf16.mxu0 %v263
  %503 = vmatmul.mubr.bf16.gmra.mrb[0].mxu0 %v262
  %v504 = vpop.f32.mrb[0].mxu0
  %v505 = vadd.f32 0.0, %v504
  %v506 = vpop.f32.mrb[0].mxu0
  %v507 = vpop.f32.mrb[0].mxu0
  %v508 = vadd.f32 0.0, %v507
  %v509 = vpop.f32.mrb[0].mxu0
  %510 = vmatprep.mubr.bf16.mxu0 %v265
  %511 = vmatmul.mubr.bf16.gmra.mrb[0].mxu0 %v264
  %v512 = vpop.f32.mrb[0].mxu0
  %v513 = vadd.f32 0.0, %v512
  %v514 = vpop.f32.mrb[0].mxu0
  %v515 = vpop.f32.mrb[0].mxu0
  %v516 = vadd.f32 0.0, %v515
  %v517 = vpop.f32.mrb[0].mxu0
  %518 = vmatprep.mubr.bf16.mxu0 %v267
  %519 = vmatmul.mubr.bf16.gmra.mrb[0].mxu0 %v266
  %v520 = vpop.f32.mrb[0].mxu0
  %v521 = vadd.f32 0.0, %v520
  %v522 = vpop.f32.mrb[0].mxu0
  %v523 = vpop.f32.mrb[0].mxu0
  %v524 = vadd.f32 0.0, %v523
  %v525 = vpop.f32.mrb[0].mxu0
  %526 = vmatprep.mubr.bf16.mxu0 %v269
  %527 = vmatmul.mubr.bf16.gmra.mrb[0].mxu0 %v268
  %v528 = vpop.f32.mrb[0].mxu0
  %v529 = vadd.f32 0.0, %v528
  %v530 = vpop.f32.mrb[0].mxu0
  %v531 = vpop.f32.mrb[0].mxu0
  %v532 = vadd.f32 0.0, %v531
  %v533 = vpop.f32.mrb[0].mxu0
  %534 = vmatprep.mubr.bf16.mxu0 %v271
  %535 = vmatmul.mubr.bf16.gmra.mrb[0].mxu0 %v270
  %v536 = vpop.f32.mrb[0].mxu0
  %v537 = vadd.f32 0.0, %v536
  %v538 = vpop.f32.mrb[0].mxu0
  %v539 = vpop.f32.mrb[0].mxu0
  %v540 = vadd.f32 0.0, %v539
  %v541 = vpop.f32.mrb[0].mxu0
  %542 = vmatprep.mubr.bf16.mxu0 %v273
  %543 = vmatmul.mubr.bf16.gmra.mrb[0].mxu0 %v272
  %v544 = vpop.f32.mrb[0].mxu0
  %v545 = vadd.f32 0.0, %v544
  %v546 = vpop.f32.mrb[0].mxu0
  %v547 = vpop.f32.mrb[0].mxu0
  %v548 = vadd.f32 0.0, %v547
  %v549 = vpop.f32.mrb[0].mxu0
  %550 = vmatprep.mubr.bf16.mxu0 %v275
  %551 = vmatmul.mubr.bf16.gmra.mrb[0].mxu0 %v274
  %v552 = vpop.f32.mrb[0].mxu0
  %v553 = vadd.f32 0.0, %v552
  %v554 = vpop.f32.mrb[0].mxu0
  %v555 = vpop.f32.mrb[0].mxu0
  %v556 = vadd.f32 0.0, %v555
  %v557 = vpop.f32.mrb[0].mxu0
  %558 = vmatprep.mubr.bf16.mxu0 %v277
  %559 = vmatmul.mubr.bf16.gmra.mrb[0].mxu0 %v276
  %v560 = vpop.f32.mrb[0].mxu0
  %v561 = vadd.f32 0.0, %v560
  %v562 = vpop.f32.mrb[0].mxu0
  %v563 = vpop.f32.mrb[0].mxu0
  %v564 = vadd.f32 0.0, %v563
  %v565 = vpop.f32.mrb[0].mxu0
  %566 = vdwg.mxu0
  %v567 = vadd.f32 %v54, %v441
  %v568 = vadd.f32 %v55, %v444
  %v569 = vadd.f32 %v56, %v449
  %v570 = vadd.f32 %v57, %v452
  %v571 = vadd.f32 %v58, %v457
  %v572 = vadd.f32 %v59, %v460
  %v573 = vadd.f32 %v60, %v465
  %v574 = vadd.f32 %v61, %v468
  %v575 = vadd.f32 %v62, %v473
  %v576 = vadd.f32 %v63, %v476
  %v577 = vadd.f32 %v64, %v481
  %v578 = vadd.f32 %v65, %v484
  %v579 = vadd.f32 %v66, %v489
  %v580 = vadd.f32 %v67, %v492
  %v581 = vadd.f32 %v68, %v497
  %v582 = vadd.f32 %v69, %v500
  %v583 = vadd.f32 %v70, %v505
  %v584 = vadd.f32 %v71, %v508
  %v585 = vadd.f32 %v72, %v513
  %v586 = vadd.f32 %v73, %v516
  %v587 = vadd.f32 %v74, %v521
  %v588 = vadd.f32 %v75, %v524
  %v589 = vadd.f32 %v76, %v529
  %v590 = vadd.f32 %v77, %v532
  %v591 = vadd.f32 %v78, %v537
  %v592 = vadd.f32 %v79, %v540
  %v593 = vadd.f32 %v80, %v545
  %v594 = vadd.f32 %v81, %v548
  %v595 = vadd.f32 %v82, %v553
  %v596 = vadd.f32 %v83, %v556
  %v597 = vadd.f32 %v84, %v561
  %v598 = vadd.f32 %v85, %v564
  %599 = vst [vmem:[#allocation2] sm:$0xff] %v567
  %600 = vst [vmem:[#allocation2 + $0x8] sm:$0xff] %v568
  %601 = vst [vmem:[#allocation2 + $0x10] sm:$0xff] %v569
  %602 = vst [vmem:[#allocation2 + $0x18] sm:$0xff] %v570
  %603 = vst [vmem:[#allocation2 + $0x20] sm:$0xff] %v571
  %604 = vst [vmem:[#allocation2 + $0x28] sm:$0xff] %v572
  %605 = vst [vmem:[#allocation2 + $0x30] sm:$0xff] %v573
  %606 = vst [vmem:[#allocation2 + $0x38] sm:$0xff] %v574
  %607 = vst [vmem:[#allocation2 + $0x40] sm:$0xff] %v575
  %608 = vst [vmem:[#allocation2 + $0x48] sm:$0xff] %v576
  %609 = vst [vmem:[#allocation2 + $0x50] sm:$0xff] %v577
  %610 = vst [vmem:[#allocation2 + $0x58] sm:$0xff] %v578
  %611 = vst [vmem:[#allocation2 + $0x60] sm:$0xff] %v579
  %612 = vst [vmem:[#allocation2 + $0x68] sm:$0xff] %v580
  %613 = vst [vmem:[#allocation2 + $0x70] sm:$0xff] %v581
  %614 = vst [vmem:[#allocation2 + $0x78] sm:$0xff] %v582
  %615 = vst [vmem:[#allocation2 + $0x80] sm:$0xff] %v583
  %616 = vst [vmem:[#allocation2 + $0x88] sm:$0xff] %v584
  %617 = vst [vmem:[#allocation2 + $0x90] sm:$0xff] %v585
  %618 = vst [vmem:[#allocation2 + $0x98] sm:$0xff] %v586
  %619 = vst [vmem:[#allocation2 + $0xa0] sm:$0xff] %v587
  %620 = vst [vmem:[#allocation2 + $0xa8] sm:$0xff] %v588
  %621 = vst [vmem:[#allocation2 + $0xb0] sm:$0xff] %v589
  %622 = vst [vmem:[#allocation2 + $0xb8] sm:$0xff] %v590
  %623 = vst [vmem:[#allocation2 + $0xc0] sm:$0xff] %v591
  %624 = vst [vmem:[#allocation2 + $0xc8] sm:$0xff] %v592
  %625 = vst [vmem:[#allocation2 + $0xd0] sm:$0xff] %v593
  %626 = vst [vmem:[#allocation2 + $0xd8] sm:$0xff] %v594
  %627 = vst [vmem:[#allocation2 + $0xe0] sm:$0xff] %v595
  %628 = vst [vmem:[#allocation2 + $0xe8] sm:$0xff] %v596
  %629 = vst [vmem:[#allocation2 + $0xf0] sm:$0xff] %v597
  %630 = vst [vmem:[#allocation2 + $0xf8] sm:$0xff] %v598
  // Predicated region
  $region22: #{closed_call.15} parent=0 // pred_check
    %p631 = pneg %p18
  $region23: #{closed_call.15} parent=0 // pred_check_branch
    %633 = sbr.rel (%p631) target = $region25
  $region24: #{closed_call.15} parent=0 // pred_region
    %v634 = vld [vmem:[%s3] sm:$0xff]
    %v635 = vld [vmem:[%s3 + $0x8] sm:$0xff]
    %v636 = vld [vmem:[%s3 + $0x10] sm:$0xff]
    %v637 = vld [vmem:[%s3 + $0x18] sm:$0xff]
    %v638 = vld [vmem:[%s3 + $0x20] sm:$0xff]
    %v639 = vld [vmem:[%s3 + $0x28] sm:$0xff]
    %v640 = vld [vmem:[%s3 + $0x30] sm:$0xff]
    %v641 = vld [vmem:[%s3 + $0x38] sm:$0xff]
    %v642 = vld [vmem:[%s3 + $0x40] sm:$0xff]
    %v643 = vld [vmem:[%s3 + $0x48] sm:$0xff]
    %v644 = vld [vmem:[%s3 + $0x50] sm:$0xff]
    %v645 = vld [vmem:[%s3 + $0x58] sm:$0xff]
    %v646 = vld [vmem:[%s3 + $0x60] sm:$0xff]
    %v647 = vld [vmem:[%s3 + $0x68] sm:$0xff]
    %v648 = vld [vmem:[%s3 + $0x70] sm:$0xff]
    %v649 = vld [vmem:[%s3 + $0x78] sm:$0xff]
    %v650 = vld [vmem:[%s3 + $0x80] sm:$0xff]
    %v651 = vld [vmem:[%s3 + $0x88] sm:$0xff]
    %v652 = vld [vmem:[%s3 + $0x90] sm:$0xff]
    %v653 = vld [vmem:[%s3 + $0x98] sm:$0xff]
    %v654 = vld [vmem:[%s3 + $0xa0] sm:$0xff]
    %v655 = vld [vmem:[%s3 + $0xa8] sm:$0xff]
    %v656 = vld [vmem:[%s3 + $0xb0] sm:$0xff]
    %v657 = vld [vmem:[%s3 + $0xb8] sm:$0xff]
    %v658 = vld [vmem:[%s3 + $0xc0] sm:$0xff]
    %v659 = vld [vmem:[%s3 + $0xc8] sm:$0xff]
    %v660 = vld [vmem:[%s3 + $0xd0] sm:$0xff]
    %v661 = vld [vmem:[%s3 + $0xd8] sm:$0xff]
    %v662 = vld [vmem:[%s3 + $0xe0] sm:$0xff]
    %v663 = vld [vmem:[%s3 + $0xe8] sm:$0xff]
    %v664 = vld [vmem:[%s3 + $0xf0] sm:$0xff]
    %v665 = vld [vmem:[%s3 + $0xf8] sm:$0xff]
    %v666 = vld [vmem:[#allocation2] sm:$0xff]
    %v667 = vld [vmem:[#allocation2 + $0x8] sm:$0xff]
    %v668 = vld [vmem:[#allocation2 + $0x10] sm:$0xff]
    %v669 = vld [vmem:[#allocation2 + $0x18] sm:$0xff]
    %v670 = vld [vmem:[#allocation2 + $0x20] sm:$0xff]
    %v671 = vld [vmem:[#allocation2 + $0x28] sm:$0xff]
    %v672 = vld [vmem:[#allocation2 + $0x30] sm:$0xff]
    %v673 = vld [vmem:[#allocation2 + $0x38] sm:$0xff]
    %v674 = vld [vmem:[#allocation2 + $0x40] sm:$0xff]
    %v675 = vld [vmem:[#allocation2 + $0x48] sm:$0xff]
    %v676 = vld [vmem:[#allocation2 + $0x50] sm:$0xff]
    %v677 = vld [vmem:[#allocation2 + $0x58] sm:$0xff]
    %v678 = vld [vmem:[#allocation2 + $0x60] sm:$0xff]
    %v679 = vld [vmem:[#allocation2 + $0x68] sm:$0xff]
    %v680 = vld [vmem:[#allocation2 + $0x70] sm:$0xff]
    %v681 = vld [vmem:[#allocation2 + $0x78] sm:$0xff]
    %v682 = vld [vmem:[#allocation2 + $0x80] sm:$0xff]
    %v683 = vld [vmem:[#allocation2 + $0x88] sm:$0xff]
    %v684 = vld [vmem:[#allocation2 + $0x90] sm:$0xff]
    %v685 = vld [vmem:[#allocation2 + $0x98] sm:$0xff]
    %v686 = vld [vmem:[#allocation2 + $0xa0] sm:$0xff]
    %v687 = vld [vmem:[#allocation2 + $0xa8] sm:$0xff]
    %v688 = vld [vmem:[#allocation2 + $0xb0] sm:$0xff]
    %v689 = vld [vmem:[#allocation2 + $0xb8] sm:$0xff]
    %v690 = vld [vmem:[#allocation2 + $0xc0] sm:$0xff]
    %v691 = vld [vmem:[#allocation2 + $0xc8] sm:$0xff]
    %v692 = vld [vmem:[#allocation2 + $0xd0] sm:$0xff]
    %v693 = vld [vmem:[#allocation2 + $0xd8] sm:$0xff]
    %v694 = vld [vmem:[#allocation2 + $0xe0] sm:$0xff]
    %v695 = vld [vmem:[#allocation2 + $0xe8] sm:$0xff]
    %v696 = vld [vmem:[#allocation2 + $0xf0] sm:$0xff]
    %v697 = vld [vmem:[#allocation2 + $0xf8] sm:$0xff]
    %v698 = vld [vmem:[%s2] sm:$0xf]
    %v699 = vld [vmem:[%s2 + $0x4] sm:$0xf]
    %v700 = vld [vmem:[%s2 + $0x8] sm:$0xf]
    %v701 = vld [vmem:[%s2 + $0xc] sm:$0xf]
    %v702 = vld [vmem:[%s2 + $0x10] sm:$0xf]
    %v703 = vld [vmem:[%s2 + $0x14] sm:$0xf]
    %v704 = vld [vmem:[%s2 + $0x18] sm:$0xf]
    %v705 = vld [vmem:[%s2 + $0x1c] sm:$0xf]
    %v706 = vld [vmem:[%s2 + $0x20] sm:$0xf]
    %v707 = vld [vmem:[%s2 + $0x24] sm:$0xf]
    %v708 = vld [vmem:[%s2 + $0x28] sm:$0xf]
    %v709 = vld [vmem:[%s2 + $0x2c] sm:$0xf]
    %v710 = vld [vmem:[%s2 + $0x30] sm:$0xf]
    %v711 = vld [vmem:[%s2 + $0x34] sm:$0xf]
    %v712 = vld [vmem:[%s2 + $0x38] sm:$0xf]
    %v713 = vld [vmem:[%s2 + $0x3c] sm:$0xf]
    %v714 = vld [vmem:[%s2 + $0x40] sm:$0xf]
    %v715 = vld [vmem:[%s2 + $0x44] sm:$0xf]
    %v716 = vld [vmem:[%s2 + $0x48] sm:$0xf]
    %v717 = vld [vmem:[%s2 + $0x4c] sm:$0xf]
    %v718 = vld [vmem:[%s2 + $0x50] sm:$0xf]
    %v719 = vld [vmem:[%s2 + $0x54] sm:$0xf]
    %v720 = vld [vmem:[%s2 + $0x58] sm:$0xf]
    %v721 = vld [vmem:[%s2 + $0x5c] sm:$0xf]
    %v722 = vld [vmem:[%s2 + $0x60] sm:$0xf]
    %v723 = vld [vmem:[%s2 + $0x64] sm:$0xf]
    %v724 = vld [vmem:[%s2 + $0x68] sm:$0xf]
    %v725 = vld [vmem:[%s2 + $0x6c] sm:$0xf]
    %v726 = vld [vmem:[%s2 + $0x70] sm:$0xf]
    %v727 = vld [vmem:[%s2 + $0x74] sm:$0xf]
    %v728 = vld [vmem:[%s2 + $0x78] sm:$0xf]
    %v729 = vld [vmem:[%s2 + $0x7c] sm:$0xf]
    %v730 = vunpack.c.l.bf16 %v698
    %v731 = vunpack.c.l.bf16 %v699
    %v732 = vunpack.c.l.bf16 %v700
    %v733 = vunpack.c.l.bf16 %v701
    %v734 = vunpack.c.l.bf16 %v702
    %v735 = vunpack.c.l.bf16 %v703
    %v736 = vunpack.c.l.bf16 %v704
    %v737 = vunpack.c.l.bf16 %v705
    %v738 = vunpack.c.l.bf16 %v706
    %v739 = vunpack.c.l.bf16 %v707
    %v740 = vunpack.c.l.bf16 %v708
    %v741 = vunpack.c.l.bf16 %v709
    %v742 = vunpack.c.l.bf16 %v710
    %v743 = vunpack.c.l.bf16 %v711
    %v744 = vunpack.c.l.bf16 %v712
    %v745 = vunpack.c.l.bf16 %v713
    %v746 = vunpack.c.l.bf16 %v714
    %v747 = vunpack.c.l.bf16 %v715
    %v748 = vunpack.c.l.bf16 %v716
    %v749 = vunpack.c.l.bf16 %v717
    %v750 = vunpack.c.l.bf16 %v718
    %v751 = vunpack.c.l.bf16 %v719
    %v752 = vunpack.c.l.bf16 %v720
    %v753 = vunpack.c.l.bf16 %v721
    %v754 = vunpack.c.l.bf16 %v722
    %v755 = vunpack.c.l.bf16 %v723
    %v756 = vunpack.c.l.bf16 %v724
    %v757 = vunpack.c.l.bf16 %v725
    %v758 = vunpack.c.l.bf16 %v726
    %v759 = vunpack.c.l.bf16 %v727
    %v760 = vunpack.c.l.bf16 %v728
    %v761 = vunpack.c.l.bf16 %v729
    %v762 = vadd.f32 %v666, %v730
    %v763 = vadd.f32 %v667, %v731
    %v764 = vadd.f32 %v668, %v732
    %v765 = vadd.f32 %v669, %v733
    %v766 = vadd.f32 %v670, %v734
    %v767 = vadd.f32 %v671, %v735
    %v768 = vadd.f32 %v672, %v736
    %v769 = vadd.f32 %v673, %v737
    %v770 = vadd.f32 %v674, %v738
    %v771 = vadd.f32 %v675, %v739
    %v772 = vadd.f32 %v676, %v740
    %v773 = vadd.f32 %v677, %v741
    %v774 = vadd.f32 %v678, %v742
    %v775 = vadd.f32 %v679, %v743
    %v776 = vadd.f32 %v680, %v744
    %v777 = vadd.f32 %v681, %v745
    %v778 = vadd.f32 %v682, %v746
    %v779 = vadd.f32 %v683, %v747
    %v780 = vadd.f32 %v684, %v748
    %v781 = vadd.f32 %v685, %v749
    %v782 = vadd.f32 %v686, %v750
    %v783 = vadd.f32 %v687, %v751
    %v784 = vadd.f32 %v688, %v752
    %v785 = vadd.f32 %v689, %v753
    %v786 = vadd.f32 %v690, %v754
    %v787 = vadd.f32 %v691, %v755
    %v788 = vadd.f32 %v692, %v756
    %v789 = vadd.f32 %v693, %v757
    %v790 = vadd.f32 %v694, %v758
    %v791 = vadd.f32 %v695, %v759
    %v792 = vadd.f32 %v696, %v760
    %v793 = vadd.f32 %v697, %v761
    %795 = vset.pattern.permute.xlu0 0
    %796 = vperm.xlu0 %795, %v634
    %v797 = vpop.permute.xlu0 %796
    %800 = vset.pattern.permute.xlu0 0
    %801 = vperm.xlu0 %800, %v635
    %v802 = vpop.permute.xlu0 %801
    %805 = vset.pattern.permute.xlu0 0
    %806 = vperm.xlu0 %805, %v636
    %v807 = vpop.permute.xlu0 %806
    %810 = vset.pattern.permute.xlu0 0
    %811 = vperm.xlu0 %810, %v637
    %v812 = vpop.permute.xlu0 %811
    %815 = vset.pattern.permute.xlu0 0
    %816 = vperm.xlu0 %815, %v638
    %v817 = vpop.permute.xlu0 %816
    %820 = vset.pattern.permute.xlu0 0
    %821 = vperm.xlu0 %820, %v639
    %v822 = vpop.permute.xlu0 %821
    %825 = vset.pattern.permute.xlu0 0
    %826 = vperm.xlu0 %825, %v640
    %v827 = vpop.permute.xlu0 %826
    %830 = vset.pattern.permute.xlu0 0
    %831 = vperm.xlu0 %830, %v641
    %v832 = vpop.permute.xlu0 %831
    %835 = vset.pattern.permute.xlu0 0
    %836 = vperm.xlu0 %835, %v642
    %v837 = vpop.permute.xlu0 %836
    %840 = vset.pattern.permute.xlu0 0
    %841 = vperm.xlu0 %840, %v643
    %v842 = vpop.permute.xlu0 %841
    %845 = vset.pattern.permute.xlu0 0
    %846 = vperm.xlu0 %845, %v644
    %v847 = vpop.permute.xlu0 %846
    %850 = vset.pattern.permute.xlu0 0
    %851 = vperm.xlu0 %850, %v645
    %v852 = vpop.permute.xlu0 %851
    %855 = vset.pattern.permute.xlu0 0
    %856 = vperm.xlu0 %855, %v646
    %v857 = vpop.permute.xlu0 %856
    %860 = vset.pattern.permute.xlu0 0
    %861 = vperm.xlu0 %860, %v647
    %v862 = vpop.permute.xlu0 %861
    %865 = vset.pattern.permute.xlu0 0
    %866 = vperm.xlu0 %865, %v648
    %v867 = vpop.permute.xlu0 %866
    %870 = vset.pattern.permute.xlu0 0
    %871 = vperm.xlu0 %870, %v649
    %v872 = vpop.permute.xlu0 %871
    %875 = vset.pattern.permute.xlu0 0
    %876 = vperm.xlu0 %875, %v650
    %v877 = vpop.permute.xlu0 %876
    %880 = vset.pattern.permute.xlu0 0
    %881 = vperm.xlu0 %880, %v651
    %v882 = vpop.permute.xlu0 %881
    %885 = vset.pattern.permute.xlu0 0
    %886 = vperm.xlu0 %885, %v652
    %v887 = vpop.permute.xlu0 %886
    %890 = vset.pattern.permute.xlu0 0
    %891 = vperm.xlu0 %890, %v653
    %v892 = vpop.permute.xlu0 %891
    %895 = vset.pattern.permute.xlu0 0
    %896 = vperm.xlu0 %895, %v654
    %v897 = vpop.permute.xlu0 %896
    %900 = vset.pattern.permute.xlu0 0
    %901 = vperm.xlu0 %900, %v655
    %v902 = vpop.permute.xlu0 %901
    %905 = vset.pattern.permute.xlu0 0
    %906 = vperm.xlu0 %905, %v656
    %v907 = vpop.permute.xlu0 %906
    %910 = vset.pattern.permute.xlu0 0
    %911 = vperm.xlu0 %910, %v657
    %v912 = vpop.permute.xlu0 %911
    %915 = vset.pattern.permute.xlu0 0
    %916 = vperm.xlu0 %915, %v658
    %v917 = vpop.permute.xlu0 %916
    %920 = vset.pattern.permute.xlu0 0
    %921 = vperm.xlu0 %920, %v659
    %v922 = vpop.permute.xlu0 %921
    %925 = vset.pattern.permute.xlu0 0
    %926 = vperm.xlu0 %925, %v660
    %v927 = vpop.permute.xlu0 %926
    %930 = vset.pattern.permute.xlu0 0
    %931 = vperm.xlu0 %930, %v661
    %v932 = vpop.permute.xlu0 %931
    %935 = vset.pattern.permute.xlu0 0
    %936 = vperm.xlu0 %935, %v662
    %v937 = vpop.permute.xlu0 %936
    %940 = vset.pattern.permute.xlu0 0
    %941 = vperm.xlu0 %940, %v663
    %v942 = vpop.permute.xlu0 %941
    %945 = vset.pattern.permute.xlu0 0
    %946 = vperm.xlu0 %945, %v664
    %v947 = vpop.permute.xlu0 %946
    %950 = vset.pattern.permute.xlu0 0
    %951 = vperm.xlu0 %950, %v665
    %v952 = vpop.permute.xlu0 %951
    %v954 = vmul.f32 %v797, %v762
    %v955 = vmul.f32 %v802, %v763
    %v956 = vmul.f32 %v807, %v764
    %v957 = vmul.f32 %v812, %v765
    %v958 = vmul.f32 %v817, %v766
    %v959 = vmul.f32 %v822, %v767
    %v960 = vmul.f32 %v827, %v768
    %v961 = vmul.f32 %v832, %v769
    %v962 = vmul.f32 %v837, %v770
    %v963 = vmul.f32 %v842, %v771
    %v964 = vmul.f32 %v847, %v772
    %v965 = vmul.f32 %v852, %v773
    %v966 = vmul.f32 %v857, %v774
    %v967 = vmul.f32 %v862, %v775
    %v968 = vmul.f32 %v867, %v776
    %v969 = vmul.f32 %v872, %v777
    %v970 = vmul.f32 %v877, %v778
    %v971 = vmul.f32 %v882, %v779
    %v972 = vmul.f32 %v887, %v780
    %v973 = vmul.f32 %v892, %v781
    %v974 = vmul.f32 %v897, %v782
    %v975 = vmul.f32 %v902, %v783
    %v976 = vmul.f32 %v907, %v784
    %v977 = vmul.f32 %v912, %v785
    %v978 = vmul.f32 %v917, %v786
    %v979 = vmul.f32 %v922, %v787
    %v980 = vmul.f32 %v927, %v788
    %v981 = vmul.f32 %v932, %v789
    %v982 = vmul.f32 %v937, %v790
    %v983 = vmul.f32 %v942, %v791
    %v984 = vmul.f32 %v947, %v792
    %v985 = vmul.f32 %v952, %v793
    %986 = vst [vmem:[%s4] sm:$0xff] %v954
    %987 = vst [vmem:[%s4 + $0x8] sm:$0xff] %v955
    %988 = vst [vmem:[%s4 + $0x10] sm:$0xff] %v956
    %989 = vst [vmem:[%s4 + $0x18] sm:$0xff] %v957
    %990 = vst [vmem:[%s4 + $0x20] sm:$0xff] %v958
    %991 = vst [vmem:[%s4 + $0x28] sm:$0xff] %v959
    %992 = vst [vmem:[%s4 + $0x30] sm:$0xff] %v960
    %993 = vst [vmem:[%s4 + $0x38] sm:$0xff] %v961
    %994 = vst [vmem:[%s4 + $0x40] sm:$0xff] %v962
    %995 = vst [vmem:[%s4 + $0x48] sm:$0xff] %v963
    %996 = vst [vmem:[%s4 + $0x50] sm:$0xff] %v964
    %997 = vst [vmem:[%s4 + $0x58] sm:$0xff] %v965
    %998 = vst [vmem:[%s4 + $0x60] sm:$0xff] %v966
    %999 = vst [vmem:[%s4 + $0x68] sm:$0xff] %v967
    %1000 = vst [vmem:[%s4 + $0x70] sm:$0xff] %v968
    %1001 = vst [vmem:[%s4 + $0x78] sm:$0xff] %v969
    %1002 = vst [vmem:[%s4 + $0x80] sm:$0xff] %v970
    %1003 = vst [vmem:[%s4 + $0x88] sm:$0xff] %v971
    %1004 = vst [vmem:[%s4 + $0x90] sm:$0xff] %v972
    %1005 = vst [vmem:[%s4 + $0x98] sm:$0xff] %v973
    %1006 = vst [vmem:[%s4 + $0xa0] sm:$0xff] %v974
    %1007 = vst [vmem:[%s4 + $0xa8] sm:$0xff] %v975
    %1008 = vst [vmem:[%s4 + $0xb0] sm:$0xff] %v976
    %1009 = vst [vmem:[%s4 + $0xb8] sm:$0xff] %v977
    %1010 = vst [vmem:[%s4 + $0xc0] sm:$0xff] %v978
    %1011 = vst [vmem:[%s4 + $0xc8] sm:$0xff] %v979
    %1012 = vst [vmem:[%s4 + $0xd0] sm:$0xff] %v980
    %1013 = vst [vmem:[%s4 + $0xd8] sm:$0xff] %v981
    %1014 = vst [vmem:[%s4 + $0xe0] sm:$0xff] %v982
    %1015 = vst [vmem:[%s4 + $0xe8] sm:$0xff] %v983
    %1016 = vst [vmem:[%s4 + $0xf0] sm:$0xff] %v984
    %1017 = vst [vmem:[%s4 + $0xf8] sm:$0xff] %v985
  $region25: #{closed_call.15} parent=0 // pred_fallthru
    _
  // Predicated region
  $region26: #{closed_call.15} parent=0 // pred_check
    _
  $region27: #{closed_call.15} parent=0 // pred_check_branch
    %1019 = sbr.rel (0) target = $region29
  $region28: #{closed_call.15} parent=0 // pred_region
    _
  $region29: #{closed_call.15} parent=0 // pred_fallthru
    _
  // Predicated region
  $region30: #{closed_call.15} parent=0 // pred_check
    _
  $region31: #{closed_call.15} parent=0 // pred_check_branch
    %1021 = sbr.rel (0) target = $region33
  $region32: #{closed_call.15} parent=0 // pred_region
    _
  $region33: #{closed_call.15} parent=0 // pred_fallthru
    _

</llo_original>
